<compile_context>
chip_gen: v7x
topology: tpu7x:2x2x1
jax: 0.10.0
libtpu: 0.0.40
codegen_flags: <defaults>
</compile_context>

<pallas_src>
import math

import jax
import jax.numpy as jnp
from jax.experimental import pallas as pl
from jax.experimental.pallas import tpu as pltpu

B, L, H = 4, 8, 128   # batch (decoder_start_input.repeat(4,1)), seq_len, hidden
DEC_STEPS = 10


# --------------------------------------------------------------------------
# Fused kernel: (folded) graph embedding -> encoder LSTM -> decoder LSTM
#               -> Bahdanau glimpse
# --------------------------------------------------------------------------
def tsp_kernel(coords_ref, wfused_ref,
               enc_whh_ref, enc_b_ref,
               dec_wih_ref, dec_whh_ref, dec_b_ref,
               wq_ref, bq_ref, wref_ref, bref_ref, v_ref, start_ref,
               q_ref, ht_ref, ct_ref,
               enc_scratch):
    Bk, Lk, _ = coords_ref.shape
    Hk = wq_ref.shape[0]
    H3 = 3 * Hk
    bf16 = jnp.bfloat16

    # ---- Encoder input-side gate pre-activations. GraphEmbedding is folded
    #      into W_fused = emb @ W_ih (done in wrapper), so this is pure VPU
    #      work — no MXU pass, no [B,L,H] "embedded" intermediate.
    wf = wfused_ref[...]                                      # [2, 4H] f32
    enc_b = enc_b_ref[0, :]                                   # [4H]
    coords = coords_ref[...]                                  # [B, L, 2]
    gx_all = (coords[:, :, 0:1] * wf[0, :]
              + coords[:, :, 1:2] * wf[1, :] + enc_b)         # [B, L, 4H] f32

    # ---- Encoder LSTM (8 steps, fully unrolled) ----------------------------
    enc_whh = enc_whh_ref[...]                                # [H, 4H] bf16

    h = jnp.zeros((Bk, Hk), jnp.float32)
    c = jnp.zeros((Bk, Hk), jnp.float32)
    for t in range(Lk):
        gates = gx_all[:, t, :] + jnp.dot(h.astype(bf16), enc_whh,
                                          preferred_element_type=jnp.float32)
        sig = jax.nn.sigmoid(gates[:, :H3])        # merged i, f, o (one EUP op)
        g_g = jnp.tanh(gates[:, H3:])              # g gate
        c = sig[:, Hk:2 * Hk] * c + sig[:, 0:Hk] * g_g
        h = sig[:, 2 * Hk:H3] * jnp.tanh(c)
        enc_scratch[:, t, :] = h                   # encoder outputs stay in VMEM

    # ---- Decoder LSTM: 10 steps, input is constant every step --------------
    dec_whh = dec_whh_ref[...]                                # [H, 4H] bf16
    gx_dec = (jnp.dot(start_ref[...], dec_wih_ref[...],
                      preferred_element_type=jnp.float32)
              + dec_b_ref[0, :])                              # [1, 4H] hoisted
    gx_dec = jnp.broadcast_to(gx_dec, (Bk, 4 * Hk))

    for _ in range(DEC_STEPS):
        gates = gx_dec + jnp.dot(h.astype(bf16), dec_whh,
                                 preferred_element_type=jnp.float32)
        sig = jax.nn.sigmoid(gates[:, :H3])
        g_g = jnp.tanh(gates[:, H3:])
        c = sig[:, Hk:2 * Hk] * c + sig[:, 0:Hk] * g_g
        h = sig[:, 2 * Hk:H3] * jnp.tanh(c)

    # ---- Bahdanau glimpse (use_tanh=True, C=10), computed ONCE --------------
    # The reference loop never feeds the glimpse query back into the LSTM, so
    # only the final glimpse is live.
    enc = enc_scratch[...]                                    # [B, L, H] f32
    E = (jnp.dot(enc.reshape(Bk * Lk, Hk).astype(bf16), wref_ref[...],
                 preferred_element_type=jnp.float32)
         + bref_ref[0, :]).reshape(Bk, Lk, Hk)                # W_ref(ref)

    qp = (jnp.dot(h.astype(bf16), wq_ref[...],
                  preferred_element_type=jnp.float32)
          + bq_ref[0, :])                                     # [B, H]
    act = jnp.tanh(qp[:, None, :] + E)                        # [B, L, H]
    u = jnp.sum(act * v_ref[0, :], axis=-1)                   # [B, L]
    logits = 10.0 * jnp.tanh(u)
    attn = jax.nn.softmax(logits, axis=-1)                    # over seq dim
    q = jnp.sum(attn[:, :, None] * E, axis=1)                 # [B, H]

    q_ref[...] = q
    ht_ref[...] = h
    ct_ref[...] = c


# --------------------------------------------------------------------------
# Glue: parameter init (PyTorch layout), wrapper-side layout plumbing,
#       pallas_call
# --------------------------------------------------------------------------
def _full_spec(shape):
    nd = len(shape)
    return pl.BlockSpec(shape, lambda *_: (0,) * nd)


def _reorder_gates(w):
    """Permute last-dim gate blocks from PyTorch (i, f, g, o) to (i, f, o, g)."""
    hh = w.shape[-1] // 4
    return jnp.concatenate(
        [w[..., :2 * hh], w[..., 3 * hh:], w[..., 2 * hh:3 * hh]], axis=-1)


def init_params(key, hidden=H):
    s = 1.0 / math.sqrt(hidden)
    ks = jax.random.split(key, 13)

    def u(k, shape, scale=s):
        return jax.random.uniform(k, shape, jnp.float32, -scale, scale)

    return dict(
        emb=u(ks[0], (2, hidden)),               # GraphEmbedding.embedding
        enc_wih=u(ks[1], (hidden, 4 * hidden)),  # encoder weight_ih^T (i,f,g,o)
        enc_whh=u(ks[2], (hidden, 4 * hidden)),  # encoder weight_hh^T
        enc_b=u(ks[3], (1, 4 * hidden)),         # encoder b_ih + b_hh
        dec_wih=u(ks[4], (hidden, 4 * hidden)),
        dec_whh=u(ks[5], (hidden, 4 * hidden)),
        dec_b=u(ks[6], (1, 4 * hidden)),
        wq=u(ks[7], (hidden, hidden)),           # glimpse W_query.weight^T
        bq=u(ks[8], (1, hidden)),
        wref=u(ks[9], (hidden, hidden)),         # glimpse W_ref conv weight^T
        bref=u(ks[10], (1, hidden)),
        v=u(ks[11], (1, hidden)),                # glimpse V
        start=u(ks[12], (1, hidden)),            # decoder_start_input
    )


@jax.jit
def tsp_forward(sample, params):
    """sample: [B, 2, L] float32 (PyTorch NCL layout)."""
    coords = jnp.transpose(sample, (0, 2, 1)).astype(jnp.float32)   # [B, L, 2]
    b, l, _ = coords.shape
    h = params['wq'].shape[0]
    bf16 = jnp.bfloat16

    # Wrapper-side layout plumbing (zero-cost w.r.t. the serial recurrence):
    #  * fold GraphEmbedding into the encoder input projection,
    #  * reorder gate columns (i,f,g,o) -> (i,f,o,g),
    #  * cast matmul weights to bf16 (accumulation stays f32 in-kernel).
    wfused = _reorder_gates(params['emb'] @ params['enc_wih'])       # [2, 4H]
    enc_whh = _reorder_gates(params['enc_whh']).astype(bf16)
    enc_b = _reorder_gates(params['enc_b'])
    dec_wih = _reorder_gates(params['dec_wih']).astype(bf16)
    dec_whh = _reorder_gates(params['dec_whh']).astype(bf16)
    dec_b = _reorder_gates(params['dec_b'])
    wq = params['wq'].astype(bf16)
    wref = params['wref'].astype(bf16)
    start = params['start'].astype(bf16)

    # TODO(synk): if many problem instances are processed per call, add a
    # leading "parallel" grid axis over instances (fills both v7x TCs); a
    # single instance is inherently one serial recurrence.
    q, ht, ct = pl.pallas_call(
        tsp_kernel,
        out_shape=(jax.ShapeDtypeStruct((b, h), jnp.float32),
                   jax.ShapeDtypeStruct((b, h), jnp.float32),
                   jax.ShapeDtypeStruct((b, h), jnp.float32)),
        grid=(1,),
        in_specs=[_full_spec((b, l, 2)),
                  _full_spec((2, 4 * h)),
                  _full_spec((h, 4 * h)), _full_spec((1, 4 * h)),
                  _full_spec((h, 4 * h)), _full_spec((h, 4 * h)),
                  _full_spec((1, 4 * h)),
                  _full_spec((h, h)), _full_spec((1, h)),
                  _full_spec((h, h)), _full_spec((1, h)),
                  _full_spec((1, h)), _full_spec((1, h))],
        out_specs=(_full_spec((b, h)), _full_spec((b, h)), _full_spec((b, h))),
        scratch_shapes=[pltpu.VMEM((b, l, h), jnp.float32)],
        compiler_params=pltpu.CompilerParams(
            dimension_semantics=("arbitrary",)),
    )(coords, wfused,
      enc_whh, enc_b,
      dec_wih, dec_whh, dec_b,
      wq, params['bq'], wref, params['bref'], params['v'], start)

    # Original forward returns None; expose final glimpse query + LSTM state.
    return q, ht, ct


if __name__ == "__main__":
    key = jax.random.PRNGKey(0)
    pkey, xkey = jax.random.split(key)
    params = init_params(pkey)

    # inputs: [batch=4, coord_dim=2, seq_len=8] (PyTorch layout)
    sample = jax.random.uniform(xkey, (B, 2, L), jnp.float32)

    q, ht, ct = tsp_forward(sample, params)
    jax.block_until_ready((q, ht, ct))

    assert q.shape == (B, H) and ht.shape == (B, H) and ct.shape == (B, H)
    assert bool(jnp.all(jnp.isfinite(q))) and bool(jnp.all(jnp.isfinite(ht)))
    print("KERNEL_OK")
</pallas_src>

<mosaic_0001>
module attributes {stable_mosaic.version = 11 : i64} {
  func.func @tsp_kernel(%arg0: i32, %arg1: memref<4x8x2xf32, #tpu.memory_space<vmem>>, %arg2: memref<2x512xf32, #tpu.memory_space<vmem>>, %arg3: memref<128x512xbf16, #tpu.memory_space<vmem>>, %arg4: memref<1x512xf32, #tpu.memory_space<vmem>>, %arg5: memref<128x512xbf16, #tpu.memory_space<vmem>>, %arg6: memref<128x512xbf16, #tpu.memory_space<vmem>>, %arg7: memref<1x512xf32, #tpu.memory_space<vmem>>, %arg8: memref<128x128xbf16, #tpu.memory_space<vmem>>, %arg9: memref<1x128xf32, #tpu.memory_space<vmem>>, %arg10: memref<128x128xbf16, #tpu.memory_space<vmem>>, %arg11: memref<1x128xf32, #tpu.memory_space<vmem>>, %arg12: memref<1x128xf32, #tpu.memory_space<vmem>>, %arg13: memref<1x128xbf16, #tpu.memory_space<vmem>>, %arg14: memref<4x128xf32, #tpu.memory_space<vmem>>, %arg15: memref<4x128xf32, #tpu.memory_space<vmem>>, %arg16: memref<4x128xf32, #tpu.memory_space<vmem>>, %arg17: memref<4x8x128xf32, #tpu.memory_space<vmem>>) attributes {dimension_semantics = [#tpu.dimension_semantics<arbitrary>], iteration_bounds = array<i64: 1>, scalar_prefetch = 0 : i64, scratch_operands = 1 : i64, tpu.core_type = #tpu.core_type<tc>, window_params = [{pipeline_mode = #tpu.pipeline_mode<synchronous>, transform_indices = @transform_0, window_bounds = array<i64: 4, 8, 2>}, {pipeline_mode = #tpu.pipeline_mode<synchronous>, transform_indices = @transform_1, window_bounds = array<i64: 2, 512>}, {pipeline_mode = #tpu.pipeline_mode<synchronous>, transform_indices = @transform_2, window_bounds = array<i64: 128, 512>}, {pipeline_mode = #tpu.pipeline_mode<synchronous>, transform_indices = @transform_3, window_bounds = array<i64: 1, 512>}, {pipeline_mode = #tpu.pipeline_mode<synchronous>, transform_indices = @transform_4, window_bounds = array<i64: 128, 512>}, {pipeline_mode = #tpu.pipeline_mode<synchronous>, transform_indices = @transform_5, window_bounds = array<i64: 128, 512>}, {pipeline_mode = #tpu.pipeline_mode<synchronous>, transform_indices = @transform_6, window_bounds = array<i64: 1, 512>}, {pipeline_mode = #tpu.pipeline_mode<synchronous>, transform_indices = @transform_7, window_bounds = array<i64: 128, 128>}, {pipeline_mode = #tpu.pipeline_mode<synchronous>, transform_indices = @transform_8, window_bounds = array<i64: 1, 128>}, {pipeline_mode = #tpu.pipeline_mode<synchronous>, transform_indices = @transform_9, window_bounds = array<i64: 128, 128>}, {pipeline_mode = #tpu.pipeline_mode<synchronous>, transform_indices = @transform_10, window_bounds = array<i64: 1, 128>}, {pipeline_mode = #tpu.pipeline_mode<synchronous>, transform_indices = @transform_11, window_bounds = array<i64: 1, 128>}, {pipeline_mode = #tpu.pipeline_mode<synchronous>, transform_indices = @transform_12, window_bounds = array<i64: 1, 128>}, {pipeline_mode = #tpu.pipeline_mode<synchronous>, transform_indices = @transform_13, window_bounds = array<i64: 4, 128>}, {pipeline_mode = #tpu.pipeline_mode<synchronous>, transform_indices = @transform_14, window_bounds = array<i64: 4, 128>}, {pipeline_mode = #tpu.pipeline_mode<synchronous>, transform_indices = @transform_15, window_bounds = array<i64: 4, 128>}]} {
    %c0 = arith.constant 0 : index
    %c0_0 = arith.constant 0 : index
    %0 = vector.load %arg2[%c0, %c0_0] : memref<2x512xf32, #tpu.memory_space<vmem>>, vector<2x512xf32>
    %c0_1 = arith.constant 0 : index
    %c0_2 = arith.constant 0 : index
    %1 = vector.load %arg4[%c0_1, %c0_2] : memref<1x512xf32, #tpu.memory_space<vmem>>, vector<1x512xf32>
    %2 = vector.shape_cast %1 : vector<1x512xf32> to vector<512xf32>
    %c0_3 = arith.constant 0 : index
    %c0_4 = arith.constant 0 : index
    %c0_5 = arith.constant 0 : index
    %3 = vector.load %arg1[%c0_3, %c0_4, %c0_5] : memref<4x8x2xf32, #tpu.memory_space<vmem>>, vector<4x8x2xf32>
    %4 = vector.extract_strided_slice %3 {offsets = [0, 0, 0], sizes = [4, 8, 1], strides = [1, 1, 1]} : vector<4x8x2xf32> to vector<4x8x1xf32>
    %5 = vector.extract_strided_slice %0 {offsets = [0, 0], sizes = [1, 512], strides = [1, 1]} : vector<2x512xf32> to vector<1x512xf32>
    %6 = vector.shape_cast %5 : vector<1x512xf32> to vector<512xf32>
    %7 = vector.shape_cast %6 : vector<512xf32> to vector<1x1x512xf32>
    %8 = vector.broadcast %4 : vector<4x8x1xf32> to vector<4x8x512xf32>
    %9 = vector.broadcast %7 : vector<1x1x512xf32> to vector<4x8x512xf32>
    %10 = arith.mulf %8, %9 : vector<4x8x512xf32>
    %11 = vector.extract_strided_slice %3 {offsets = [0, 0, 1], sizes = [4, 8, 1], strides = [1, 1, 1]} : vector<4x8x2xf32> to vector<4x8x1xf32>
    %12 = vector.extract_strided_slice %0 {offsets = [1, 0], sizes = [1, 512], strides = [1, 1]} : vector<2x512xf32> to vector<1x512xf32>
    %13 = vector.shape_cast %12 : vector<1x512xf32> to vector<512xf32>
    %14 = vector.shape_cast %13 : vector<512xf32> to vector<1x1x512xf32>
    %15 = vector.broadcast %11 : vector<4x8x1xf32> to vector<4x8x512xf32>
    %16 = vector.broadcast %14 : vector<1x1x512xf32> to vector<4x8x512xf32>
    %17 = arith.mulf %15, %16 : vector<4x8x512xf32>
    %18 = arith.addf %10, %17 : vector<4x8x512xf32>
    %19 = vector.shape_cast %2 : vector<512xf32> to vector<1x1x512xf32>
    %20 = vector.broadcast %19 : vector<1x1x512xf32> to vector<4x8x512xf32>
    %21 = arith.addf %18, %20 : vector<4x8x512xf32>
    %c0_6 = arith.constant 0 : index
    %c0_7 = arith.constant 0 : index
    %22 = vector.load %arg3[%c0_6, %c0_7] : memref<128x512xbf16, #tpu.memory_space<vmem>>, vector<128x512xbf16>
    %cst = arith.constant 0.000000e+00 : f32
    %23 = vector.broadcast %cst : f32 to vector<4x128xf32>
    %cst_8 = arith.constant 0.000000e+00 : f32
    %24 = vector.broadcast %cst_8 : f32 to vector<4x128xf32>
    %25 = vector.extract_strided_slice %21 {offsets = [0, 0, 0], sizes = [4, 1, 512], strides = [1, 1, 1]} : vector<4x8x512xf32> to vector<4x1x512xf32>
    %26 = vector.shape_cast %25 : vector<4x1x512xf32> to vector<4x512xf32>
    %27 = arith.truncf %23 : vector<4x128xf32> to vector<4x128xbf16>
    %cst_9 = arith.constant dense<0.000000e+00> : vector<4x512xf32>
    %28 = tpu.matmul %27, %22, %cst_9 {dimension_numbers = #tpu.dot_dimension_numbers<[1], [0], [0], [1], [0, 0, 1, 1], [], []>} : vector<4x128xbf16>, vector<128x512xbf16>, vector<4x512xf32> -> vector<4x512xf32>
    %29 = arith.addf %26, %28 : vector<4x512xf32>
    %30 = vector.extract_strided_slice %29 {offsets = [0, 0], sizes = [4, 384], strides = [1, 1]} : vector<4x512xf32> to vector<4x384xf32>
    %31 = arith.negf %30 : vector<4x384xf32>
    %32 = math.exp %31 : vector<4x384xf32>
    %cst_10 = arith.constant 1.000000e+00 : f32
    %33 = vector.broadcast %cst_10 : f32 to vector<4x384xf32>
    %34 = arith.addf %33, %32 : vector<4x384xf32>
    %35 = arith.divf %33, %34 : vector<4x384xf32>
    %36 = vector.extract_strided_slice %29 {offsets = [0, 384], sizes = [4, 128], strides = [1, 1]} : vector<4x512xf32> to vector<4x128xf32>
    %37 = math.tanh %36 : vector<4x128xf32>
    %38 = vector.extract_strided_slice %35 {offsets = [0, 128], sizes = [4, 128], strides = [1, 1]} : vector<4x384xf32> to vector<4x128xf32>
    %39 = arith.mulf %38, %24 : vector<4x128xf32>
    %40 = vector.extract_strided_slice %35 {offsets = [0, 0], sizes = [4, 128], strides = [1, 1]} : vector<4x384xf32> to vector<4x128xf32>
    %41 = arith.mulf %40, %37 : vector<4x128xf32>
    %42 = arith.addf %39, %41 : vector<4x128xf32>
    %43 = vector.extract_strided_slice %35 {offsets = [0, 256], sizes = [4, 128], strides = [1, 1]} : vector<4x384xf32> to vector<4x128xf32>
    %44 = math.tanh %42 : vector<4x128xf32>
    %45 = arith.mulf %43, %44 : vector<4x128xf32>
    %c0_11 = arith.constant 0 : index
    %c0_12 = arith.constant 0 : index
    %c0_13 = arith.constant 0 : index
    %46 = vector.load %arg17[%c0_11, %c0_12, %c0_13] : memref<4x8x128xf32, #tpu.memory_space<vmem>>, vector<4x1x128xf32>
    %47 = vector.shape_cast %46 : vector<4x1x128xf32> to vector<4x128xf32>
    %48 = vector.shape_cast %45 : vector<4x128xf32> to vector<4x1x128xf32>
    tpu.vector_store %arg17[%c0_11, %c0_12, %c0_13], %48 {strides = array<i32>} : memref<4x8x128xf32, #tpu.memory_space<vmem>>, vector<4x1x128xf32>,
    %49 = vector.extract_strided_slice %21 {offsets = [0, 1, 0], sizes = [4, 1, 512], strides = [1, 1, 1]} : vector<4x8x512xf32> to vector<4x1x512xf32>
    %50 = vector.shape_cast %49 : vector<4x1x512xf32> to vector<4x512xf32>
    %51 = arith.truncf %45 : vector<4x128xf32> to vector<4x128xbf16>
    %cst_14 = arith.constant dense<0.000000e+00> : vector<4x512xf32>
    %52 = tpu.matmul %51, %22, %cst_14 {dimension_numbers = #tpu.dot_dimension_numbers<[1], [0], [0], [1], [0, 0, 1, 1], [], []>} : vector<4x128xbf16>, vector<128x512xbf16>, vector<4x512xf32> -> vector<4x512xf32>
    %53 = arith.addf %50, %52 : vector<4x512xf32>
    %54 = vector.extract_strided_slice %53 {offsets = [0, 0], sizes = [4, 384], strides = [1, 1]} : vector<4x512xf32> to vector<4x384xf32>
    %55 = arith.negf %54 : vector<4x384xf32>
    %56 = math.exp %55 : vector<4x384xf32>
    %cst_15 = arith.constant 1.000000e+00 : f32
    %57 = vector.broadcast %cst_15 : f32 to vector<4x384xf32>
    %58 = arith.addf %57, %56 : vector<4x384xf32>
    %59 = arith.divf %57, %58 : vector<4x384xf32>
    %60 = vector.extract_strided_slice %53 {offsets = [0, 384], sizes = [4, 128], strides = [1, 1]} : vector<4x512xf32> to vector<4x128xf32>
    %61 = math.tanh %60 : vector<4x128xf32>
    %62 = vector.extract_strided_slice %59 {offsets = [0, 128], sizes = [4, 128], strides = [1, 1]} : vector<4x384xf32> to vector<4x128xf32>
    %63 = arith.mulf %62, %42 : vector<4x128xf32>
    %64 = vector.extract_strided_slice %59 {offsets = [0, 0], sizes = [4, 128], strides = [1, 1]} : vector<4x384xf32> to vector<4x128xf32>
    %65 = arith.mulf %64, %61 : vector<4x128xf32>
    %66 = arith.addf %63, %65 : vector<4x128xf32>
    %67 = vector.extract_strided_slice %59 {offsets = [0, 256], sizes = [4, 128], strides = [1, 1]} : vector<4x384xf32> to vector<4x128xf32>
    %68 = math.tanh %66 : vector<4x128xf32>
    %69 = arith.mulf %67, %68 : vector<4x128xf32>
    %c0_16 = arith.constant 0 : index
    %c1 = arith.constant 1 : index
    %c0_17 = arith.constant 0 : index
    %70 = vector.load %arg17[%c0_16, %c1, %c0_17] : memref<4x8x128xf32, #tpu.memory_space<vmem>>, vector<4x1x128xf32>
    %71 = vector.shape_cast %70 : vector<4x1x128xf32> to vector<4x128xf32>
    %72 = vector.shape_cast %69 : vector<4x128xf32> to vector<4x1x128xf32>
    tpu.vector_store %arg17[%c0_16, %c1, %c0_17], %72 {strides = array<i32>} : memref<4x8x128xf32, #tpu.memory_space<vmem>>, vector<4x1x128xf32>,
    %73 = vector.extract_strided_slice %21 {offsets = [0, 2, 0], sizes = [4, 1, 512], strides = [1, 1, 1]} : vector<4x8x512xf32> to vector<4x1x512xf32>
    %74 = vector.shape_cast %73 : vector<4x1x512xf32> to vector<4x512xf32>
    %75 = arith.truncf %69 : vector<4x128xf32> to vector<4x128xbf16>
    %cst_18 = arith.constant dense<0.000000e+00> : vector<4x512xf32>
    %76 = tpu.matmul %75, %22, %cst_18 {dimension_numbers = #tpu.dot_dimension_numbers<[1], [0], [0], [1], [0, 0, 1, 1], [], []>} : vector<4x128xbf16>, vector<128x512xbf16>, vector<4x512xf32> -> vector<4x512xf32>
    %77 = arith.addf %74, %76 : vector<4x512xf32>
    %78 = vector.extract_strided_slice %77 {offsets = [0, 0], sizes = [4, 384], strides = [1, 1]} : vector<4x512xf32> to vector<4x384xf32>
    %79 = arith.negf %78 : vector<4x384xf32>
    %80 = math.exp %79 : vector<4x384xf32>
    %cst_19 = arith.constant 1.000000e+00 : f32
    %81 = vector.broadcast %cst_19 : f32 to vector<4x384xf32>
    %82 = arith.addf %81, %80 : vector<4x384xf32>
    %83 = arith.divf %81, %82 : vector<4x384xf32>
    %84 = vector.extract_strided_slice %77 {offsets = [0, 384], sizes = [4, 128], strides = [1, 1]} : vector<4x512xf32> to vector<4x128xf32>
    %85 = math.tanh %84 : vector<4x128xf32>
    %86 = vector.extract_strided_slice %83 {offsets = [0, 128], sizes = [4, 128], strides = [1, 1]} : vector<4x384xf32> to vector<4x128xf32>
    %87 = arith.mulf %86, %66 : vector<4x128xf32>
    %88 = vector.extract_strided_slice %83 {offsets = [0, 0], sizes = [4, 128], strides = [1, 1]} : vector<4x384xf32> to vector<4x128xf32>
    %89 = arith.mulf %88, %85 : vector<4x128xf32>
    %90 = arith.addf %87, %89 : vector<4x128xf32>
    %91 = vector.extract_strided_slice %83 {offsets = [0, 256], sizes = [4, 128], strides = [1, 1]} : vector<4x384xf32> to vector<4x128xf32>
    %92 = math.tanh %90 : vector<4x128xf32>
    %93 = arith.mulf %91, %92 : vector<4x128xf32>
    %c0_20 = arith.constant 0 : index
    %c2 = arith.constant 2 : index
    %c0_21 = arith.constant 0 : index
    %94 = vector.load %arg17[%c0_20, %c2, %c0_21] : memref<4x8x128xf32, #tpu.memory_space<vmem>>, vector<4x1x128xf32>
    %95 = vector.shape_cast %94 : vector<4x1x128xf32> to vector<4x128xf32>
    %96 = vector.shape_cast %93 : vector<4x128xf32> to vector<4x1x128xf32>
    tpu.vector_store %arg17[%c0_20, %c2, %c0_21], %96 {strides = array<i32>} : memref<4x8x128xf32, #tpu.memory_space<vmem>>, vector<4x1x128xf32>,
    %97 = vector.extract_strided_slice %21 {offsets = [0, 3, 0], sizes = [4, 1, 512], strides = [1, 1, 1]} : vector<4x8x512xf32> to vector<4x1x512xf32>
    %98 = vector.shape_cast %97 : vector<4x1x512xf32> to vector<4x512xf32>
    %99 = arith.truncf %93 : vector<4x128xf32> to vector<4x128xbf16>
    %cst_22 = arith.constant dense<0.000000e+00> : vector<4x512xf32>
    %100 = tpu.matmul %99, %22, %cst_22 {dimension_numbers = #tpu.dot_dimension_numbers<[1], [0], [0], [1], [0, 0, 1, 1], [], []>} : vector<4x128xbf16>, vector<128x512xbf16>, vector<4x512xf32> -> vector<4x512xf32>
    %101 = arith.addf %98, %100 : vector<4x512xf32>
    %102 = vector.extract_strided_slice %101 {offsets = [0, 0], sizes = [4, 384], strides = [1, 1]} : vector<4x512xf32> to vector<4x384xf32>
    %103 = arith.negf %102 : vector<4x384xf32>
    %104 = math.exp %103 : vector<4x384xf32>
    %cst_23 = arith.constant 1.000000e+00 : f32
    %105 = vector.broadcast %cst_23 : f32 to vector<4x384xf32>
    %106 = arith.addf %105, %104 : vector<4x384xf32>
    %107 = arith.divf %105, %106 : vector<4x384xf32>
    %108 = vector.extract_strided_slice %101 {offsets = [0, 384], sizes = [4, 128], strides = [1, 1]} : vector<4x512xf32> to vector<4x128xf32>
    %109 = math.tanh %108 : vector<4x128xf32>
    %110 = vector.extract_strided_slice %107 {offsets = [0, 128], sizes = [4, 128], strides = [1, 1]} : vector<4x384xf32> to vector<4x128xf32>
    %111 = arith.mulf %110, %90 : vector<4x128xf32>
    %112 = vector.extract_strided_slice %107 {offsets = [0, 0], sizes = [4, 128], strides = [1, 1]} : vector<4x384xf32> to vector<4x128xf32>
    %113 = arith.mulf %112, %109 : vector<4x128xf32>
    %114 = arith.addf %111, %113 : vector<4x128xf32>
    %115 = vector.extract_strided_slice %107 {offsets = [0, 256], sizes = [4, 128], strides = [1, 1]} : vector<4x384xf32> to vector<4x128xf32>
    %116 = math.tanh %114 : vector<4x128xf32>
    %117 = arith.mulf %115, %116 : vector<4x128xf32>
    %c0_24 = arith.constant 0 : index
    %c3 = arith.constant 3 : index
    %c0_25 = arith.constant 0 : index
    %118 = vector.load %arg17[%c0_24, %c3, %c0_25] : memref<4x8x128xf32, #tpu.memory_space<vmem>>, vector<4x1x128xf32>
    %119 = vector.shape_cast %118 : vector<4x1x128xf32> to vector<4x128xf32>
    %120 = vector.shape_cast %117 : vector<4x128xf32> to vector<4x1x128xf32>
    tpu.vector_store %arg17[%c0_24, %c3, %c0_25], %120 {strides = array<i32>} : memref<4x8x128xf32, #tpu.memory_space<vmem>>, vector<4x1x128xf32>,
    %121 = vector.extract_strided_slice %21 {offsets = [0, 4, 0], sizes = [4, 1, 512], strides = [1, 1, 1]} : vector<4x8x512xf32> to vector<4x1x512xf32>
    %122 = vector.shape_cast %121 : vector<4x1x512xf32> to vector<4x512xf32>
    %123 = arith.truncf %117 : vector<4x128xf32> to vector<4x128xbf16>
    %cst_26 = arith.constant dense<0.000000e+00> : vector<4x512xf32>
    %124 = tpu.matmul %123, %22, %cst_26 {dimension_numbers = #tpu.dot_dimension_numbers<[1], [0], [0], [1], [0, 0, 1, 1], [], []>} : vector<4x128xbf16>, vector<128x512xbf16>, vector<4x512xf32> -> vector<4x512xf32>
    %125 = arith.addf %122, %124 : vector<4x512xf32>
    %126 = vector.extract_strided_slice %125 {offsets = [0, 0], sizes = [4, 384], strides = [1, 1]} : vector<4x512xf32> to vector<4x384xf32>
    %127 = arith.negf %126 : vector<4x384xf32>
    %128 = math.exp %127 : vector<4x384xf32>
    %cst_27 = arith.constant 1.000000e+00 : f32
    %129 = vector.broadcast %cst_27 : f32 to vector<4x384xf32>
    %130 = arith.addf %129, %128 : vector<4x384xf32>
    %131 = arith.divf %129, %130 : vector<4x384xf32>
    %132 = vector.extract_strided_slice %125 {offsets = [0, 384], sizes = [4, 128], strides = [1, 1]} : vector<4x512xf32> to vector<4x128xf32>
    %133 = math.tanh %132 : vector<4x128xf32>
    %134 = vector.extract_strided_slice %131 {offsets = [0, 128], sizes = [4, 128], strides = [1, 1]} : vector<4x384xf32> to vector<4x128xf32>
    %135 = arith.mulf %134, %114 : vector<4x128xf32>
    %136 = vector.extract_strided_slice %131 {offsets = [0, 0], sizes = [4, 128], strides = [1, 1]} : vector<4x384xf32> to vector<4x128xf32>
    %137 = arith.mulf %136, %133 : vector<4x128xf32>
    %138 = arith.addf %135, %137 : vector<4x128xf32>
    %139 = vector.extract_strided_slice %131 {offsets = [0, 256], sizes = [4, 128], strides = [1, 1]} : vector<4x384xf32> to vector<4x128xf32>
    %140 = math.tanh %138 : vector<4x128xf32>
    %141 = arith.mulf %139, %140 : vector<4x128xf32>
    %c0_28 = arith.constant 0 : index
    %c4 = arith.constant 4 : index
    %c0_29 = arith.constant 0 : index
    %142 = vector.load %arg17[%c0_28, %c4, %c0_29] : memref<4x8x128xf32, #tpu.memory_space<vmem>>, vector<4x1x128xf32>
    %143 = vector.shape_cast %142 : vector<4x1x128xf32> to vector<4x128xf32>
    %144 = vector.shape_cast %141 : vector<4x128xf32> to vector<4x1x128xf32>
    tpu.vector_store %arg17[%c0_28, %c4, %c0_29], %144 {strides = array<i32>} : memref<4x8x128xf32, #tpu.memory_space<vmem>>, vector<4x1x128xf32>,
    %145 = vector.extract_strided_slice %21 {offsets = [0, 5, 0], sizes = [4, 1, 512], strides = [1, 1, 1]} : vector<4x8x512xf32> to vector<4x1x512xf32>
    %146 = vector.shape_cast %145 : vector<4x1x512xf32> to vector<4x512xf32>
    %147 = arith.truncf %141 : vector<4x128xf32> to vector<4x128xbf16>
    %cst_30 = arith.constant dense<0.000000e+00> : vector<4x512xf32>
    %148 = tpu.matmul %147, %22, %cst_30 {dimension_numbers = #tpu.dot_dimension_numbers<[1], [0], [0], [1], [0, 0, 1, 1], [], []>} : vector<4x128xbf16>, vector<128x512xbf16>, vector<4x512xf32> -> vector<4x512xf32>
    %149 = arith.addf %146, %148 : vector<4x512xf32>
    %150 = vector.extract_strided_slice %149 {offsets = [0, 0], sizes = [4, 384], strides = [1, 1]} : vector<4x512xf32> to vector<4x384xf32>
    %151 = arith.negf %150 : vector<4x384xf32>
    %152 = math.exp %151 : vector<4x384xf32>
    %cst_31 = arith.constant 1.000000e+00 : f32
    %153 = vector.broadcast %cst_31 : f32 to vector<4x384xf32>
    %154 = arith.addf %153, %152 : vector<4x384xf32>
    %155 = arith.divf %153, %154 : vector<4x384xf32>
    %156 = vector.extract_strided_slice %149 {offsets = [0, 384], sizes = [4, 128], strides = [1, 1]} : vector<4x512xf32> to vector<4x128xf32>
    %157 = math.tanh %156 : vector<4x128xf32>
    %158 = vector.extract_strided_slice %155 {offsets = [0, 128], sizes = [4, 128], strides = [1, 1]} : vector<4x384xf32> to vector<4x128xf32>
    %159 = arith.mulf %158, %138 : vector<4x128xf32>
    %160 = vector.extract_strided_slice %155 {offsets = [0, 0], sizes = [4, 128], strides = [1, 1]} : vector<4x384xf32> to vector<4x128xf32>
    %161 = arith.mulf %160, %157 : vector<4x128xf32>
    %162 = arith.addf %159, %161 : vector<4x128xf32>
    %163 = vector.extract_strided_slice %155 {offsets = [0, 256], sizes = [4, 128], strides = [1, 1]} : vector<4x384xf32> to vector<4x128xf32>
    %164 = math.tanh %162 : vector<4x128xf32>
    %165 = arith.mulf %163, %164 : vector<4x128xf32>
    %c0_32 = arith.constant 0 : index
    %c5 = arith.constant 5 : index
    %c0_33 = arith.constant 0 : index
    %166 = vector.load %arg17[%c0_32, %c5, %c0_33] : memref<4x8x128xf32, #tpu.memory_space<vmem>>, vector<4x1x128xf32>
    %167 = vector.shape_cast %166 : vector<4x1x128xf32> to vector<4x128xf32>
    %168 = vector.shape_cast %165 : vector<4x128xf32> to vector<4x1x128xf32>
    tpu.vector_store %arg17[%c0_32, %c5, %c0_33], %168 {strides = array<i32>} : memref<4x8x128xf32, #tpu.memory_space<vmem>>, vector<4x1x128xf32>,
    %169 = vector.extract_strided_slice %21 {offsets = [0, 6, 0], sizes = [4, 1, 512], strides = [1, 1, 1]} : vector<4x8x512xf32> to vector<4x1x512xf32>
    %170 = vector.shape_cast %169 : vector<4x1x512xf32> to vector<4x512xf32>
    %171 = arith.truncf %165 : vector<4x128xf32> to vector<4x128xbf16>
    %cst_34 = arith.constant dense<0.000000e+00> : vector<4x512xf32>
    %172 = tpu.matmul %171, %22, %cst_34 {dimension_numbers = #tpu.dot_dimension_numbers<[1], [0], [0], [1], [0, 0, 1, 1], [], []>} : vector<4x128xbf16>, vector<128x512xbf16>, vector<4x512xf32> -> vector<4x512xf32>
    %173 = arith.addf %170, %172 : vector<4x512xf32>
    %174 = vector.extract_strided_slice %173 {offsets = [0, 0], sizes = [4, 384], strides = [1, 1]} : vector<4x512xf32> to vector<4x384xf32>
    %175 = arith.negf %174 : vector<4x384xf32>
    %176 = math.exp %175 : vector<4x384xf32>
    %cst_35 = arith.constant 1.000000e+00 : f32
    %177 = vector.broadcast %cst_35 : f32 to vector<4x384xf32>
    %178 = arith.addf %177, %176 : vector<4x384xf32>
    %179 = arith.divf %177, %178 : vector<4x384xf32>
    %180 = vector.extract_strided_slice %173 {offsets = [0, 384], sizes = [4, 128], strides = [1, 1]} : vector<4x512xf32> to vector<4x128xf32>
    %181 = math.tanh %180 : vector<4x128xf32>
    %182 = vector.extract_strided_slice %179 {offsets = [0, 128], sizes = [4, 128], strides = [1, 1]} : vector<4x384xf32> to vector<4x128xf32>
    %183 = arith.mulf %182, %162 : vector<4x128xf32>
    %184 = vector.extract_strided_slice %179 {offsets = [0, 0], sizes = [4, 128], strides = [1, 1]} : vector<4x384xf32> to vector<4x128xf32>
    %185 = arith.mulf %184, %181 : vector<4x128xf32>
    %186 = arith.addf %183, %185 : vector<4x128xf32>
    %187 = vector.extract_strided_slice %179 {offsets = [0, 256], sizes = [4, 128], strides = [1, 1]} : vector<4x384xf32> to vector<4x128xf32>
    %188 = math.tanh %186 : vector<4x128xf32>
    %189 = arith.mulf %187, %188 : vector<4x128xf32>
    %c0_36 = arith.constant 0 : index
    %c6 = arith.constant 6 : index
    %c0_37 = arith.constant 0 : index
    %190 = vector.load %arg17[%c0_36, %c6, %c0_37] : memref<4x8x128xf32, #tpu.memory_space<vmem>>, vector<4x1x128xf32>
    %191 = vector.shape_cast %190 : vector<4x1x128xf32> to vector<4x128xf32>
    %192 = vector.shape_cast %189 : vector<4x128xf32> to vector<4x1x128xf32>
    tpu.vector_store %arg17[%c0_36, %c6, %c0_37], %192 {strides = array<i32>} : memref<4x8x128xf32, #tpu.memory_space<vmem>>, vector<4x1x128xf32>,
    %193 = vector.extract_strided_slice %21 {offsets = [0, 7, 0], sizes = [4, 1, 512], strides = [1, 1, 1]} : vector<4x8x512xf32> to vector<4x1x512xf32>
    %194 = vector.shape_cast %193 : vector<4x1x512xf32> to vector<4x512xf32>
    %195 = arith.truncf %189 : vector<4x128xf32> to vector<4x128xbf16>
    %cst_38 = arith.constant dense<0.000000e+00> : vector<4x512xf32>
    %196 = tpu.matmul %195, %22, %cst_38 {dimension_numbers = #tpu.dot_dimension_numbers<[1], [0], [0], [1], [0, 0, 1, 1], [], []>} : vector<4x128xbf16>, vector<128x512xbf16>, vector<4x512xf32> -> vector<4x512xf32>
    %197 = arith.addf %194, %196 : vector<4x512xf32>
    %198 = vector.extract_strided_slice %197 {offsets = [0, 0], sizes = [4, 384], strides = [1, 1]} : vector<4x512xf32> to vector<4x384xf32>
    %199 = arith.negf %198 : vector<4x384xf32>
    %200 = math.exp %199 : vector<4x384xf32>
    %cst_39 = arith.constant 1.000000e+00 : f32
    %201 = vector.broadcast %cst_39 : f32 to vector<4x384xf32>
    %202 = arith.addf %201, %200 : vector<4x384xf32>
    %203 = arith.divf %201, %202 : vector<4x384xf32>
    %204 = vector.extract_strided_slice %197 {offsets = [0, 384], sizes = [4, 128], strides = [1, 1]} : vector<4x512xf32> to vector<4x128xf32>
    %205 = math.tanh %204 : vector<4x128xf32>
    %206 = vector.extract_strided_slice %203 {offsets = [0, 128], sizes = [4, 128], strides = [1, 1]} : vector<4x384xf32> to vector<4x128xf32>
    %207 = arith.mulf %206, %186 : vector<4x128xf32>
    %208 = vector.extract_strided_slice %203 {offsets = [0, 0], sizes = [4, 128], strides = [1, 1]} : vector<4x384xf32> to vector<4x128xf32>
    %209 = arith.mulf %208, %205 : vector<4x128xf32>
    %210 = arith.addf %207, %209 : vector<4x128xf32>
    %211 = vector.extract_strided_slice %203 {offsets = [0, 256], sizes = [4, 128], strides = [1, 1]} : vector<4x384xf32> to vector<4x128xf32>
    %212 = math.tanh %210 : vector<4x128xf32>
    %213 = arith.mulf %211, %212 : vector<4x128xf32>
    %c0_40 = arith.constant 0 : index
    %c7 = arith.constant 7 : index
    %c0_41 = arith.constant 0 : index
    %214 = vector.load %arg17[%c0_40, %c7, %c0_41] : memref<4x8x128xf32, #tpu.memory_space<vmem>>, vector<4x1x128xf32>
    %215 = vector.shape_cast %214 : vector<4x1x128xf32> to vector<4x128xf32>
    %216 = vector.shape_cast %213 : vector<4x128xf32> to vector<4x1x128xf32>
    tpu.vector_store %arg17[%c0_40, %c7, %c0_41], %216 {strides = array<i32>} : memref<4x8x128xf32, #tpu.memory_space<vmem>>, vector<4x1x128xf32>,
    %c0_42 = arith.constant 0 : index
    %c0_43 = arith.constant 0 : index
    %217 = vector.load %arg6[%c0_42, %c0_43] : memref<128x512xbf16, #tpu.memory_space<vmem>>, vector<128x512xbf16>
    %c0_44 = arith.constant 0 : index
    %c0_45 = arith.constant 0 : index
    %218 = vector.load %arg13[%c0_44, %c0_45] : memref<1x128xbf16, #tpu.memory_space<vmem>>, vector<1x128xbf16>
    %c0_46 = arith.constant 0 : index
    %c0_47 = arith.constant 0 : index
    %219 = vector.load %arg5[%c0_46, %c0_47] : memref<128x512xbf16, #tpu.memory_space<vmem>>, vector<128x512xbf16>
    %cst_48 = arith.constant dense<0.000000e+00> : vector<1x512xf32>
    %220 = tpu.matmul %218, %219, %cst_48 {dimension_numbers = #tpu.dot_dimension_numbers<[1], [0], [0], [1], [0, 0, 1, 1], [], []>} : vector<1x128xbf16>, vector<128x512xbf16>, vector<1x512xf32> -> vector<1x512xf32>
    %c0_49 = arith.constant 0 : index
    %c0_50 = arith.constant 0 : index
    %221 = vector.load %arg7[%c0_49, %c0_50] : memref<1x512xf32, #tpu.memory_space<vmem>>, vector<1x512xf32>
    %222 = vector.shape_cast %221 : vector<1x512xf32> to vector<512xf32>
    %223 = vector.shape_cast %222 : vector<512xf32> to vector<1x512xf32>
    %224 = arith.addf %220, %223 : vector<1x512xf32>
    %225 = vector.shape_cast %224 : vector<1x512xf32> to vector<1x512xf32>
    %226 = vector.broadcast %225 : vector<1x512xf32> to vector<4x512xf32>
    %227 = arith.truncf %213 : vector<4x128xf32> to vector<4x128xbf16>
    %cst_51 = arith.constant dense<0.000000e+00> : vector<4x512xf32>
    %228 = tpu.matmul %227, %217, %cst_51 {dimension_numbers = #tpu.dot_dimension_numbers<[1], [0], [0], [1], [0, 0, 1, 1], [], []>} : vector<4x128xbf16>, vector<128x512xbf16>, vector<4x512xf32> -> vector<4x512xf32>
    %229 = arith.addf %226, %228 : vector<4x512xf32>
    %230 = vector.extract_strided_slice %229 {offsets = [0, 0], sizes = [4, 384], strides = [1, 1]} : vector<4x512xf32> to vector<4x384xf32>
    %231 = arith.negf %230 : vector<4x384xf32>
    %232 = math.exp %231 : vector<4x384xf32>
    %cst_52 = arith.constant 1.000000e+00 : f32
    %233 = vector.broadcast %cst_52 : f32 to vector<4x384xf32>
    %234 = arith.addf %233, %232 : vector<4x384xf32>
    %235 = arith.divf %233, %234 : vector<4x384xf32>
    %236 = vector.extract_strided_slice %229 {offsets = [0, 384], sizes = [4, 128], strides = [1, 1]} : vector<4x512xf32> to vector<4x128xf32>
    %237 = math.tanh %236 : vector<4x128xf32>
    %238 = vector.extract_strided_slice %235 {offsets = [0, 128], sizes = [4, 128], strides = [1, 1]} : vector<4x384xf32> to vector<4x128xf32>
    %239 = arith.mulf %238, %210 : vector<4x128xf32>
    %240 = vector.extract_strided_slice %235 {offsets = [0, 0], sizes = [4, 128], strides = [1, 1]} : vector<4x384xf32> to vector<4x128xf32>
    %241 = arith.mulf %240, %237 : vector<4x128xf32>
    %242 = arith.addf %239, %241 : vector<4x128xf32>
    %243 = vector.extract_strided_slice %235 {offsets = [0, 256], sizes = [4, 128], strides = [1, 1]} : vector<4x384xf32> to vector<4x128xf32>
    %244 = math.tanh %242 : vector<4x128xf32>
    %245 = arith.mulf %243, %244 : vector<4x128xf32>
    %246 = arith.truncf %245 : vector<4x128xf32> to vector<4x128xbf16>
    %cst_53 = arith.constant dense<0.000000e+00> : vector<4x512xf32>
    %247 = tpu.matmul %246, %217, %cst_53 {dimension_numbers = #tpu.dot_dimension_numbers<[1], [0], [0], [1], [0, 0, 1, 1], [], []>} : vector<4x128xbf16>, vector<128x512xbf16>, vector<4x512xf32> -> vector<4x512xf32>
    %248 = arith.addf %226, %247 : vector<4x512xf32>
    %249 = vector.extract_strided_slice %248 {offsets = [0, 0], sizes = [4, 384], strides = [1, 1]} : vector<4x512xf32> to vector<4x384xf32>
    %250 = arith.negf %249 : vector<4x384xf32>
    %251 = math.exp %250 : vector<4x384xf32>
    %cst_54 = arith.constant 1.000000e+00 : f32
    %252 = vector.broadcast %cst_54 : f32 to vector<4x384xf32>
    %253 = arith.addf %252, %251 : vector<4x384xf32>
    %254 = arith.divf %252, %253 : vector<4x384xf32>
    %255 = vector.extract_strided_slice %248 {offsets = [0, 384], sizes = [4, 128], strides = [1, 1]} : vector<4x512xf32> to vector<4x128xf32>
    %256 = math.tanh %255 : vector<4x128xf32>
    %257 = vector.extract_strided_slice %254 {offsets = [0, 128], sizes = [4, 128], strides = [1, 1]} : vector<4x384xf32> to vector<4x128xf32>
    %258 = arith.mulf %257, %242 : vector<4x128xf32>
    %259 = vector.extract_strided_slice %254 {offsets = [0, 0], sizes = [4, 128], strides = [1, 1]} : vector<4x384xf32> to vector<4x128xf32>
    %260 = arith.mulf %259, %256 : vector<4x128xf32>
    %261 = arith.addf %258, %260 : vector<4x128xf32>
    %262 = vector.extract_strided_slice %254 {offsets = [0, 256], sizes = [4, 128], strides = [1, 1]} : vector<4x384xf32> to vector<4x128xf32>
    %263 = math.tanh %261 : vector<4x128xf32>
    %264 = arith.mulf %262, %263 : vector<4x128xf32>
    %265 = arith.truncf %264 : vector<4x128xf32> to vector<4x128xbf16>
    %cst_55 = arith.constant dense<0.000000e+00> : vector<4x512xf32>
    %266 = tpu.matmul %265, %217, %cst_55 {dimension_numbers = #tpu.dot_dimension_numbers<[1], [0], [0], [1], [0, 0, 1, 1], [], []>} : vector<4x128xbf16>, vector<128x512xbf16>, vector<4x512xf32> -> vector<4x512xf32>
    %267 = arith.addf %226, %266 : vector<4x512xf32>
    %268 = vector.extract_strided_slice %267 {offsets = [0, 0], sizes = [4, 384], strides = [1, 1]} : vector<4x512xf32> to vector<4x384xf32>
    %269 = arith.negf %268 : vector<4x384xf32>
    %270 = math.exp %269 : vector<4x384xf32>
    %cst_56 = arith.constant 1.000000e+00 : f32
    %271 = vector.broadcast %cst_56 : f32 to vector<4x384xf32>
    %272 = arith.addf %271, %270 : vector<4x384xf32>
    %273 = arith.divf %271, %272 : vector<4x384xf32>
    %274 = vector.extract_strided_slice %267 {offsets = [0, 384], sizes = [4, 128], strides = [1, 1]} : vector<4x512xf32> to vector<4x128xf32>
    %275 = math.tanh %274 : vector<4x128xf32>
    %276 = vector.extract_strided_slice %273 {offsets = [0, 128], sizes = [4, 128], strides = [1, 1]} : vector<4x384xf32> to vector<4x128xf32>
    %277 = arith.mulf %276, %261 : vector<4x128xf32>
    %278 = vector.extract_strided_slice %273 {offsets = [0, 0], sizes = [4, 128], strides = [1, 1]} : vector<4x384xf32> to vector<4x128xf32>
    %279 = arith.mulf %278, %275 : vector<4x128xf32>
    %280 = arith.addf %277, %279 : vector<4x128xf32>
    %281 = vector.extract_strided_slice %273 {offsets = [0, 256], sizes = [4, 128], strides = [1, 1]} : vector<4x384xf32> to vector<4x128xf32>
    %282 = math.tanh %280 : vector<4x128xf32>
    %283 = arith.mulf %281, %282 : vector<4x128xf32>
    %284 = arith.truncf %283 : vector<4x128xf32> to vector<4x128xbf16>
    %cst_57 = arith.constant dense<0.000000e+00> : vector<4x512xf32>
    %285 = tpu.matmul %284, %217, %cst_57 {dimension_numbers = #tpu.dot_dimension_numbers<[1], [0], [0], [1], [0, 0, 1, 1], [], []>} : vector<4x128xbf16>, vector<128x512xbf16>, vector<4x512xf32> -> vector<4x512xf32>
    %286 = arith.addf %226, %285 : vector<4x512xf32>
    %287 = vector.extract_strided_slice %286 {offsets = [0, 0], sizes = [4, 384], strides = [1, 1]} : vector<4x512xf32> to vector<4x384xf32>
    %288 = arith.negf %287 : vector<4x384xf32>
    %289 = math.exp %288 : vector<4x384xf32>
    %cst_58 = arith.constant 1.000000e+00 : f32
    %290 = vector.broadcast %cst_58 : f32 to vector<4x384xf32>
    %291 = arith.addf %290, %289 : vector<4x384xf32>
    %292 = arith.divf %290, %291 : vector<4x384xf32>
    %293 = vector.extract_strided_slice %286 {offsets = [0, 384], sizes = [4, 128], strides = [1, 1]} : vector<4x512xf32> to vector<4x128xf32>
    %294 = math.tanh %293 : vector<4x128xf32>
    %295 = vector.extract_strided_slice %292 {offsets = [0, 128], sizes = [4, 128], strides = [1, 1]} : vector<4x384xf32> to vector<4x128xf32>
    %296 = arith.mulf %295, %280 : vector<4x128xf32>
    %297 = vector.extract_strided_slice %292 {offsets = [0, 0], sizes = [4, 128], strides = [1, 1]} : vector<4x384xf32> to vector<4x128xf32>
    %298 = arith.mulf %297, %294 : vector<4x128xf32>
    %299 = arith.addf %296, %298 : vector<4x128xf32>
    %300 = vector.extract_strided_slice %292 {offsets = [0, 256], sizes = [4, 128], strides = [1, 1]} : vector<4x384xf32> to vector<4x128xf32>
    %301 = math.tanh %299 : vector<4x128xf32>
    %302 = arith.mulf %300, %301 : vector<4x128xf32>
    %303 = arith.truncf %302 : vector<4x128xf32> to vector<4x128xbf16>
    %cst_59 = arith.constant dense<0.000000e+00> : vector<4x512xf32>
    %304 = tpu.matmul %303, %217, %cst_59 {dimension_numbers = #tpu.dot_dimension_numbers<[1], [0], [0], [1], [0, 0, 1, 1], [], []>} : vector<4x128xbf16>, vector<128x512xbf16>, vector<4x512xf32> -> vector<4x512xf32>
    %305 = arith.addf %226, %304 : vector<4x512xf32>
    %306 = vector.extract_strided_slice %305 {offsets = [0, 0], sizes = [4, 384], strides = [1, 1]} : vector<4x512xf32> to vector<4x384xf32>
    %307 = arith.negf %306 : vector<4x384xf32>
    %308 = math.exp %307 : vector<4x384xf32>
    %cst_60 = arith.constant 1.000000e+00 : f32
    %309 = vector.broadcast %cst_60 : f32 to vector<4x384xf32>
    %310 = arith.addf %309, %308 : vector<4x384xf32>
    %311 = arith.divf %309, %310 : vector<4x384xf32>
    %312 = vector.extract_strided_slice %305 {offsets = [0, 384], sizes = [4, 128], strides = [1, 1]} : vector<4x512xf32> to vector<4x128xf32>
    %313 = math.tanh %312 : vector<4x128xf32>
    %314 = vector.extract_strided_slice %311 {offsets = [0, 128], sizes = [4, 128], strides = [1, 1]} : vector<4x384xf32> to vector<4x128xf32>
    %315 = arith.mulf %314, %299 : vector<4x128xf32>
    %316 = vector.extract_strided_slice %311 {offsets = [0, 0], sizes = [4, 128], strides = [1, 1]} : vector<4x384xf32> to vector<4x128xf32>
    %317 = arith.mulf %316, %313 : vector<4x128xf32>
    %318 = arith.addf %315, %317 : vector<4x128xf32>
    %319 = vector.extract_strided_slice %311 {offsets = [0, 256], sizes = [4, 128], strides = [1, 1]} : vector<4x384xf32> to vector<4x128xf32>
    %320 = math.tanh %318 : vector<4x128xf32>
    %321 = arith.mulf %319, %320 : vector<4x128xf32>
    %322 = arith.truncf %321 : vector<4x128xf32> to vector<4x128xbf16>
    %cst_61 = arith.constant dense<0.000000e+00> : vector<4x512xf32>
    %323 = tpu.matmul %322, %217, %cst_61 {dimension_numbers = #tpu.dot_dimension_numbers<[1], [0], [0], [1], [0, 0, 1, 1], [], []>} : vector<4x128xbf16>, vector<128x512xbf16>, vector<4x512xf32> -> vector<4x512xf32>
    %324 = arith.addf %226, %323 : vector<4x512xf32>
    %325 = vector.extract_strided_slice %324 {offsets = [0, 0], sizes = [4, 384], strides = [1, 1]} : vector<4x512xf32> to vector<4x384xf32>
    %326 = arith.negf %325 : vector<4x384xf32>
    %327 = math.exp %326 : vector<4x384xf32>
    %cst_62 = arith.constant 1.000000e+00 : f32
    %328 = vector.broadcast %cst_62 : f32 to vector<4x384xf32>
    %329 = arith.addf %328, %327 : vector<4x384xf32>
    %330 = arith.divf %328, %329 : vector<4x384xf32>
    %331 = vector.extract_strided_slice %324 {offsets = [0, 384], sizes = [4, 128], strides = [1, 1]} : vector<4x512xf32> to vector<4x128xf32>
    %332 = math.tanh %331 : vector<4x128xf32>
    %333 = vector.extract_strided_slice %330 {offsets = [0, 128], sizes = [4, 128], strides = [1, 1]} : vector<4x384xf32> to vector<4x128xf32>
    %334 = arith.mulf %333, %318 : vector<4x128xf32>
    %335 = vector.extract_strided_slice %330 {offsets = [0, 0], sizes = [4, 128], strides = [1, 1]} : vector<4x384xf32> to vector<4x128xf32>
    %336 = arith.mulf %335, %332 : vector<4x128xf32>
    %337 = arith.addf %334, %336 : vector<4x128xf32>
    %338 = vector.extract_strided_slice %330 {offsets = [0, 256], sizes = [4, 128], strides = [1, 1]} : vector<4x384xf32> to vector<4x128xf32>
    %339 = math.tanh %337 : vector<4x128xf32>
    %340 = arith.mulf %338, %339 : vector<4x128xf32>
    %341 = arith.truncf %340 : vector<4x128xf32> to vector<4x128xbf16>
    %cst_63 = arith.constant dense<0.000000e+00> : vector<4x512xf32>
    %342 = tpu.matmul %341, %217, %cst_63 {dimension_numbers = #tpu.dot_dimension_numbers<[1], [0], [0], [1], [0, 0, 1, 1], [], []>} : vector<4x128xbf16>, vector<128x512xbf16>, vector<4x512xf32> -> vector<4x512xf32>
    %343 = arith.addf %226, %342 : vector<4x512xf32>
    %344 = vector.extract_strided_slice %343 {offsets = [0, 0], sizes = [4, 384], strides = [1, 1]} : vector<4x512xf32> to vector<4x384xf32>
    %345 = arith.negf %344 : vector<4x384xf32>
    %346 = math.exp %345 : vector<4x384xf32>
    %cst_64 = arith.constant 1.000000e+00 : f32
    %347 = vector.broadcast %cst_64 : f32 to vector<4x384xf32>
    %348 = arith.addf %347, %346 : vector<4x384xf32>
    %349 = arith.divf %347, %348 : vector<4x384xf32>
    %350 = vector.extract_strided_slice %343 {offsets = [0, 384], sizes = [4, 128], strides = [1, 1]} : vector<4x512xf32> to vector<4x128xf32>
    %351 = math.tanh %350 : vector<4x128xf32>
    %352 = vector.extract_strided_slice %349 {offsets = [0, 128], sizes = [4, 128], strides = [1, 1]} : vector<4x384xf32> to vector<4x128xf32>
    %353 = arith.mulf %352, %337 : vector<4x128xf32>
    %354 = vector.extract_strided_slice %349 {offsets = [0, 0], sizes = [4, 128], strides = [1, 1]} : vector<4x384xf32> to vector<4x128xf32>
    %355 = arith.mulf %354, %351 : vector<4x128xf32>
    %356 = arith.addf %353, %355 : vector<4x128xf32>
    %357 = vector.extract_strided_slice %349 {offsets = [0, 256], sizes = [4, 128], strides = [1, 1]} : vector<4x384xf32> to vector<4x128xf32>
    %358 = math.tanh %356 : vector<4x128xf32>
    %359 = arith.mulf %357, %358 : vector<4x128xf32>
    %360 = arith.truncf %359 : vector<4x128xf32> to vector<4x128xbf16>
    %cst_65 = arith.constant dense<0.000000e+00> : vector<4x512xf32>
    %361 = tpu.matmul %360, %217, %cst_65 {dimension_numbers = #tpu.dot_dimension_numbers<[1], [0], [0], [1], [0, 0, 1, 1], [], []>} : vector<4x128xbf16>, vector<128x512xbf16>, vector<4x512xf32> -> vector<4x512xf32>
    %362 = arith.addf %226, %361 : vector<4x512xf32>
    %363 = vector.extract_strided_slice %362 {offsets = [0, 0], sizes = [4, 384], strides = [1, 1]} : vector<4x512xf32> to vector<4x384xf32>
    %364 = arith.negf %363 : vector<4x384xf32>
    %365 = math.exp %364 : vector<4x384xf32>
    %cst_66 = arith.constant 1.000000e+00 : f32
    %366 = vector.broadcast %cst_66 : f32 to vector<4x384xf32>
    %367 = arith.addf %366, %365 : vector<4x384xf32>
    %368 = arith.divf %366, %367 : vector<4x384xf32>
    %369 = vector.extract_strided_slice %362 {offsets = [0, 384], sizes = [4, 128], strides = [1, 1]} : vector<4x512xf32> to vector<4x128xf32>
    %370 = math.tanh %369 : vector<4x128xf32>
    %371 = vector.extract_strided_slice %368 {offsets = [0, 128], sizes = [4, 128], strides = [1, 1]} : vector<4x384xf32> to vector<4x128xf32>
    %372 = arith.mulf %371, %356 : vector<4x128xf32>
    %373 = vector.extract_strided_slice %368 {offsets = [0, 0], sizes = [4, 128], strides = [1, 1]} : vector<4x384xf32> to vector<4x128xf32>
    %374 = arith.mulf %373, %370 : vector<4x128xf32>
    %375 = arith.addf %372, %374 : vector<4x128xf32>
    %376 = vector.extract_strided_slice %368 {offsets = [0, 256], sizes = [4, 128], strides = [1, 1]} : vector<4x384xf32> to vector<4x128xf32>
    %377 = math.tanh %375 : vector<4x128xf32>
    %378 = arith.mulf %376, %377 : vector<4x128xf32>
    %379 = arith.truncf %378 : vector<4x128xf32> to vector<4x128xbf16>
    %cst_67 = arith.constant dense<0.000000e+00> : vector<4x512xf32>
    %380 = tpu.matmul %379, %217, %cst_67 {dimension_numbers = #tpu.dot_dimension_numbers<[1], [0], [0], [1], [0, 0, 1, 1], [], []>} : vector<4x128xbf16>, vector<128x512xbf16>, vector<4x512xf32> -> vector<4x512xf32>
    %381 = arith.addf %226, %380 : vector<4x512xf32>
    %382 = vector.extract_strided_slice %381 {offsets = [0, 0], sizes = [4, 384], strides = [1, 1]} : vector<4x512xf32> to vector<4x384xf32>
    %383 = arith.negf %382 : vector<4x384xf32>
    %384 = math.exp %383 : vector<4x384xf32>
    %cst_68 = arith.constant 1.000000e+00 : f32
    %385 = vector.broadcast %cst_68 : f32 to vector<4x384xf32>
    %386 = arith.addf %385, %384 : vector<4x384xf32>
    %387 = arith.divf %385, %386 : vector<4x384xf32>
    %388 = vector.extract_strided_slice %381 {offsets = [0, 384], sizes = [4, 128], strides = [1, 1]} : vector<4x512xf32> to vector<4x128xf32>
    %389 = math.tanh %388 : vector<4x128xf32>
    %390 = vector.extract_strided_slice %387 {offsets = [0, 128], sizes = [4, 128], strides = [1, 1]} : vector<4x384xf32> to vector<4x128xf32>
    %391 = arith.mulf %390, %375 : vector<4x128xf32>
    %392 = vector.extract_strided_slice %387 {offsets = [0, 0], sizes = [4, 128], strides = [1, 1]} : vector<4x384xf32> to vector<4x128xf32>
    %393 = arith.mulf %392, %389 : vector<4x128xf32>
    %394 = arith.addf %391, %393 : vector<4x128xf32>
    %395 = vector.extract_strided_slice %387 {offsets = [0, 256], sizes = [4, 128], strides = [1, 1]} : vector<4x384xf32> to vector<4x128xf32>
    %396 = math.tanh %394 : vector<4x128xf32>
    %397 = arith.mulf %395, %396 : vector<4x128xf32>
    %398 = arith.truncf %397 : vector<4x128xf32> to vector<4x128xbf16>
    %cst_69 = arith.constant dense<0.000000e+00> : vector<4x512xf32>
    %399 = tpu.matmul %398, %217, %cst_69 {dimension_numbers = #tpu.dot_dimension_numbers<[1], [0], [0], [1], [0, 0, 1, 1], [], []>} : vector<4x128xbf16>, vector<128x512xbf16>, vector<4x512xf32> -> vector<4x512xf32>
    %400 = arith.addf %226, %399 : vector<4x512xf32>
    %401 = vector.extract_strided_slice %400 {offsets = [0, 0], sizes = [4, 384], strides = [1, 1]} : vector<4x512xf32> to vector<4x384xf32>
    %402 = arith.negf %401 : vector<4x384xf32>
    %403 = math.exp %402 : vector<4x384xf32>
    %cst_70 = arith.constant 1.000000e+00 : f32
    %404 = vector.broadcast %cst_70 : f32 to vector<4x384xf32>
    %405 = arith.addf %404, %403 : vector<4x384xf32>
    %406 = arith.divf %404, %405 : vector<4x384xf32>
    %407 = vector.extract_strided_slice %400 {offsets = [0, 384], sizes = [4, 128], strides = [1, 1]} : vector<4x512xf32> to vector<4x128xf32>
    %408 = math.tanh %407 : vector<4x128xf32>
    %409 = vector.extract_strided_slice %406 {offsets = [0, 128], sizes = [4, 128], strides = [1, 1]} : vector<4x384xf32> to vector<4x128xf32>
    %410 = arith.mulf %409, %394 : vector<4x128xf32>
    %411 = vector.extract_strided_slice %406 {offsets = [0, 0], sizes = [4, 128], strides = [1, 1]} : vector<4x384xf32> to vector<4x128xf32>
    %412 = arith.mulf %411, %408 : vector<4x128xf32>
    %413 = arith.addf %410, %412 : vector<4x128xf32>
    %414 = vector.extract_strided_slice %406 {offsets = [0, 256], sizes = [4, 128], strides = [1, 1]} : vector<4x384xf32> to vector<4x128xf32>
    %415 = math.tanh %413 : vector<4x128xf32>
    %416 = arith.mulf %414, %415 : vector<4x128xf32>
    %c0_71 = arith.constant 0 : index
    %c0_72 = arith.constant 0 : index
    %c0_73 = arith.constant 0 : index
    %417 = vector.load %arg17[%c0_71, %c0_72, %c0_73] : memref<4x8x128xf32, #tpu.memory_space<vmem>>, vector<4x8x128xf32>
    %418 = vector.shape_cast %417 : vector<4x8x128xf32> to vector<32x128xf32>
    %419 = arith.truncf %418 : vector<32x128xf32> to vector<32x128xbf16>
    %c0_74 = arith.constant 0 : index
    %c0_75 = arith.constant 0 : index
    %420 = vector.load %arg10[%c0_74, %c0_75] : memref<128x128xbf16, #tpu.memory_space<vmem>>, vector<128x128xbf16>
    %cst_76 = arith.constant dense<0.000000e+00> : vector<32x128xf32>
    %421 = tpu.matmul %419, %420, %cst_76 {dimension_numbers = #tpu.dot_dimension_numbers<[1], [0], [0], [1], [0, 0, 1, 1], [], []>} : vector<32x128xbf16>, vector<128x128xbf16>, vector<32x128xf32> -> vector<32x128xf32>
    %c0_77 = arith.constant 0 : index
    %c0_78 = arith.constant 0 : index
    %422 = vector.load %arg11[%c0_77, %c0_78] : memref<1x128xf32, #tpu.memory_space<vmem>>, vector<1x128xf32>
    %423 = vector.shape_cast %422 : vector<1x128xf32> to vector<128xf32>
    %424 = vector.shape_cast %423 : vector<128xf32> to vector<1x128xf32>
    %425 = vector.broadcast %424 : vector<1x128xf32> to vector<32x128xf32>
    %426 = arith.addf %421, %425 : vector<32x128xf32>
    %427 = vector.shape_cast %426 : vector<32x128xf32> to vector<4x8x128xf32>
    %428 = arith.truncf %416 : vector<4x128xf32> to vector<4x128xbf16>
    %c0_79 = arith.constant 0 : index
    %c0_80 = arith.constant 0 : index
    %429 = vector.load %arg8[%c0_79, %c0_80] : memref<128x128xbf16, #tpu.memory_space<vmem>>, vector<128x128xbf16>
    %cst_81 = arith.constant dense<0.000000e+00> : vector<4x128xf32>
    %430 = tpu.matmul %428, %429, %cst_81 {dimension_numbers = #tpu.dot_dimension_numbers<[1], [0], [0], [1], [0, 0, 1, 1], [], []>} : vector<4x128xbf16>, vector<128x128xbf16>, vector<4x128xf32> -> vector<4x128xf32>
    %c0_82 = arith.constant 0 : index
    %c0_83 = arith.constant 0 : index
    %431 = vector.load %arg9[%c0_82, %c0_83] : memref<1x128xf32, #tpu.memory_space<vmem>>, vector<1x128xf32>
    %432 = vector.shape_cast %431 : vector<1x128xf32> to vector<128xf32>
    %433 = vector.shape_cast %432 : vector<128xf32> to vector<1x128xf32>
    %434 = vector.broadcast %433 : vector<1x128xf32> to vector<4x128xf32>
    %435 = arith.addf %430, %434 : vector<4x128xf32>
    %436 = vector.shape_cast %435 : vector<4x128xf32> to vector<4x1x128xf32>
    %437 = vector.broadcast %436 : vector<4x1x128xf32> to vector<4x8x128xf32>
    %438 = arith.addf %437, %427 : vector<4x8x128xf32>
    %439 = math.tanh %438 : vector<4x8x128xf32>
    %c0_84 = arith.constant 0 : index
    %c0_85 = arith.constant 0 : index
    %440 = vector.load %arg12[%c0_84, %c0_85] : memref<1x128xf32, #tpu.memory_space<vmem>>, vector<1x128xf32>
    %441 = vector.shape_cast %440 : vector<1x128xf32> to vector<128xf32>
    %442 = vector.shape_cast %441 : vector<128xf32> to vector<1x1x128xf32>
    %443 = vector.broadcast %442 : vector<1x1x128xf32> to vector<4x8x128xf32>
    %444 = arith.mulf %439, %443 : vector<4x8x128xf32>
    %cst_86 = arith.constant dense<0.000000e+00> : vector<4x8xf32>
    %445 = vector.multi_reduction <add>, %444, %cst_86 [2] : vector<4x8x128xf32> to vector<4x8xf32>
    %446 = math.tanh %445 : vector<4x8xf32>
    %cst_87 = arith.constant 1.000000e+01 : f32
    %447 = vector.broadcast %cst_87 : f32 to vector<4x8xf32>
    %448 = arith.mulf %447, %446 : vector<4x8xf32>
    %cst_88 = arith.constant dense<0xFF800000> : vector<4xf32>
    %449 = vector.multi_reduction <maximumf>, %448, %cst_88 [1] : vector<4x8xf32> to vector<4xf32>
    %cst_89 = arith.constant 0xFF800000 : f32
    %450 = vector.broadcast %cst_89 : f32 to vector<4xf32>
    %451 = arith.maximumf %450, %449 : vector<4xf32>
    %452 = vector.shape_cast %451 : vector<4xf32> to vector<4x1xf32>
    %453 = vector.broadcast %452 : vector<4x1xf32> to vector<4x8xf32>
    %454 = arith.subf %448, %453 : vector<4x8xf32>
    %455 = math.exp %454 : vector<4x8xf32>
    %cst_90 = arith.constant dense<0.000000e+00> : vector<4xf32>
    %456 = vector.multi_reduction <add>, %455, %cst_90 [1] : vector<4x8xf32> to vector<4xf32>
    %457 = vector.shape_cast %456 : vector<4xf32> to vector<4x1xf32>
    %458 = vector.broadcast %457 : vector<4x1xf32> to vector<4x8xf32>
    %459 = arith.divf %455, %458 : vector<4x8xf32>
    %460 = vector.shape_cast %459 : vector<4x8xf32> to vector<4x8x1xf32>
    %461 = vector.broadcast %460 : vector<4x8x1xf32> to vector<4x8x128xf32>
    %462 = arith.mulf %461, %427 : vector<4x8x128xf32>
    %cst_91 = arith.constant dense<0.000000e+00> : vector<4x128xf32>
    %463 = vector.multi_reduction <add>, %462, %cst_91 [1] : vector<4x8x128xf32> to vector<4x128xf32>
    %c0_92 = arith.constant 0 : index
    %c0_93 = arith.constant 0 : index
    %464 = vector.load %arg14[%c0_92, %c0_93] : memref<4x128xf32, #tpu.memory_space<vmem>>, vector<4x128xf32>
    tpu.vector_store %arg14[%c0_92, %c0_93], %463 {strides = array<i32>} : memref<4x128xf32, #tpu.memory_space<vmem>>, vector<4x128xf32>,
    %c0_94 = arith.constant 0 : index
    %c0_95 = arith.constant 0 : index
    %465 = vector.load %arg15[%c0_94, %c0_95] : memref<4x128xf32, #tpu.memory_space<vmem>>, vector<4x128xf32>
    tpu.vector_store %arg15[%c0_94, %c0_95], %416 {strides = array<i32>} : memref<4x128xf32, #tpu.memory_space<vmem>>, vector<4x128xf32>,
    %c0_96 = arith.constant 0 : index
    %c0_97 = arith.constant 0 : index
    %466 = vector.load %arg16[%c0_96, %c0_97] : memref<4x128xf32, #tpu.memory_space<vmem>>, vector<4x128xf32>
    tpu.vector_store %arg16[%c0_96, %c0_97], %413 {strides = array<i32>} : memref<4x128xf32, #tpu.memory_space<vmem>>, vector<4x128xf32>,
    return
  }
  func.func @transform_0(%arg0: i32) -> (i32, i32, i32) {
    %c0_i32 = arith.constant 0 : i32
    %c0_i32_0 = arith.constant 0 : i32
    %c0_i32_1 = arith.constant 0 : i32
    %c0_i32_2 = arith.constant 0 : i32
    return %c0_i32, %c0_i32_0, %c0_i32_1 : i32, i32, i32
  }
  func.func @transform_1(%arg0: i32) -> (i32, i32) {
    %c0_i32 = arith.constant 0 : i32
    %c0_i32_0 = arith.constant 0 : i32
    %c0_i32_1 = arith.constant 0 : i32
    return %c0_i32, %c0_i32_0 : i32, i32
  }
  func.func @transform_2(%arg0: i32) -> (i32, i32) {
    %c0_i32 = arith.constant 0 : i32
    %c0_i32_0 = arith.constant 0 : i32
    %c0_i32_1 = arith.constant 0 : i32
    return %c0_i32, %c0_i32_0 : i32, i32
  }
  func.func @transform_3(%arg0: i32) -> (i32, i32) {
    %c0_i32 = arith.constant 0 : i32
    %c0_i32_0 = arith.constant 0 : i32
    %c0_i32_1 = arith.constant 0 : i32
    return %c0_i32, %c0_i32_0 : i32, i32
  }
  func.func @transform_4(%arg0: i32) -> (i32, i32) {
    %c0_i32 = arith.constant 0 : i32
    %c0_i32_0 = arith.constant 0 : i32
    %c0_i32_1 = arith.constant 0 : i32
    return %c0_i32, %c0_i32_0 : i32, i32
  }
  func.func @transform_5(%arg0: i32) -> (i32, i32) {
    %c0_i32 = arith.constant 0 : i32
    %c0_i32_0 = arith.constant 0 : i32
    %c0_i32_1 = arith.constant 0 : i32
    return %c0_i32, %c0_i32_0 : i32, i32
  }
  func.func @transform_6(%arg0: i32) -> (i32, i32) {
    %c0_i32 = arith.constant 0 : i32
    %c0_i32_0 = arith.constant 0 : i32
    %c0_i32_1 = arith.constant 0 : i32
    return %c0_i32, %c0_i32_0 : i32, i32
  }
  func.func @transform_7(%arg0: i32) -> (i32, i32) {
    %c0_i32 = arith.constant 0 : i32
    %c0_i32_0 = arith.constant 0 : i32
    %c0_i32_1 = arith.constant 0 : i32
    return %c0_i32, %c0_i32_0 : i32, i32
  }
  func.func @transform_8(%arg0: i32) -> (i32, i32) {
    %c0_i32 = arith.constant 0 : i32
    %c0_i32_0 = arith.constant 0 : i32
    %c0_i32_1 = arith.constant 0 : i32
    return %c0_i32, %c0_i32_0 : i32, i32
  }
  func.func @transform_9(%arg0: i32) -> (i32, i32) {
    %c0_i32 = arith.constant 0 : i32
    %c0_i32_0 = arith.constant 0 : i32
    %c0_i32_1 = arith.constant 0 : i32
    return %c0_i32, %c0_i32_0 : i32, i32
  }
  func.func @transform_10(%arg0: i32) -> (i32, i32) {
    %c0_i32 = arith.constant 0 : i32
    %c0_i32_0 = arith.constant 0 : i32
    %c0_i32_1 = arith.constant 0 : i32
    return %c0_i32, %c0_i32_0 : i32, i32
  }
  func.func @transform_11(%arg0: i32) -> (i32, i32) {
    %c0_i32 = arith.constant 0 : i32
    %c0_i32_0 = arith.constant 0 : i32
    %c0_i32_1 = arith.constant 0 : i32
    return %c0_i32, %c0_i32_0 : i32, i32
  }
  func.func @transform_12(%arg0: i32) -> (i32, i32) {
    %c0_i32 = arith.constant 0 : i32
    %c0_i32_0 = arith.constant 0 : i32
    %c0_i32_1 = arith.constant 0 : i32
    return %c0_i32, %c0_i32_0 : i32, i32
  }
  func.func @transform_13(%arg0: i32) -> (i32, i32) {
    %c0_i32 = arith.constant 0 : i32
    %c0_i32_0 = arith.constant 0 : i32
    %c0_i32_1 = arith.constant 0 : i32
    return %c0_i32, %c0_i32_0 : i32, i32
  }
  func.func @transform_14(%arg0: i32) -> (i32, i32) {
    %c0_i32 = arith.constant 0 : i32
    %c0_i32_0 = arith.constant 0 : i32
    %c0_i32_1 = arith.constant 0 : i32
    return %c0_i32, %c0_i32_0 : i32, i32
  }
  func.func @transform_15(%arg0: i32) -> (i32, i32) {
    %c0_i32 = arith.constant 0 : i32
    %c0_i32_0 = arith.constant 0 : i32
    %c0_i32_1 = arith.constant 0 : i32
    return %c0_i32, %c0_i32_0 : i32, i32
  }
}

</mosaic_0001>

<llo_original>
// kernel: tsp_forward.1
$region0: #{tsp_forward.1}
  #allocation0 [shape = 'u32[]', space=smem, size = 0x4, offset = 0x4, fixed_abs, tag = 'smem constant byte address 0x4 - core index']
  #allocation1 [shape = 'u32[144,128]{1,0:T(1,128)}', space=vmem, size = 0x12000, scoped, tag = 'internal scratch']
  #allocation2 [shape = 'f32[4,8,128]{2,1,0:T(8,128)}', space=vmem, size = 0x4000, scoped, tag = 'scratch operand']
  %s0 = inlined_call_operand.vmem [shape: f32[4,8,2], index: 0, kind: input, shape index: {}]
  %s1 = inlined_call_operand.vmem [shape: f32[2,512], index: 1, kind: input, shape index: {}]
  %s2 = inlined_call_operand.vmem [shape: bf16[128,512], index: 2, kind: input, shape index: {}]
  %s3 = inlined_call_operand.vmem [shape: f32[1,512], index: 3, kind: input, shape index: {}]
  %s4 = inlined_call_operand.vmem [shape: bf16[128,512], index: 4, kind: input, shape index: {}]
  %s5 = inlined_call_operand.vmem [shape: bf16[128,512], index: 5, kind: input, shape index: {}]
  %s6 = inlined_call_operand.vmem [shape: f32[1,512], index: 6, kind: input, shape index: {}]
  %s7 = inlined_call_operand.vmem [shape: bf16[128,128], index: 7, kind: input, shape index: {}]
  %s8 = inlined_call_operand.vmem [shape: f32[1,128], index: 8, kind: input, shape index: {}]
  %s9 = inlined_call_operand.vmem [shape: bf16[128,128], index: 9, kind: input, shape index: {}]
  %s10 = inlined_call_operand.vmem [shape: f32[1,128], index: 10, kind: input, shape index: {}]
  %s11 = inlined_call_operand.vmem [shape: f32[1,128], index: 11, kind: input, shape index: {}]
  %s12 = inlined_call_operand.vmem [shape: bf16[1,128], index: 12, kind: input, shape index: {}]
  %s13 = inlined_call_operand.hbm [shape: f32[4,128], index: 13, kind: output, shape index: {0}]
  %s14 = inlined_call_operand.hbm [shape: f32[4,128], index: 14, kind: output, shape index: {1}]
  %s15 = inlined_call_operand.hbm [shape: f32[4,128], index: 15, kind: output, shape index: {2}]
  %16 = xla_tuple %s13, %s14, %s15
  %s17 = sld [smem:[#allocation0]]
  $region78: #{tsp_forward.1} parent=0
    _
  %s19 = ssub.s32 1, %s17
  %s20 = scalar_select 0, %s19, %s17
  $region1: #{tsp_forward.1} parent=0
    #allocation3 [shape = 'u8[2048]{0}', space=vmem, size = 0x800, scoped, tag = 'output window, operand 0, single buffered']
    #allocation4 [shape = 's32[1]{0}', space=sflag, size = 0x4, scoped, tag = 'scoped memory for tsp_forward.1']
    #allocation5 [shape = 'u8[2048]{0}', space=vmem, size = 0x800, scoped, tag = 'output window, operand 1, single buffered']
    #allocation6 [shape = 's32[1]{0}', space=sflag, size = 0x4, scoped, tag = 'scoped memory for tsp_forward.1']
    #allocation7 [shape = 'u8[2048]{0}', space=vmem, size = 0x800, scoped, tag = 'output window, operand 2, single buffered']
    %21 = vsyncpa [#allocation4], 0
    %22 = vsyncpa [#allocation6], 0
    // Predicated region
    $region2: #{tsp_forward.1} parent=1 // pred_check
      _
    $region3: #{tsp_forward.1} parent=1 // pred_check_branch
      %24 = sbr.rel (0) target = $region5
    $region4: #{tsp_forward.1} parent=1 // pred_region
      _
    $region5: #{tsp_forward.1} parent=1 // pred_fallthru
      _
    // Predicated region
    $region6: #{tsp_forward.1} parent=1 // pred_check
      _
    $region7: #{tsp_forward.1} parent=1 // pred_check_branch
      %26 = sbr.rel (0) target = $region9
    $region8: #{tsp_forward.1} parent=1 // pred_region
      _
    $region9: #{tsp_forward.1} parent=1 // pred_fallthru
      _
    // Predicated region
    $region10: #{tsp_forward.1} parent=1 // pred_check
      _
    $region11: #{tsp_forward.1} parent=1 // pred_check_branch
      %28 = sbr.rel (0) target = $region13
    $region12: #{tsp_forward.1} parent=1 // pred_region
      _
    $region13: #{tsp_forward.1} parent=1 // pred_fallthru
      _
    // Predicated region
    $region14: #{tsp_forward.1} parent=1 // pred_check
      _
    $region15: #{tsp_forward.1} parent=1 // pred_check_branch
      %30 = sbr.rel (0) target = $region17
    $region16: #{tsp_forward.1} parent=1 // pred_region
      _
    $region17: #{tsp_forward.1} parent=1 // pred_fallthru
      _
    // Predicated region
    $region18: #{tsp_forward.1} parent=1 // pred_check
      _
    $region19: #{tsp_forward.1} parent=1 // pred_check_branch
      %32 = sbr.rel (0) target = $region21
    $region20: #{tsp_forward.1} parent=1 // pred_region
      _
    $region21: #{tsp_forward.1} parent=1 // pred_fallthru
      _
    // Predicated region
    $region22: #{tsp_forward.1} parent=1 // pred_check
      _
    $region23: #{tsp_forward.1} parent=1 // pred_check_branch
      %34 = sbr.rel (0) target = $region25
    $region24: #{tsp_forward.1} parent=1 // pred_region
      _
    $region25: #{tsp_forward.1} parent=1 // pred_fallthru
      _
    // Predicated region
    $region26: #{tsp_forward.1} parent=1 // pred_check
      _
    $region27: #{tsp_forward.1} parent=1 // pred_check_branch
      %36 = sbr.rel (0) target = $region29
    $region28: #{tsp_forward.1} parent=1 // pred_region
      _
    $region29: #{tsp_forward.1} parent=1 // pred_fallthru
      _
    // Predicated region
    $region30: #{tsp_forward.1} parent=1 // pred_check
      _
    $region31: #{tsp_forward.1} parent=1 // pred_check_branch
      %38 = sbr.rel (0) target = $region33
    $region32: #{tsp_forward.1} parent=1 // pred_region
      _
    $region33: #{tsp_forward.1} parent=1 // pred_fallthru
      _
    // Predicated region
    $region34: #{tsp_forward.1} parent=1 // pred_check
      _
    $region35: #{tsp_forward.1} parent=1 // pred_check_branch
      %40 = sbr.rel (0) target = $region37
    $region36: #{tsp_forward.1} parent=1 // pred_region
      _
    $region37: #{tsp_forward.1} parent=1 // pred_fallthru
      _
    // Predicated region
    $region38: #{tsp_forward.1} parent=1 // pred_check
      _
    $region39: #{tsp_forward.1} parent=1 // pred_check_branch
      %42 = sbr.rel (0) target = $region41
    $region40: #{tsp_forward.1} parent=1 // pred_region
      _
    $region41: #{tsp_forward.1} parent=1 // pred_fallthru
      _
    // Predicated region
    $region42: #{tsp_forward.1} parent=1 // pred_check
      _
    $region43: #{tsp_forward.1} parent=1 // pred_check_branch
      %44 = sbr.rel (0) target = $region45
    $region44: #{tsp_forward.1} parent=1 // pred_region
      _
    $region45: #{tsp_forward.1} parent=1 // pred_fallthru
      _
    // Predicated region
    $region46: #{tsp_forward.1} parent=1 // pred_check
      _
    $region47: #{tsp_forward.1} parent=1 // pred_check_branch
      %46 = sbr.rel (0) target = $region49
    $region48: #{tsp_forward.1} parent=1 // pred_region
      _
    $region49: #{tsp_forward.1} parent=1 // pred_fallthru
      _
    // Predicated region
    $region50: #{tsp_forward.1} parent=1 // pred_check
      _
    $region51: #{tsp_forward.1} parent=1 // pred_check_branch
      %48 = sbr.rel (0) target = $region53
    $region52: #{tsp_forward.1} parent=1 // pred_region
      _
    $region53: #{tsp_forward.1} parent=1 // pred_fallthru
      _
    %v50 = vld [vmem:[%s1] sm:$0xff]
    %v51 = vld [vmem:[%s3] sm:$0xf]
    %v52 = vld [vmem:[%s0] sm:$0xff]
    %v53 = vld [vmem:[%s0 + $0x8] sm:$0xff]
    %v54 = vld [vmem:[%s0 + $0x10] sm:$0xff]
    %v55 = vld [vmem:[%s0 + $0x18] sm:$0xff]
    %57 = vset.pattern.permute.xlu0 0
    %58 = vperm.xlu0 %57, %v52
    %v59 = vpop.permute.xlu0 %58
    %62 = vset.pattern.permute.xlu0 0
    %63 = vperm.xlu0 %62, %v53
    %v64 = vpop.permute.xlu0 %63
    %67 = vset.pattern.permute.xlu0 0
    %68 = vperm.xlu0 %67, %v54
    %v69 = vpop.permute.xlu0 %68
    %72 = vset.pattern.permute.xlu0 0
    %73 = vperm.xlu0 %72, %v55
    %v74 = vpop.permute.xlu0 %73
    %v77 = vlaneseq
    %v78 = vshrl.u32 %v77, 7
    %v79 = vsub.s32 0, %v78
    %v80 = vrot.slane %v50, %v79
    %v81 = vlaneseq
    %v82 = vshrl.u32 %v81, 7
    %v83 = vsub.s32 2, %v82
    %v84 = vrot.slane %v50, %v83
    %v85 = vlaneseq
    %v86 = vshrl.u32 %v85, 7
    %v87 = vsub.s32 4, %v86
    %v88 = vrot.slane %v50, %v87
    %v89 = vlaneseq
    %v90 = vshrl.u32 %v89, 7
    %v91 = vsub.s32 6, %v90
    %v92 = vrot.slane %v50, %v91
    %v97 = vlaneseq
    %v98 = vshrl.u32 %v97, 7
    %v99 = vsub.s32 0, %v98
    %v100 = vrot.slane %v80, %v99
    %v101 = vlaneseq
    %v102 = vshrl.u32 %v101, 7
    %v103 = vsub.s32 0, %v102
    %v104 = vrot.slane %v84, %v103
    %v105 = vlaneseq
    %v106 = vshrl.u32 %v105, 7
    %v107 = vsub.s32 0, %v106
    %v108 = vrot.slane %v88, %v107
    %v109 = vlaneseq
    %v110 = vshrl.u32 %v109, 7
    %v111 = vsub.s32 0, %v110
    %v112 = vrot.slane %v92, %v111
    %v113 = vmul.f32 %v59, %v100
    %v114 = vmul.f32 %v59, %v104
    %v115 = vmul.f32 %v59, %v108
    %v116 = vmul.f32 %v59, %v112
    %v117 = vmul.f32 %v64, %v100
    %v118 = vmul.f32 %v64, %v104
    %v119 = vmul.f32 %v64, %v108
    %v120 = vmul.f32 %v64, %v112
    %v121 = vmul.f32 %v69, %v100
    %v122 = vmul.f32 %v69, %v104
    %v123 = vmul.f32 %v69, %v108
    %v124 = vmul.f32 %v69, %v112
    %v125 = vmul.f32 %v74, %v100
    %v126 = vmul.f32 %v74, %v104
    %v127 = vmul.f32 %v74, %v108
    %v128 = vmul.f32 %v74, %v112
    %129 = vset.pattern.permute.xlu0 1
    %130 = vperm.xlu0 %129, %v52
    %v131 = vpop.permute.xlu0 %130
    %133 = vset.pattern.permute.xlu0 1
    %134 = vperm.xlu0 %133, %v53
    %v135 = vpop.permute.xlu0 %134
    %137 = vset.pattern.permute.xlu0 1
    %138 = vperm.xlu0 %137, %v54
    %v139 = vpop.permute.xlu0 %138
    %141 = vset.pattern.permute.xlu0 1
    %142 = vperm.xlu0 %141, %v55
    %v143 = vpop.permute.xlu0 %142
    %v145 = vlaneseq
    %v146 = vshrl.u32 %v145, 7
    %v147 = vsub.s32 1, %v146
    %v148 = vrot.slane %v50, %v147
    %v149 = vlaneseq
    %v150 = vshrl.u32 %v149, 7
    %v151 = vsub.s32 3, %v150
    %v152 = vrot.slane %v50, %v151
    %v153 = vlaneseq
    %v154 = vshrl.u32 %v153, 7
    %v155 = vsub.s32 5, %v154
    %v156 = vrot.slane %v50, %v155
    %v157 = vlaneseq
    %v158 = vshrl.u32 %v157, 7
    %v159 = vsub.s32 7, %v158
    %v160 = vrot.slane %v50, %v159
    %v165 = vlaneseq
    %v166 = vshrl.u32 %v165, 7
    %v167 = vsub.s32 1, %v166
    %v168 = vrot.slane %v148, %v167
    %v169 = vlaneseq
    %v170 = vshrl.u32 %v169, 7
    %v171 = vsub.s32 1, %v170
    %v172 = vrot.slane %v152, %v171
    %v173 = vlaneseq
    %v174 = vshrl.u32 %v173, 7
    %v175 = vsub.s32 1, %v174
    %v176 = vrot.slane %v156, %v175
    %v177 = vlaneseq
    %v178 = vshrl.u32 %v177, 7
    %v179 = vsub.s32 1, %v178
    %v180 = vrot.slane %v160, %v179
    %v181 = vmul.f32 %v131, %v168
    %v182 = vmul.f32 %v131, %v172
    %v183 = vmul.f32 %v131, %v176
    %v184 = vmul.f32 %v131, %v180
    %v185 = vmul.f32 %v135, %v168
    %v186 = vmul.f32 %v135, %v172
    %v187 = vmul.f32 %v135, %v176
    %v188 = vmul.f32 %v135, %v180
    %v189 = vmul.f32 %v139, %v168
    %v190 = vmul.f32 %v139, %v172
    %v191 = vmul.f32 %v139, %v176
    %v192 = vmul.f32 %v139, %v180
    %v193 = vmul.f32 %v143, %v168
    %v194 = vmul.f32 %v143, %v172
    %v195 = vmul.f32 %v143, %v176
    %v196 = vmul.f32 %v143, %v180
    %v197 = vadd.f32 %v113, %v181
    %v198 = vadd.f32 %v114, %v182
    %v199 = vadd.f32 %v115, %v183
    %v200 = vadd.f32 %v116, %v184
    %v201 = vadd.f32 %v117, %v185
    %v202 = vadd.f32 %v118, %v186
    %v203 = vadd.f32 %v119, %v187
    %v204 = vadd.f32 %v120, %v188
    %v205 = vadd.f32 %v121, %v189
    %v206 = vadd.f32 %v122, %v190
    %v207 = vadd.f32 %v123, %v191
    %v208 = vadd.f32 %v124, %v192
    %v209 = vadd.f32 %v125, %v193
    %v210 = vadd.f32 %v126, %v194
    %v211 = vadd.f32 %v127, %v195
    %v212 = vadd.f32 %v128, %v196
    %v214 = vlaneseq
    %v215 = vshrl.u32 %v214, 7
    %v216 = vsub.s32 0, %v215
    %v217 = vrot.slane %v51, %v216
    %v218 = vlaneseq
    %v219 = vshrl.u32 %v218, 7
    %v220 = vsub.s32 1, %v219
    %v221 = vrot.slane %v51, %v220
    %v222 = vlaneseq
    %v223 = vshrl.u32 %v222, 7
    %v224 = vsub.s32 2, %v223
    %v225 = vrot.slane %v51, %v224
    %v226 = vlaneseq
    %v227 = vshrl.u32 %v226, 7
    %v228 = vsub.s32 3, %v227
    %v229 = vrot.slane %v51, %v228
    %v234 = vadd.f32 %v197, %v217
    %v235 = vadd.f32 %v198, %v221
    %v236 = vadd.f32 %v199, %v225
    %v237 = vadd.f32 %v200, %v229
    %v238 = vadd.f32 %v201, %v217
    %v239 = vadd.f32 %v202, %v221
    %v240 = vadd.f32 %v203, %v225
    %v241 = vadd.f32 %v204, %v229
    %v242 = vadd.f32 %v205, %v217
    %v243 = vadd.f32 %v206, %v221
    %v244 = vadd.f32 %v207, %v225
    %v245 = vadd.f32 %v208, %v229
    %v246 = vadd.f32 %v209, %v217
    %v247 = vadd.f32 %v210, %v221
    %v248 = vadd.f32 %v211, %v225
    %v249 = vadd.f32 %v212, %v229
    %v250 = vld [vmem:[%s2] sm:$0xff]
    %v251 = vld [vmem:[%s2 + $0x8] sm:$0xff]
    %v252 = vld [vmem:[%s2 + $0x10] sm:$0xff]
    %v253 = vld [vmem:[%s2 + $0x18] sm:$0xff]
    %v254 = vld [vmem:[%s2 + $0x20] sm:$0xff]
    %v255 = vld [vmem:[%s2 + $0x28] sm:$0xff]
    %v256 = vld [vmem:[%s2 + $0x30] sm:$0xff]
    %v257 = vld [vmem:[%s2 + $0x38] sm:$0xff]
    %v258 = vld [vmem:[%s2 + $0x40] sm:$0xff]
    %v259 = vld [vmem:[%s2 + $0x48] sm:$0xff]
    %v260 = vld [vmem:[%s2 + $0x50] sm:$0xff]
    %v261 = vld [vmem:[%s2 + $0x58] sm:$0xff]
    %v262 = vld [vmem:[%s2 + $0x60] sm:$0xff]
    %v263 = vld [vmem:[%s2 + $0x68] sm:$0xff]
    %v264 = vld [vmem:[%s2 + $0x70] sm:$0xff]
    %v265 = vld [vmem:[%s2 + $0x78] sm:$0xff]
    %v266 = vld [vmem:[%s2 + $0x80] sm:$0xff]
    %v267 = vld [vmem:[%s2 + $0x88] sm:$0xff]
    %v268 = vld [vmem:[%s2 + $0x90] sm:$0xff]
    %v269 = vld [vmem:[%s2 + $0x98] sm:$0xff]
    %v270 = vld [vmem:[%s2 + $0xa0] sm:$0xff]
    %v271 = vld [vmem:[%s2 + $0xa8] sm:$0xff]
    %v272 = vld [vmem:[%s2 + $0xb0] sm:$0xff]
    %v273 = vld [vmem:[%s2 + $0xb8] sm:$0xff]
    %v274 = vld [vmem:[%s2 + $0xc0] sm:$0xff]
    %v275 = vld [vmem:[%s2 + $0xc8] sm:$0xff]
    %v276 = vld [vmem:[%s2 + $0xd0] sm:$0xff]
    %v277 = vld [vmem:[%s2 + $0xd8] sm:$0xff]
    %v278 = vld [vmem:[%s2 + $0xe0] sm:$0xff]
    %v279 = vld [vmem:[%s2 + $0xe8] sm:$0xff]
    %v280 = vld [vmem:[%s2 + $0xf0] sm:$0xff]
    %v281 = vld [vmem:[%s2 + $0xf8] sm:$0xff]
    %v314 = vunpack.c.l.b16 %v250
    %v315 = vunpack.c.h.b16 %v250
    %v316 = vunpack.c.l.b16 %v251
    %v317 = vunpack.c.h.b16 %v251
    %v318 = vunpack.c.l.b16 %v252
    %v319 = vunpack.c.h.b16 %v252
    %v320 = vunpack.c.l.b16 %v253
    %v321 = vunpack.c.h.b16 %v253
    %v322 = vunpack.c.l.b16 %v254
    %v323 = vunpack.c.h.b16 %v254
    %v324 = vunpack.c.l.b16 %v255
    %v325 = vunpack.c.h.b16 %v255
    %v326 = vunpack.c.l.b16 %v256
    %v327 = vunpack.c.h.b16 %v256
    %v328 = vunpack.c.l.b16 %v257
    %v329 = vunpack.c.h.b16 %v257
    %v330 = vunpack.c.l.b16 %v258
    %v331 = vunpack.c.h.b16 %v258
    %v332 = vunpack.c.l.b16 %v259
    %v333 = vunpack.c.h.b16 %v259
    %v334 = vunpack.c.l.b16 %v260
    %v335 = vunpack.c.h.b16 %v260
    %v336 = vunpack.c.l.b16 %v261
    %v337 = vunpack.c.h.b16 %v261
    %v338 = vunpack.c.l.b16 %v262
    %v339 = vunpack.c.h.b16 %v262
    %v340 = vunpack.c.l.b16 %v263
    %v341 = vunpack.c.h.b16 %v263
    %v342 = vunpack.c.l.b16 %v264
    %v343 = vunpack.c.h.b16 %v264
    %v344 = vunpack.c.l.b16 %v265
    %v345 = vunpack.c.h.b16 %v265
    %v346 = vunpack.c.l.b16 %v266
    %v347 = vunpack.c.h.b16 %v266
    %v348 = vunpack.c.l.b16 %v267
    %v349 = vunpack.c.h.b16 %v267
    %v350 = vunpack.c.l.b16 %v268
    %v351 = vunpack.c.h.b16 %v268
    %v352 = vunpack.c.l.b16 %v269
    %v353 = vunpack.c.h.b16 %v269
    %v354 = vunpack.c.l.b16 %v270
    %v355 = vunpack.c.h.b16 %v270
    %v356 = vunpack.c.l.b16 %v271
    %v357 = vunpack.c.h.b16 %v271
    %v358 = vunpack.c.l.b16 %v272
    %v359 = vunpack.c.h.b16 %v272
    %v360 = vunpack.c.l.b16 %v273
    %v361 = vunpack.c.h.b16 %v273
    %v362 = vunpack.c.l.b16 %v274
    %v363 = vunpack.c.h.b16 %v274
    %v364 = vunpack.c.l.b16 %v275
    %v365 = vunpack.c.h.b16 %v275
    %v366 = vunpack.c.l.b16 %v276
    %v367 = vunpack.c.h.b16 %v276
    %v368 = vunpack.c.l.b16 %v277
    %v369 = vunpack.c.h.b16 %v277
    %v370 = vunpack.c.l.b16 %v278
    %v371 = vunpack.c.h.b16 %v278
    %v372 = vunpack.c.l.b16 %v279
    %v373 = vunpack.c.h.b16 %v279
    %v374 = vunpack.c.l.b16 %v280
    %v375 = vunpack.c.h.b16 %v280
    %v376 = vunpack.c.l.b16 %v281
    %v377 = vunpack.c.h.b16 %v281
    %v378 = vpack.c.b16 %v318, %v314
    %v379 = vpack.c.b16 %v319, %v315
    %v380 = vpack.c.b16 %v320, %v316
    %v381 = vpack.c.b16 %v321, %v317
    %v382 = vpack.c.b16 %v326, %v322
    %v383 = vpack.c.b16 %v327, %v323
    %v384 = vpack.c.b16 %v328, %v324
    %v385 = vpack.c.b16 %v329, %v325
    %v386 = vpack.c.b16 %v334, %v330
    %v387 = vpack.c.b16 %v335, %v331
    %v388 = vpack.c.b16 %v336, %v332
    %v389 = vpack.c.b16 %v337, %v333
    %v390 = vpack.c.b16 %v342, %v338
    %v391 = vpack.c.b16 %v343, %v339
    %v392 = vpack.c.b16 %v344, %v340
    %v393 = vpack.c.b16 %v345, %v341
    %v394 = vpack.c.b16 %v350, %v346
    %v395 = vpack.c.b16 %v351, %v347
    %v396 = vpack.c.b16 %v352, %v348
    %v397 = vpack.c.b16 %v353, %v349
    %v398 = vpack.c.b16 %v358, %v354
    %v399 = vpack.c.b16 %v359, %v355
    %v400 = vpack.c.b16 %v360, %v356
    %v401 = vpack.c.b16 %v361, %v357
    %v402 = vpack.c.b16 %v366, %v362
    %v403 = vpack.c.b16 %v367, %v363
    %v404 = vpack.c.b16 %v368, %v364
    %v405 = vpack.c.b16 %v369, %v365
    %v406 = vpack.c.b16 %v374, %v370
    %v407 = vpack.c.b16 %v375, %v371
    %v408 = vpack.c.b16 %v376, %v372
    %v409 = vpack.c.b16 %v377, %v373
    %442 = vmatprep.subr.bf16.mxu0 %v379
    %443 = vmatpush1.bf16.msra.mxu0 %v378
    %444 = vmatprep.subr.bf16.mxu0 %v383
    %445 = vmatpush1.bf16.msra.mxu0 %v382
    %446 = vmatprep.subr.bf16.mxu0 %v387
    %447 = vmatpush1.bf16.msra.mxu0 %v386
    %448 = vmatprep.subr.bf16.mxu0 %v391
    %449 = vmatpush1.bf16.msra.mxu0 %v390
    %450 = vmatprep.subr.bf16.mxu0 %v395
    %451 = vmatpush1.bf16.msra.mxu0 %v394
    %452 = vmatprep.subr.bf16.mxu0 %v399
    %453 = vmatpush1.bf16.msra.mxu0 %v398
    %454 = vmatprep.subr.bf16.mxu0 %v403
    %455 = vmatpush1.bf16.msra.mxu0 %v402
    %456 = vmatprep.subr.bf16.mxu0 %v407
    %457 = vmatpush1.bf16.msra.mxu0 %v406
    %458 = vmatprep.subr.bf16.mxu0 0
    %459 = vmatpush1.bf16.msra.mxu0 0
    %460 = vmatprep.subr.bf16.mxu0 0
    %461 = vmatpush1.bf16.msra.mxu0 0
    %462 = vmatprep.subr.bf16.mxu0 0
    %463 = vmatpush1.bf16.msra.mxu0 0
    %464 = vmatprep.subr.bf16.mxu0 0
    %465 = vmatpush1.bf16.msra.mxu0 0
    %466 = vmatprep.subr.bf16.mxu0 0
    %467 = vmatpush1.bf16.msra.mxu0 0
    %468 = vmatprep.subr.bf16.mxu0 0
    %469 = vmatpush1.bf16.msra.mxu0 0
    %470 = vmatprep.subr.bf16.mxu0 0
    %471 = vmatpush1.bf16.msra.mxu0 0
    %472 = vmatprep.subr.bf16.mxu0 0
    %473 = vmatpush1.bf16.msra.mxu0 0
    %474 = vmatprep.mubr.bf16.mxu0 0
    %475 = vmatmul.mubr.bf16.gmra.mrb[0].mxu0 0
    %v476 = vpop.f32.mrb[0].mxu0
    %v477 = vadd.f32 0.0, %v476
    %v478 = vpop.f32.mrb[0].mxu0
    %v479 = vadd.f32 0.0, %v478
    %v480 = vpop.f32.mrb[0].mxu0
    %v481 = vpop.f32.mrb[0].mxu0
    %482 = vdwg.mxu0
    %483 = vmatprep.subr.bf16.mxu0 %v381
    %484 = vmatpush1.bf16.msra.mxu0 %v380
    %485 = vmatprep.subr.bf16.mxu0 %v385
    %486 = vmatpush1.bf16.msra.mxu0 %v384
    %487 = vmatprep.subr.bf16.mxu0 %v389
    %488 = vmatpush1.bf16.msra.mxu0 %v388
    %489 = vmatprep.subr.bf16.mxu0 %v393
    %490 = vmatpush1.bf16.msra.mxu0 %v392
    %491 = vmatprep.subr.bf16.mxu0 %v397
    %492 = vmatpush1.bf16.msra.mxu0 %v396
    %493 = vmatprep.subr.bf16.mxu0 %v401
    %494 = vmatpush1.bf16.msra.mxu0 %v400
    %495 = vmatprep.subr.bf16.mxu0 %v405
    %496 = vmatpush1.bf16.msra.mxu0 %v404
    %497 = vmatprep.subr.bf16.mxu0 %v409
    %498 = vmatpush1.bf16.msra.mxu0 %v408
    %499 = vmatprep.subr.bf16.mxu0 0
    %500 = vmatpush1.bf16.msra.mxu0 0
    %501 = vmatprep.subr.bf16.mxu0 0
    %502 = vmatpush1.bf16.msra.mxu0 0
    %503 = vmatprep.subr.bf16.mxu0 0
    %504 = vmatpush1.bf16.msra.mxu0 0
    %505 = vmatprep.subr.bf16.mxu0 0
    %506 = vmatpush1.bf16.msra.mxu0 0
    %507 = vmatprep.subr.bf16.mxu0 0
    %508 = vmatpush1.bf16.msra.mxu0 0
    %509 = vmatprep.subr.bf16.mxu0 0
    %510 = vmatpush1.bf16.msra.mxu0 0
    %511 = vmatprep.subr.bf16.mxu0 0
    %512 = vmatpush1.bf16.msra.mxu0 0
    %513 = vmatprep.subr.bf16.mxu0 0
    %514 = vmatpush1.bf16.msra.mxu0 0
    %515 = vmatprep.mubr.bf16.mxu0 0
    %516 = vmatmul.mubr.bf16.gmra.mrb[0].mxu0 0
    %v517 = vpop.f32.mrb[0].mxu0
    %v518 = vadd.f32 0.0, %v517
    %v519 = vpop.f32.mrb[0].mxu0
    %v520 = vadd.f32 0.0, %v519
    %v521 = vpop.f32.mrb[0].mxu0
    %v522 = vpop.f32.mrb[0].mxu0
    %523 = vdwg.mxu0
    %v528 = vrot.slane %v477, 1
    %v529 = vrot.slane %v479, 1
    %v530 = vrot.slane %v518, 1
    %v531 = vrot.slane %v520, 1
    %v532 = vrot.slane %v477, 2
    %v533 = vrot.slane %v479, 2
    %v534 = vrot.slane %v518, 2
    %v535 = vrot.slane %v520, 2
    %v536 = vrot.slane %v477, 3
    %v537 = vrot.slane %v479, 3
    %v538 = vrot.slane %v518, 3
    %v539 = vrot.slane %v520, 3
    %v556 = vadd.f32 %v234, %v477
    %v557 = vadd.f32 %v235, %v479
    %v558 = vadd.f32 %v236, %v518
    %v559 = vadd.f32 %v237, %v520
    %v560 = vadd.f32 %v238, %v528
    %v561 = vadd.f32 %v239, %v529
    %v562 = vadd.f32 %v240, %v530
    %v563 = vadd.f32 %v241, %v531
    %v564 = vadd.f32 %v242, %v532
    %v565 = vadd.f32 %v243, %v533
    %v566 = vadd.f32 %v244, %v534
    %v567 = vadd.f32 %v245, %v535
    %v568 = vadd.f32 %v246, %v536
    %v569 = vadd.f32 %v247, %v537
    %v570 = vadd.f32 %v248, %v538
    %v571 = vadd.f32 %v249, %v539
    %v572 = vxor.u32 %v556, 2147483648
    %v573 = vxor.u32 %v557, 2147483648
    %v574 = vxor.u32 %v558, 2147483648
    %v575 = vxor.u32 %v560, 2147483648
    %v576 = vxor.u32 %v561, 2147483648
    %v577 = vxor.u32 %v562, 2147483648
    %v578 = vxor.u32 %v564, 2147483648
    %v579 = vxor.u32 %v565, 2147483648
    %v580 = vxor.u32 %v566, 2147483648
    %v581 = vxor.u32 %v568, 2147483648
    %v582 = vxor.u32 %v569, 2147483648
    %v583 = vxor.u32 %v570, 2147483648
    %v584 = vmul.f32 %v572, 1.442695
    %v585 = vpow.pop %v584
    %v586 = vmul.f32 %v573, 1.442695
    %v587 = vpow.pop %v586
    %v588 = vmul.f32 %v574, 1.442695
    %v589 = vpow.pop %v588
    %v590 = vmul.f32 %v575, 1.442695
    %v591 = vpow.pop %v590
    %v592 = vmul.f32 %v576, 1.442695
    %v593 = vpow.pop %v592
    %v594 = vmul.f32 %v577, 1.442695
    %v595 = vpow.pop %v594
    %v596 = vmul.f32 %v578, 1.442695
    %v597 = vpow.pop %v596
    %v598 = vmul.f32 %v579, 1.442695
    %v599 = vpow.pop %v598
    %v600 = vmul.f32 %v580, 1.442695
    %v601 = vpow.pop %v600
    %v602 = vmul.f32 %v581, 1.442695
    %v603 = vpow.pop %v602
    %v604 = vmul.f32 %v582, 1.442695
    %v605 = vpow.pop %v604
    %v606 = vmul.f32 %v583, 1.442695
    %v607 = vpow.pop %v606
    %v608 = vadd.f32 %v585, 1.0
    %v609 = vadd.f32 %v587, 1.0
    %v610 = vadd.f32 %v589, 1.0
    %v611 = vadd.f32 %v591, 1.0
    %v612 = vadd.f32 %v593, 1.0
    %v613 = vadd.f32 %v595, 1.0
    %v614 = vadd.f32 %v597, 1.0
    %v615 = vadd.f32 %v599, 1.0
    %v616 = vadd.f32 %v601, 1.0
    %v617 = vadd.f32 %v603, 1.0
    %v618 = vadd.f32 %v605, 1.0
    %v619 = vadd.f32 %v607, 1.0
    %v620 = vrcp.pop %v608
    %v621 = vmul.f32 1.0, %v620
    %v622 = vrcp.pop %v609
    %v623 = vmul.f32 1.0, %v622
    %v624 = vrcp.pop %v610
    %v625 = vmul.f32 1.0, %v624
    %v626 = vrcp.pop %v611
    %v627 = vmul.f32 1.0, %v626
    %v628 = vrcp.pop %v612
    %v629 = vmul.f32 1.0, %v628
    %v630 = vrcp.pop %v613
    %v631 = vmul.f32 1.0, %v630
    %v632 = vrcp.pop %v614
    %v633 = vmul.f32 1.0, %v632
    %v634 = vrcp.pop %v615
    %v635 = vmul.f32 1.0, %v634
    %v636 = vrcp.pop %v616
    %v637 = vmul.f32 1.0, %v636
    %v638 = vrcp.pop %v617
    %v639 = vmul.f32 1.0, %v638
    %v640 = vrcp.pop %v618
    %v641 = vmul.f32 1.0, %v640
    %v642 = vrcp.pop %v619
    %v643 = vmul.f32 1.0, %v642
    %v644 = vtanh.pop %v559
    %v645 = vtanh.pop %v563
    %v646 = vtanh.pop %v567
    %v647 = vtanh.pop %v571
    %v648 = vmul.f32 %v623, 0.0
    %v649 = vmul.f32 %v629, 0.0
    %v650 = vmul.f32 %v635, 0.0
    %v651 = vmul.f32 %v641, 0.0
    %v652 = vmul.f32 %v621, %v644
    %v653 = vmul.f32 %v627, %v645
    %v654 = vmul.f32 %v633, %v646
    %v655 = vmul.f32 %v639, %v647
    %v656 = vadd.f32 %v648, %v652
    %v657 = vadd.f32 %v649, %v653
    %v658 = vadd.f32 %v650, %v654
    %v659 = vadd.f32 %v651, %v655
    %v660 = vtanh.pop %v656
    %v661 = vtanh.pop %v657
    %v662 = vtanh.pop %v658
    %v663 = vtanh.pop %v659
    %v664 = vmul.f32 %v625, %v660
    %v665 = vmul.f32 %v631, %v661
    %v666 = vmul.f32 %v637, %v662
    %v667 = vmul.f32 %v643, %v663
    %668 = vst [vmem:[#allocation2] sm:$0x1] %v664
    %669 = vst [vmem:[#allocation2 + $0x8] sm:$0x1] %v665
    %670 = vst [vmem:[#allocation2 + $0x10] sm:$0x1] %v666
    %671 = vst [vmem:[#allocation2 + $0x18] sm:$0x1] %v667
    %v672 = vpack.c.bf16 %v664, %v664
    %v673 = vpack.c.bf16 %v665, %v665
    %v674 = vpack.c.bf16 %v666, %v666
    %v675 = vpack.c.bf16 %v667, %v667
    %v680 = vunpack.c.l.b16 %v672
    %v681 = vunpack.c.l.b16 %v673
    %v682 = vunpack.c.l.b16 %v674
    %v683 = vunpack.c.l.b16 %v675
    %v684 = vrot.slane %v681, 7
    %vm685 = vcmask 1041409
    %v686 = vsel %vm685, %v684, %v680
    %v687 = vrot.slane %v682, 6
    %vm688 = vcmask 1042434
    %v689 = vsel %vm688, %v687, %v686
    %v690 = vrot.slane %v683, 5
    %vm691 = vcmask 1043459
    %v692 = vsel %vm691, %v690, %v689
    %v693 = vpack.c.b16 %v692, %v692
    %695 = vmatprep.subr.bf16.mxu0 %v379
    %696 = vmatpush1.bf16.msra.mxu0 %v378
    %697 = vmatprep.subr.bf16.mxu0 %v383
    %698 = vmatpush1.bf16.msra.mxu0 %v382
    %699 = vmatprep.subr.bf16.mxu0 %v387
    %700 = vmatpush1.bf16.msra.mxu0 %v386
    %701 = vmatprep.subr.bf16.mxu0 %v391
    %702 = vmatpush1.bf16.msra.mxu0 %v390
    %703 = vmatprep.subr.bf16.mxu0 %v395
    %704 = vmatpush1.bf16.msra.mxu0 %v394
    %705 = vmatprep.subr.bf16.mxu0 %v399
    %706 = vmatpush1.bf16.msra.mxu0 %v398
    %707 = vmatprep.subr.bf16.mxu0 %v403
    %708 = vmatpush1.bf16.msra.mxu0 %v402
    %709 = vmatprep.subr.bf16.mxu0 %v407
    %710 = vmatpush1.bf16.msra.mxu0 %v406
    %711 = vmatprep.subr.bf16.mxu0 0
    %712 = vmatpush1.bf16.msra.mxu0 0
    %713 = vmatprep.subr.bf16.mxu0 0
    %714 = vmatpush1.bf16.msra.mxu0 0
    %715 = vmatprep.subr.bf16.mxu0 0
    %716 = vmatpush1.bf16.msra.mxu0 0
    %717 = vmatprep.subr.bf16.mxu0 0
    %718 = vmatpush1.bf16.msra.mxu0 0
    %719 = vmatprep.subr.bf16.mxu0 0
    %720 = vmatpush1.bf16.msra.mxu0 0
    %721 = vmatprep.subr.bf16.mxu0 0
    %722 = vmatpush1.bf16.msra.mxu0 0
    %723 = vmatprep.subr.bf16.mxu0 0
    %724 = vmatpush1.bf16.msra.mxu0 0
    %725 = vmatprep.subr.bf16.mxu0 0
    %726 = vmatpush1.bf16.msra.mxu0 0
    %727 = vmatprep.mubr.bf16.mxu0 0
    %728 = vmatmul.mubr.bf16.gmra.mrb[0].mxu0 %v693
    %v729 = vpop.f32.mrb[0].mxu0
    %v730 = vadd.f32 0.0, %v729
    %v731 = vpop.f32.mrb[0].mxu0
    %v732 = vadd.f32 0.0, %v731
    %v733 = vpop.f32.mrb[0].mxu0
    %v734 = vpop.f32.mrb[0].mxu0
    %735 = vdwg.mxu0
    %736 = vmatprep.subr.bf16.mxu0 %v381
    %737 = vmatpush1.bf16.msra.mxu0 %v380
    %738 = vmatprep.subr.bf16.mxu0 %v385
    %739 = vmatpush1.bf16.msra.mxu0 %v384
    %740 = vmatprep.subr.bf16.mxu0 %v389
    %741 = vmatpush1.bf16.msra.mxu0 %v388
    %742 = vmatprep.subr.bf16.mxu0 %v393
    %743 = vmatpush1.bf16.msra.mxu0 %v392
    %744 = vmatprep.subr.bf16.mxu0 %v397
    %745 = vmatpush1.bf16.msra.mxu0 %v396
    %746 = vmatprep.subr.bf16.mxu0 %v401
    %747 = vmatpush1.bf16.msra.mxu0 %v400
    %748 = vmatprep.subr.bf16.mxu0 %v405
    %749 = vmatpush1.bf16.msra.mxu0 %v404
    %750 = vmatprep.subr.bf16.mxu0 %v409
    %751 = vmatpush1.bf16.msra.mxu0 %v408
    %752 = vmatprep.subr.bf16.mxu0 0
    %753 = vmatpush1.bf16.msra.mxu0 0
    %754 = vmatprep.subr.bf16.mxu0 0
    %755 = vmatpush1.bf16.msra.mxu0 0
    %756 = vmatprep.subr.bf16.mxu0 0
    %757 = vmatpush1.bf16.msra.mxu0 0
    %758 = vmatprep.subr.bf16.mxu0 0
    %759 = vmatpush1.bf16.msra.mxu0 0
    %760 = vmatprep.subr.bf16.mxu0 0
    %761 = vmatpush1.bf16.msra.mxu0 0
    %762 = vmatprep.subr.bf16.mxu0 0
    %763 = vmatpush1.bf16.msra.mxu0 0
    %764 = vmatprep.subr.bf16.mxu0 0
    %765 = vmatpush1.bf16.msra.mxu0 0
    %766 = vmatprep.subr.bf16.mxu0 0
    %767 = vmatpush1.bf16.msra.mxu0 0
    %768 = vmatprep.mubr.bf16.mxu0 0
    %769 = vmatmul.mubr.bf16.gmra.mrb[0].mxu0 %v693
    %v770 = vpop.f32.mrb[0].mxu0
    %v771 = vadd.f32 0.0, %v770
    %v772 = vpop.f32.mrb[0].mxu0
    %v773 = vadd.f32 0.0, %v772
    %v774 = vpop.f32.mrb[0].mxu0
    %v775 = vpop.f32.mrb[0].mxu0
    %776 = vdwg.mxu0
    %v781 = vrot.slane %v730, 7
    %v782 = vrot.slane %v732, 7
    %v783 = vrot.slane %v771, 7
    %v784 = vrot.slane %v773, 7
    %v785 = vrot.slane %v730, 1
    %v786 = vrot.slane %v732, 1
    %v787 = vrot.slane %v771, 1
    %v788 = vrot.slane %v773, 1
    %v789 = vrot.slane %v730, 2
    %v790 = vrot.slane %v732, 2
    %v791 = vrot.slane %v771, 2
    %v792 = vrot.slane %v773, 2
    %v809 = vadd.f32 %v234, %v781
    %v810 = vadd.f32 %v235, %v782
    %v811 = vadd.f32 %v236, %v783
    %v812 = vadd.f32 %v237, %v784
    %v813 = vadd.f32 %v238, %v730
    %v814 = vadd.f32 %v239, %v732
    %v815 = vadd.f32 %v240, %v771
    %v816 = vadd.f32 %v241, %v773
    %v817 = vadd.f32 %v242, %v785
    %v818 = vadd.f32 %v243, %v786
    %v819 = vadd.f32 %v244, %v787
    %v820 = vadd.f32 %v245, %v788
    %v821 = vadd.f32 %v246, %v789
    %v822 = vadd.f32 %v247, %v790
    %v823 = vadd.f32 %v248, %v791
    %v824 = vadd.f32 %v249, %v792
    %v825 = vxor.u32 %v809, 2147483648
    %v826 = vxor.u32 %v810, 2147483648
    %v827 = vxor.u32 %v811, 2147483648
    %v828 = vxor.u32 %v813, 2147483648
    %v829 = vxor.u32 %v814, 2147483648
    %v830 = vxor.u32 %v815, 2147483648
    %v831 = vxor.u32 %v817, 2147483648
    %v832 = vxor.u32 %v818, 2147483648
    %v833 = vxor.u32 %v819, 2147483648
    %v834 = vxor.u32 %v821, 2147483648
    %v835 = vxor.u32 %v822, 2147483648
    %v836 = vxor.u32 %v823, 2147483648
    %v837 = vmul.f32 %v825, 1.442695
    %v838 = vpow.pop %v837
    %v839 = vmul.f32 %v826, 1.442695
    %v840 = vpow.pop %v839
    %v841 = vmul.f32 %v827, 1.442695
    %v842 = vpow.pop %v841
    %v843 = vmul.f32 %v828, 1.442695
    %v844 = vpow.pop %v843
    %v845 = vmul.f32 %v829, 1.442695
    %v846 = vpow.pop %v845
    %v847 = vmul.f32 %v830, 1.442695
    %v848 = vpow.pop %v847
    %v849 = vmul.f32 %v831, 1.442695
    %v850 = vpow.pop %v849
    %v851 = vmul.f32 %v832, 1.442695
    %v852 = vpow.pop %v851
    %v853 = vmul.f32 %v833, 1.442695
    %v854 = vpow.pop %v853
    %v855 = vmul.f32 %v834, 1.442695
    %v856 = vpow.pop %v855
    %v857 = vmul.f32 %v835, 1.442695
    %v858 = vpow.pop %v857
    %v859 = vmul.f32 %v836, 1.442695
    %v860 = vpow.pop %v859
    %v861 = vadd.f32 %v838, 1.0
    %v862 = vadd.f32 %v840, 1.0
    %v863 = vadd.f32 %v842, 1.0
    %v864 = vadd.f32 %v844, 1.0
    %v865 = vadd.f32 %v846, 1.0
    %v866 = vadd.f32 %v848, 1.0
    %v867 = vadd.f32 %v850, 1.0
    %v868 = vadd.f32 %v852, 1.0
    %v869 = vadd.f32 %v854, 1.0
    %v870 = vadd.f32 %v856, 1.0
    %v871 = vadd.f32 %v858, 1.0
    %v872 = vadd.f32 %v860, 1.0
    %v873 = vrcp.pop %v861
    %v874 = vmul.f32 1.0, %v873
    %v875 = vrcp.pop %v862
    %v876 = vmul.f32 1.0, %v875
    %v877 = vrcp.pop %v863
    %v878 = vmul.f32 1.0, %v877
    %v879 = vrcp.pop %v864
    %v880 = vmul.f32 1.0, %v879
    %v881 = vrcp.pop %v865
    %v882 = vmul.f32 1.0, %v881
    %v883 = vrcp.pop %v866
    %v884 = vmul.f32 1.0, %v883
    %v885 = vrcp.pop %v867
    %v886 = vmul.f32 1.0, %v885
    %v887 = vrcp.pop %v868
    %v888 = vmul.f32 1.0, %v887
    %v889 = vrcp.pop %v869
    %v890 = vmul.f32 1.0, %v889
    %v891 = vrcp.pop %v870
    %v892 = vmul.f32 1.0, %v891
    %v893 = vrcp.pop %v871
    %v894 = vmul.f32 1.0, %v893
    %v895 = vrcp.pop %v872
    %v896 = vmul.f32 1.0, %v895
    %v897 = vtanh.pop %v812
    %v898 = vtanh.pop %v816
    %v899 = vtanh.pop %v820
    %v900 = vtanh.pop %v824
    %v905 = vrot.slane %v656, 7
    %v906 = vrot.slane %v657, 7
    %v907 = vrot.slane %v658, 7
    %v908 = vrot.slane %v659, 7
    %v913 = vmul.f32 %v876, %v905
    %v914 = vmul.f32 %v882, %v906
    %v915 = vmul.f32 %v888, %v907
    %v916 = vmul.f32 %v894, %v908
    %v917 = vmul.f32 %v874, %v897
    %v918 = vmul.f32 %v880, %v898
    %v919 = vmul.f32 %v886, %v899
    %v920 = vmul.f32 %v892, %v900
    %v921 = vadd.f32 %v913, %v917
    %v922 = vadd.f32 %v914, %v918
    %v923 = vadd.f32 %v915, %v919
    %v924 = vadd.f32 %v916, %v920
    %v925 = vtanh.pop %v921
    %v926 = vtanh.pop %v922
    %v927 = vtanh.pop %v923
    %v928 = vtanh.pop %v924
    %v929 = vmul.f32 %v878, %v925
    %v930 = vmul.f32 %v884, %v926
    %v931 = vmul.f32 %v890, %v927
    %v932 = vmul.f32 %v896, %v928
    %933 = vst [vmem:[#allocation2] sm:$0x2] %v929
    %934 = vst [vmem:[#allocation2 + $0x8] sm:$0x2] %v930
    %935 = vst [vmem:[#allocation2 + $0x10] sm:$0x2] %v931
    %936 = vst [vmem:[#allocation2 + $0x18] sm:$0x2] %v932
    %v937 = vpack.c.bf16 %v929, %v929
    %v938 = vpack.c.bf16 %v930, %v930
    %v939 = vpack.c.bf16 %v931, %v931
    %v940 = vpack.c.bf16 %v932, %v932
    %v945 = vunpack.c.l.b16 %v937
    %v946 = vunpack.c.l.b16 %v938
    %v947 = vunpack.c.l.b16 %v939
    %v948 = vunpack.c.l.b16 %v940
    %v949 = vrot.slane %v945, 1
    %v950 = vsel %vm685, %v946, %v949
    %v951 = vrot.slane %v947, 7
    %v952 = vsel %vm688, %v951, %v950
    %v953 = vrot.slane %v948, 6
    %v954 = vsel %vm691, %v953, %v952
    %v955 = vpack.c.b16 %v954, %v954
    %957 = vmatprep.subr.bf16.mxu0 %v379
    %958 = vmatpush1.bf16.msra.mxu0 %v378
    %959 = vmatprep.subr.bf16.mxu0 %v383
    %960 = vmatpush1.bf16.msra.mxu0 %v382
    %961 = vmatprep.subr.bf16.mxu0 %v387
    %962 = vmatpush1.bf16.msra.mxu0 %v386
    %963 = vmatprep.subr.bf16.mxu0 %v391
    %964 = vmatpush1.bf16.msra.mxu0 %v390
    %965 = vmatprep.subr.bf16.mxu0 %v395
    %966 = vmatpush1.bf16.msra.mxu0 %v394
    %967 = vmatprep.subr.bf16.mxu0 %v399
    %968 = vmatpush1.bf16.msra.mxu0 %v398
    %969 = vmatprep.subr.bf16.mxu0 %v403
    %970 = vmatpush1.bf16.msra.mxu0 %v402
    %971 = vmatprep.subr.bf16.mxu0 %v407
    %972 = vmatpush1.bf16.msra.mxu0 %v406
    %973 = vmatprep.subr.bf16.mxu0 0
    %974 = vmatpush1.bf16.msra.mxu0 0
    %975 = vmatprep.subr.bf16.mxu0 0
    %976 = vmatpush1.bf16.msra.mxu0 0
    %977 = vmatprep.subr.bf16.mxu0 0
    %978 = vmatpush1.bf16.msra.mxu0 0
    %979 = vmatprep.subr.bf16.mxu0 0
    %980 = vmatpush1.bf16.msra.mxu0 0
    %981 = vmatprep.subr.bf16.mxu0 0
    %982 = vmatpush1.bf16.msra.mxu0 0
    %983 = vmatprep.subr.bf16.mxu0 0
    %984 = vmatpush1.bf16.msra.mxu0 0
    %985 = vmatprep.subr.bf16.mxu0 0
    %986 = vmatpush1.bf16.msra.mxu0 0
    %987 = vmatprep.subr.bf16.mxu0 0
    %988 = vmatpush1.bf16.msra.mxu0 0
    %989 = vmatprep.mubr.bf16.mxu0 0
    %990 = vmatmul.mubr.bf16.gmra.mrb[0].mxu0 %v955
    %v991 = vpop.f32.mrb[0].mxu0
    %v992 = vadd.f32 0.0, %v991
    %v993 = vpop.f32.mrb[0].mxu0
    %v994 = vadd.f32 0.0, %v993
    %v995 = vpop.f32.mrb[0].mxu0
    %v996 = vpop.f32.mrb[0].mxu0
    %997 = vdwg.mxu0
    %998 = vmatprep.subr.bf16.mxu0 %v381
    %999 = vmatpush1.bf16.msra.mxu0 %v380
    %1000 = vmatprep.subr.bf16.mxu0 %v385
    %1001 = vmatpush1.bf16.msra.mxu0 %v384
    %1002 = vmatprep.subr.bf16.mxu0 %v389
    %1003 = vmatpush1.bf16.msra.mxu0 %v388
    %1004 = vmatprep.subr.bf16.mxu0 %v393
    %1005 = vmatpush1.bf16.msra.mxu0 %v392
    %1006 = vmatprep.subr.bf16.mxu0 %v397
    %1007 = vmatpush1.bf16.msra.mxu0 %v396
    %1008 = vmatprep.subr.bf16.mxu0 %v401
    %1009 = vmatpush1.bf16.msra.mxu0 %v400
    %1010 = vmatprep.subr.bf16.mxu0 %v405
    %1011 = vmatpush1.bf16.msra.mxu0 %v404
    %1012 = vmatprep.subr.bf16.mxu0 %v409
    %1013 = vmatpush1.bf16.msra.mxu0 %v408
    %1014 = vmatprep.subr.bf16.mxu0 0
    %1015 = vmatpush1.bf16.msra.mxu0 0
    %1016 = vmatprep.subr.bf16.mxu0 0
    %1017 = vmatpush1.bf16.msra.mxu0 0
    %1018 = vmatprep.subr.bf16.mxu0 0
    %1019 = vmatpush1.bf16.msra.mxu0 0
    %1020 = vmatprep.subr.bf16.mxu0 0
    %1021 = vmatpush1.bf16.msra.mxu0 0
    %1022 = vmatprep.subr.bf16.mxu0 0
    %1023 = vmatpush1.bf16.msra.mxu0 0
    %1024 = vmatprep.subr.bf16.mxu0 0
    %1025 = vmatpush1.bf16.msra.mxu0 0
    %1026 = vmatprep.subr.bf16.mxu0 0
    %1027 = vmatpush1.bf16.msra.mxu0 0
    %1028 = vmatprep.subr.bf16.mxu0 0
    %1029 = vmatpush1.bf16.msra.mxu0 0
    %1030 = vmatprep.mubr.bf16.mxu0 0
    %1031 = vmatmul.mubr.bf16.gmra.mrb[0].mxu0 %v955
    %v1032 = vpop.f32.mrb[0].mxu0
    %v1033 = vadd.f32 0.0, %v1032
    %v1034 = vpop.f32.mrb[0].mxu0
    %v1035 = vadd.f32 0.0, %v1034
    %v1036 = vpop.f32.mrb[0].mxu0
    %v1037 = vpop.f32.mrb[0].mxu0
    %1038 = vdwg.mxu0
    %v1043 = vrot.slane %v992, 6
    %v1044 = vrot.slane %v994, 6
    %v1045 = vrot.slane %v1033, 6
    %v1046 = vrot.slane %v1035, 6
    %v1047 = vrot.slane %v992, 7
    %v1048 = vrot.slane %v994, 7
    %v1049 = vrot.slane %v1033, 7
    %v1050 = vrot.slane %v1035, 7
    %v1051 = vrot.slane %v992, 1
    %v1052 = vrot.slane %v994, 1
    %v1053 = vrot.slane %v1033, 1
    %v1054 = vrot.slane %v1035, 1
    %v1071 = vadd.f32 %v234, %v1043
    %v1072 = vadd.f32 %v235, %v1044
    %v1073 = vadd.f32 %v236, %v1045
    %v1074 = vadd.f32 %v237, %v1046
    %v1075 = vadd.f32 %v238, %v1047
    %v1076 = vadd.f32 %v239, %v1048
    %v1077 = vadd.f32 %v240, %v1049
    %v1078 = vadd.f32 %v241, %v1050
    %v1079 = vadd.f32 %v242, %v992
    %v1080 = vadd.f32 %v243, %v994
    %v1081 = vadd.f32 %v244, %v1033
    %v1082 = vadd.f32 %v245, %v1035
    %v1083 = vadd.f32 %v246, %v1051
    %v1084 = vadd.f32 %v247, %v1052
    %v1085 = vadd.f32 %v248, %v1053
    %v1086 = vadd.f32 %v249, %v1054
    %v1087 = vxor.u32 %v1071, 2147483648
    %v1088 = vxor.u32 %v1072, 2147483648
    %v1089 = vxor.u32 %v1073, 2147483648
    %v1090 = vxor.u32 %v1075, 2147483648
    %v1091 = vxor.u32 %v1076, 2147483648
    %v1092 = vxor.u32 %v1077, 2147483648
    %v1093 = vxor.u32 %v1079, 2147483648
    %v1094 = vxor.u32 %v1080, 2147483648
    %v1095 = vxor.u32 %v1081, 2147483648
    %v1096 = vxor.u32 %v1083, 2147483648
    %v1097 = vxor.u32 %v1084, 2147483648
    %v1098 = vxor.u32 %v1085, 2147483648
    %v1099 = vmul.f32 %v1087, 1.442695
    %v1100 = vpow.pop %v1099
    %v1101 = vmul.f32 %v1088, 1.442695
    %v1102 = vpow.pop %v1101
    %v1103 = vmul.f32 %v1089, 1.442695
    %v1104 = vpow.pop %v1103
    %v1105 = vmul.f32 %v1090, 1.442695
    %v1106 = vpow.pop %v1105
    %v1107 = vmul.f32 %v1091, 1.442695
    %v1108 = vpow.pop %v1107
    %v1109 = vmul.f32 %v1092, 1.442695
    %v1110 = vpow.pop %v1109
    %v1111 = vmul.f32 %v1093, 1.442695
    %v1112 = vpow.pop %v1111
    %v1113 = vmul.f32 %v1094, 1.442695
    %v1114 = vpow.pop %v1113
    %v1115 = vmul.f32 %v1095, 1.442695
    %v1116 = vpow.pop %v1115
    %v1117 = vmul.f32 %v1096, 1.442695
    %v1118 = vpow.pop %v1117
    %v1119 = vmul.f32 %v1097, 1.442695
    %v1120 = vpow.pop %v1119
    %v1121 = vmul.f32 %v1098, 1.442695
    %v1122 = vpow.pop %v1121
    %v1123 = vadd.f32 %v1100, 1.0
    %v1124 = vadd.f32 %v1102, 1.0
    %v1125 = vadd.f32 %v1104, 1.0
    %v1126 = vadd.f32 %v1106, 1.0
    %v1127 = vadd.f32 %v1108, 1.0
    %v1128 = vadd.f32 %v1110, 1.0
    %v1129 = vadd.f32 %v1112, 1.0
    %v1130 = vadd.f32 %v1114, 1.0
    %v1131 = vadd.f32 %v1116, 1.0
    %v1132 = vadd.f32 %v1118, 1.0
    %v1133 = vadd.f32 %v1120, 1.0
    %v1134 = vadd.f32 %v1122, 1.0
    %v1135 = vrcp.pop %v1123
    %v1136 = vmul.f32 1.0, %v1135
    %v1137 = vrcp.pop %v1124
    %v1138 = vmul.f32 1.0, %v1137
    %v1139 = vrcp.pop %v1125
    %v1140 = vmul.f32 1.0, %v1139
    %v1141 = vrcp.pop %v1126
    %v1142 = vmul.f32 1.0, %v1141
    %v1143 = vrcp.pop %v1127
    %v1144 = vmul.f32 1.0, %v1143
    %v1145 = vrcp.pop %v1128
    %v1146 = vmul.f32 1.0, %v1145
    %v1147 = vrcp.pop %v1129
    %v1148 = vmul.f32 1.0, %v1147
    %v1149 = vrcp.pop %v1130
    %v1150 = vmul.f32 1.0, %v1149
    %v1151 = vrcp.pop %v1131
    %v1152 = vmul.f32 1.0, %v1151
    %v1153 = vrcp.pop %v1132
    %v1154 = vmul.f32 1.0, %v1153
    %v1155 = vrcp.pop %v1133
    %v1156 = vmul.f32 1.0, %v1155
    %v1157 = vrcp.pop %v1134
    %v1158 = vmul.f32 1.0, %v1157
    %v1159 = vtanh.pop %v1074
    %v1160 = vtanh.pop %v1078
    %v1161 = vtanh.pop %v1082
    %v1162 = vtanh.pop %v1086
    %v1167 = vrot.slane %v921, 7
    %v1168 = vrot.slane %v922, 7
    %v1169 = vrot.slane %v923, 7
    %v1170 = vrot.slane %v924, 7
    %v1175 = vmul.f32 %v1138, %v1167
    %v1176 = vmul.f32 %v1144, %v1168
    %v1177 = vmul.f32 %v1150, %v1169
    %v1178 = vmul.f32 %v1156, %v1170
    %v1179 = vmul.f32 %v1136, %v1159
    %v1180 = vmul.f32 %v1142, %v1160
    %v1181 = vmul.f32 %v1148, %v1161
    %v1182 = vmul.f32 %v1154, %v1162
    %v1183 = vadd.f32 %v1175, %v1179
    %v1184 = vadd.f32 %v1176, %v1180
    %v1185 = vadd.f32 %v1177, %v1181
    %v1186 = vadd.f32 %v1178, %v1182
    %v1187 = vtanh.pop %v1183
    %v1188 = vtanh.pop %v1184
    %v1189 = vtanh.pop %v1185
    %v1190 = vtanh.pop %v1186
    %v1191 = vmul.f32 %v1140, %v1187
    %v1192 = vmul.f32 %v1146, %v1188
    %v1193 = vmul.f32 %v1152, %v1189
    %v1194 = vmul.f32 %v1158, %v1190
    %1195 = vst [vmem:[#allocation2] sm:$0x4] %v1191
    %1196 = vst [vmem:[#allocation2 + $0x8] sm:$0x4] %v1192
    %1197 = vst [vmem:[#allocation2 + $0x10] sm:$0x4] %v1193
    %1198 = vst [vmem:[#allocation2 + $0x18] sm:$0x4] %v1194
    %v1199 = vpack.c.bf16 %v1191, %v1191
    %v1200 = vpack.c.bf16 %v1192, %v1192
    %v1201 = vpack.c.bf16 %v1193, %v1193
    %v1202 = vpack.c.bf16 %v1194, %v1194
    %v1207 = vunpack.c.l.b16 %v1199
    %v1208 = vunpack.c.l.b16 %v1200
    %v1209 = vunpack.c.l.b16 %v1201
    %v1210 = vunpack.c.l.b16 %v1202
    %v1211 = vrot.slane %v1207, 2
    %v1212 = vrot.slane %v1208, 1
    %v1213 = vsel %vm685, %v1212, %v1211
    %v1214 = vsel %vm688, %v1209, %v1213
    %v1215 = vrot.slane %v1210, 7
    %v1216 = vsel %vm691, %v1215, %v1214
    %v1217 = vpack.c.b16 %v1216, %v1216
    %1219 = vmatprep.subr.bf16.mxu0 %v379
    %1220 = vmatpush1.bf16.msra.mxu0 %v378
    %1221 = vmatprep.subr.bf16.mxu0 %v383
    %1222 = vmatpush1.bf16.msra.mxu0 %v382
    %1223 = vmatprep.subr.bf16.mxu0 %v387
    %1224 = vmatpush1.bf16.msra.mxu0 %v386
    %1225 = vmatprep.subr.bf16.mxu0 %v391
    %1226 = vmatpush1.bf16.msra.mxu0 %v390
    %1227 = vmatprep.subr.bf16.mxu0 %v395
    %1228 = vmatpush1.bf16.msra.mxu0 %v394
    %1229 = vmatprep.subr.bf16.mxu0 %v399
    %1230 = vmatpush1.bf16.msra.mxu0 %v398
    %1231 = vmatprep.subr.bf16.mxu0 %v403
    %1232 = vmatpush1.bf16.msra.mxu0 %v402
    %1233 = vmatprep.subr.bf16.mxu0 %v407
    %1234 = vmatpush1.bf16.msra.mxu0 %v406
    %1235 = vmatprep.subr.bf16.mxu0 0
    %1236 = vmatpush1.bf16.msra.mxu0 0
    %1237 = vmatprep.subr.bf16.mxu0 0
    %1238 = vmatpush1.bf16.msra.mxu0 0
    %1239 = vmatprep.subr.bf16.mxu0 0
    %1240 = vmatpush1.bf16.msra.mxu0 0
    %1241 = vmatprep.subr.bf16.mxu0 0
    %1242 = vmatpush1.bf16.msra.mxu0 0
    %1243 = vmatprep.subr.bf16.mxu0 0
    %1244 = vmatpush1.bf16.msra.mxu0 0
    %1245 = vmatprep.subr.bf16.mxu0 0
    %1246 = vmatpush1.bf16.msra.mxu0 0
    %1247 = vmatprep.subr.bf16.mxu0 0
    %1248 = vmatpush1.bf16.msra.mxu0 0
    %1249 = vmatprep.subr.bf16.mxu0 0
    %1250 = vmatpush1.bf16.msra.mxu0 0
    %1251 = vmatprep.mubr.bf16.mxu0 0
    %1252 = vmatmul.mubr.bf16.gmra.mrb[0].mxu0 %v1217
    %v1253 = vpop.f32.mrb[0].mxu0
    %v1254 = vadd.f32 0.0, %v1253
    %v1255 = vpop.f32.mrb[0].mxu0
    %v1256 = vadd.f32 0.0, %v1255
    %v1257 = vpop.f32.mrb[0].mxu0
    %v1258 = vpop.f32.mrb[0].mxu0
    %1259 = vdwg.mxu0
    %1260 = vmatprep.subr.bf16.mxu0 %v381
    %1261 = vmatpush1.bf16.msra.mxu0 %v380
    %1262 = vmatprep.subr.bf16.mxu0 %v385
    %1263 = vmatpush1.bf16.msra.mxu0 %v384
    %1264 = vmatprep.subr.bf16.mxu0 %v389
    %1265 = vmatpush1.bf16.msra.mxu0 %v388
    %1266 = vmatprep.subr.bf16.mxu0 %v393
    %1267 = vmatpush1.bf16.msra.mxu0 %v392
    %1268 = vmatprep.subr.bf16.mxu0 %v397
    %1269 = vmatpush1.bf16.msra.mxu0 %v396
    %1270 = vmatprep.subr.bf16.mxu0 %v401
    %1271 = vmatpush1.bf16.msra.mxu0 %v400
    %1272 = vmatprep.subr.bf16.mxu0 %v405
    %1273 = vmatpush1.bf16.msra.mxu0 %v404
    %1274 = vmatprep.subr.bf16.mxu0 %v409
    %1275 = vmatpush1.bf16.msra.mxu0 %v408
    %1276 = vmatprep.subr.bf16.mxu0 0
    %1277 = vmatpush1.bf16.msra.mxu0 0
    %1278 = vmatprep.subr.bf16.mxu0 0
    %1279 = vmatpush1.bf16.msra.mxu0 0
    %1280 = vmatprep.subr.bf16.mxu0 0
    %1281 = vmatpush1.bf16.msra.mxu0 0
    %1282 = vmatprep.subr.bf16.mxu0 0
    %1283 = vmatpush1.bf16.msra.mxu0 0
    %1284 = vmatprep.subr.bf16.mxu0 0
    %1285 = vmatpush1.bf16.msra.mxu0 0
    %1286 = vmatprep.subr.bf16.mxu0 0
    %1287 = vmatpush1.bf16.msra.mxu0 0
    %1288 = vmatprep.subr.bf16.mxu0 0
    %1289 = vmatpush1.bf16.msra.mxu0 0
    %1290 = vmatprep.subr.bf16.mxu0 0
    %1291 = vmatpush1.bf16.msra.mxu0 0
    %1292 = vmatprep.mubr.bf16.mxu0 0
    %1293 = vmatmul.mubr.bf16.gmra.mrb[0].mxu0 %v1217
    %v1294 = vpop.f32.mrb[0].mxu0
    %v1295 = vadd.f32 0.0, %v1294
    %v1296 = vpop.f32.mrb[0].mxu0
    %v1297 = vadd.f32 0.0, %v1296
    %v1298 = vpop.f32.mrb[0].mxu0
    %v1299 = vpop.f32.mrb[0].mxu0
    %1300 = vdwg.mxu0
    %v1305 = vrot.slane %v1254, 5
    %v1306 = vrot.slane %v1256, 5
    %v1307 = vrot.slane %v1295, 5
    %v1308 = vrot.slane %v1297, 5
    %v1309 = vrot.slane %v1254, 6
    %v1310 = vrot.slane %v1256, 6
    %v1311 = vrot.slane %v1295, 6
    %v1312 = vrot.slane %v1297, 6
    %v1313 = vrot.slane %v1254, 7
    %v1314 = vrot.slane %v1256, 7
    %v1315 = vrot.slane %v1295, 7
    %v1316 = vrot.slane %v1297, 7
    %v1333 = vadd.f32 %v234, %v1305
    %v1334 = vadd.f32 %v235, %v1306
    %v1335 = vadd.f32 %v236, %v1307
    %v1336 = vadd.f32 %v237, %v1308
    %v1337 = vadd.f32 %v238, %v1309
    %v1338 = vadd.f32 %v239, %v1310
    %v1339 = vadd.f32 %v240, %v1311
    %v1340 = vadd.f32 %v241, %v1312
    %v1341 = vadd.f32 %v242, %v1313
    %v1342 = vadd.f32 %v243, %v1314
    %v1343 = vadd.f32 %v244, %v1315
    %v1344 = vadd.f32 %v245, %v1316
    %v1345 = vadd.f32 %v246, %v1254
    %v1346 = vadd.f32 %v247, %v1256
    %v1347 = vadd.f32 %v248, %v1295
    %v1348 = vadd.f32 %v249, %v1297
    %v1349 = vxor.u32 %v1333, 2147483648
    %v1350 = vxor.u32 %v1334, 2147483648
    %v1351 = vxor.u32 %v1335, 2147483648
    %v1352 = vxor.u32 %v1337, 2147483648
    %v1353 = vxor.u32 %v1338, 2147483648
    %v1354 = vxor.u32 %v1339, 2147483648
    %v1355 = vxor.u32 %v1341, 2147483648
    %v1356 = vxor.u32 %v1342, 2147483648
    %v1357 = vxor.u32 %v1343, 2147483648
    %v1358 = vxor.u32 %v1345, 2147483648
    %v1359 = vxor.u32 %v1346, 2147483648
    %v1360 = vxor.u32 %v1347, 2147483648
    %v1361 = vmul.f32 %v1349, 1.442695
    %v1362 = vpow.pop %v1361
    %v1363 = vmul.f32 %v1350, 1.442695
    %v1364 = vpow.pop %v1363
    %v1365 = vmul.f32 %v1351, 1.442695
    %v1366 = vpow.pop %v1365
    %v1367 = vmul.f32 %v1352, 1.442695
    %v1368 = vpow.pop %v1367
    %v1369 = vmul.f32 %v1353, 1.442695
    %v1370 = vpow.pop %v1369
    %v1371 = vmul.f32 %v1354, 1.442695
    %v1372 = vpow.pop %v1371
    %v1373 = vmul.f32 %v1355, 1.442695
    %v1374 = vpow.pop %v1373
    %v1375 = vmul.f32 %v1356, 1.442695
    %v1376 = vpow.pop %v1375
    %v1377 = vmul.f32 %v1357, 1.442695
    %v1378 = vpow.pop %v1377
    %v1379 = vmul.f32 %v1358, 1.442695
    %v1380 = vpow.pop %v1379
    %v1381 = vmul.f32 %v1359, 1.442695
    %v1382 = vpow.pop %v1381
    %v1383 = vmul.f32 %v1360, 1.442695
    %v1384 = vpow.pop %v1383
    %v1385 = vadd.f32 %v1362, 1.0
    %v1386 = vadd.f32 %v1364, 1.0
    %v1387 = vadd.f32 %v1366, 1.0
    %v1388 = vadd.f32 %v1368, 1.0
    %v1389 = vadd.f32 %v1370, 1.0
    %v1390 = vadd.f32 %v1372, 1.0
    %v1391 = vadd.f32 %v1374, 1.0
    %v1392 = vadd.f32 %v1376, 1.0
    %v1393 = vadd.f32 %v1378, 1.0
    %v1394 = vadd.f32 %v1380, 1.0
    %v1395 = vadd.f32 %v1382, 1.0
    %v1396 = vadd.f32 %v1384, 1.0
    %v1397 = vrcp.pop %v1385
    %v1398 = vmul.f32 1.0, %v1397
    %v1399 = vrcp.pop %v1386
    %v1400 = vmul.f32 1.0, %v1399
    %v1401 = vrcp.pop %v1387
    %v1402 = vmul.f32 1.0, %v1401
    %v1403 = vrcp.pop %v1388
    %v1404 = vmul.f32 1.0, %v1403
    %v1405 = vrcp.pop %v1389
    %v1406 = vmul.f32 1.0, %v1405
    %v1407 = vrcp.pop %v1390
    %v1408 = vmul.f32 1.0, %v1407
    %v1409 = vrcp.pop %v1391
    %v1410 = vmul.f32 1.0, %v1409
    %v1411 = vrcp.pop %v1392
    %v1412 = vmul.f32 1.0, %v1411
    %v1413 = vrcp.pop %v1393
    %v1414 = vmul.f32 1.0, %v1413
    %v1415 = vrcp.pop %v1394
    %v1416 = vmul.f32 1.0, %v1415
    %v1417 = vrcp.pop %v1395
    %v1418 = vmul.f32 1.0, %v1417
    %v1419 = vrcp.pop %v1396
    %v1420 = vmul.f32 1.0, %v1419
    %v1421 = vtanh.pop %v1336
    %v1422 = vtanh.pop %v1340
    %v1423 = vtanh.pop %v1344
    %v1424 = vtanh.pop %v1348
    %v1429 = vrot.slane %v1183, 7
    %v1430 = vrot.slane %v1184, 7
    %v1431 = vrot.slane %v1185, 7
    %v1432 = vrot.slane %v1186, 7
    %v1437 = vmul.f32 %v1400, %v1429
    %v1438 = vmul.f32 %v1406, %v1430
    %v1439 = vmul.f32 %v1412, %v1431
    %v1440 = vmul.f32 %v1418, %v1432
    %v1441 = vmul.f32 %v1398, %v1421
    %v1442 = vmul.f32 %v1404, %v1422
    %v1443 = vmul.f32 %v1410, %v1423
    %v1444 = vmul.f32 %v1416, %v1424
    %v1445 = vadd.f32 %v1437, %v1441
    %v1446 = vadd.f32 %v1438, %v1442
    %v1447 = vadd.f32 %v1439, %v1443
    %v1448 = vadd.f32 %v1440, %v1444
    %v1449 = vtanh.pop %v1445
    %v1450 = vtanh.pop %v1446
    %v1451 = vtanh.pop %v1447
    %v1452 = vtanh.pop %v1448
    %v1453 = vmul.f32 %v1402, %v1449
    %v1454 = vmul.f32 %v1408, %v1450
    %v1455 = vmul.f32 %v1414, %v1451
    %v1456 = vmul.f32 %v1420, %v1452
    %1457 = vst [vmem:[#allocation2] sm:$0x8] %v1453
    %1458 = vst [vmem:[#allocation2 + $0x8] sm:$0x8] %v1454
    %1459 = vst [vmem:[#allocation2 + $0x10] sm:$0x8] %v1455
    %1460 = vst [vmem:[#allocation2 + $0x18] sm:$0x8] %v1456
    %v1461 = vpack.c.bf16 %v1453, %v1453
    %v1462 = vpack.c.bf16 %v1454, %v1454
    %v1463 = vpack.c.bf16 %v1455, %v1455
    %v1464 = vpack.c.bf16 %v1456, %v1456
    %v1469 = vunpack.c.l.b16 %v1461
    %v1470 = vunpack.c.l.b16 %v1462
    %v1471 = vunpack.c.l.b16 %v1463
    %v1472 = vunpack.c.l.b16 %v1464
    %v1473 = vrot.slane %v1469, 3
    %v1474 = vrot.slane %v1470, 2
    %v1475 = vsel %vm685, %v1474, %v1473
    %v1476 = vrot.slane %v1471, 1
    %v1477 = vsel %vm688, %v1476, %v1475
    %v1478 = vsel %vm691, %v1472, %v1477
    %v1479 = vpack.c.b16 %v1478, %v1478
    %1481 = vmatprep.subr.bf16.mxu0 %v379
    %1482 = vmatpush1.bf16.msra.mxu0 %v378
    %1483 = vmatprep.subr.bf16.mxu0 %v383
    %1484 = vmatpush1.bf16.msra.mxu0 %v382
    %1485 = vmatprep.subr.bf16.mxu0 %v387
    %1486 = vmatpush1.bf16.msra.mxu0 %v386
    %1487 = vmatprep.subr.bf16.mxu0 %v391
    %1488 = vmatpush1.bf16.msra.mxu0 %v390
    %1489 = vmatprep.subr.bf16.mxu0 %v395
    %1490 = vmatpush1.bf16.msra.mxu0 %v394
    %1491 = vmatprep.subr.bf16.mxu0 %v399
    %1492 = vmatpush1.bf16.msra.mxu0 %v398
    %1493 = vmatprep.subr.bf16.mxu0 %v403
    %1494 = vmatpush1.bf16.msra.mxu0 %v402
    %1495 = vmatprep.subr.bf16.mxu0 %v407
    %1496 = vmatpush1.bf16.msra.mxu0 %v406
    %1497 = vmatprep.subr.bf16.mxu0 0
    %1498 = vmatpush1.bf16.msra.mxu0 0
    %1499 = vmatprep.subr.bf16.mxu0 0
    %1500 = vmatpush1.bf16.msra.mxu0 0
    %1501 = vmatprep.subr.bf16.mxu0 0
    %1502 = vmatpush1.bf16.msra.mxu0 0
    %1503 = vmatprep.subr.bf16.mxu0 0
    %1504 = vmatpush1.bf16.msra.mxu0 0
    %1505 = vmatprep.subr.bf16.mxu0 0
    %1506 = vmatpush1.bf16.msra.mxu0 0
    %1507 = vmatprep.subr.bf16.mxu0 0
    %1508 = vmatpush1.bf16.msra.mxu0 0
    %1509 = vmatprep.subr.bf16.mxu0 0
    %1510 = vmatpush1.bf16.msra.mxu0 0
    %1511 = vmatprep.subr.bf16.mxu0 0
    %1512 = vmatpush1.bf16.msra.mxu0 0
    %1513 = vmatprep.mubr.bf16.mxu0 0
    %1514 = vmatmul.mubr.bf16.gmra.mrb[0].mxu0 %v1479
    %v1515 = vpop.f32.mrb[0].mxu0
    %v1516 = vadd.f32 0.0, %v1515
    %v1517 = vpop.f32.mrb[0].mxu0
    %v1518 = vadd.f32 0.0, %v1517
    %v1519 = vpop.f32.mrb[0].mxu0
    %v1520 = vpop.f32.mrb[0].mxu0
    %1521 = vdwg.mxu0
    %1522 = vmatprep.subr.bf16.mxu0 %v381
    %1523 = vmatpush1.bf16.msra.mxu0 %v380
    %1524 = vmatprep.subr.bf16.mxu0 %v385
    %1525 = vmatpush1.bf16.msra.mxu0 %v384
    %1526 = vmatprep.subr.bf16.mxu0 %v389
    %1527 = vmatpush1.bf16.msra.mxu0 %v388
    %1528 = vmatprep.subr.bf16.mxu0 %v393
    %1529 = vmatpush1.bf16.msra.mxu0 %v392
    %1530 = vmatprep.subr.bf16.mxu0 %v397
    %1531 = vmatpush1.bf16.msra.mxu0 %v396
    %1532 = vmatprep.subr.bf16.mxu0 %v401
    %1533 = vmatpush1.bf16.msra.mxu0 %v400
    %1534 = vmatprep.subr.bf16.mxu0 %v405
    %1535 = vmatpush1.bf16.msra.mxu0 %v404
    %1536 = vmatprep.subr.bf16.mxu0 %v409
    %1537 = vmatpush1.bf16.msra.mxu0 %v408
    %1538 = vmatprep.subr.bf16.mxu0 0
    %1539 = vmatpush1.bf16.msra.mxu0 0
    %1540 = vmatprep.subr.bf16.mxu0 0
    %1541 = vmatpush1.bf16.msra.mxu0 0
    %1542 = vmatprep.subr.bf16.mxu0 0
    %1543 = vmatpush1.bf16.msra.mxu0 0
    %1544 = vmatprep.subr.bf16.mxu0 0
    %1545 = vmatpush1.bf16.msra.mxu0 0
    %1546 = vmatprep.subr.bf16.mxu0 0
    %1547 = vmatpush1.bf16.msra.mxu0 0
    %1548 = vmatprep.subr.bf16.mxu0 0
    %1549 = vmatpush1.bf16.msra.mxu0 0
    %1550 = vmatprep.subr.bf16.mxu0 0
    %1551 = vmatpush1.bf16.msra.mxu0 0
    %1552 = vmatprep.subr.bf16.mxu0 0
    %1553 = vmatpush1.bf16.msra.mxu0 0
    %1554 = vmatprep.mubr.bf16.mxu0 0
    %1555 = vmatmul.mubr.bf16.gmra.mrb[0].mxu0 %v1479
    %v1556 = vpop.f32.mrb[0].mxu0
    %v1557 = vadd.f32 0.0, %v1556
    %v1558 = vpop.f32.mrb[0].mxu0
    %v1559 = vadd.f32 0.0, %v1558
    %v1560 = vpop.f32.mrb[0].mxu0
    %v1561 = vpop.f32.mrb[0].mxu0
    %1562 = vdwg.mxu0
    %v1567 = vrot.slane %v1516, 4
    %v1568 = vrot.slane %v1518, 4
    %v1569 = vrot.slane %v1557, 4
    %v1570 = vrot.slane %v1559, 4
    %v1571 = vrot.slane %v1516, 5
    %v1572 = vrot.slane %v1518, 5
    %v1573 = vrot.slane %v1557, 5
    %v1574 = vrot.slane %v1559, 5
    %v1575 = vrot.slane %v1516, 6
    %v1576 = vrot.slane %v1518, 6
    %v1577 = vrot.slane %v1557, 6
    %v1578 = vrot.slane %v1559, 6
    %v1579 = vrot.slane %v1516, 7
    %v1580 = vrot.slane %v1518, 7
    %v1581 = vrot.slane %v1557, 7
    %v1582 = vrot.slane %v1559, 7
    %v1599 = vadd.f32 %v234, %v1567
    %v1600 = vadd.f32 %v235, %v1568
    %v1601 = vadd.f32 %v236, %v1569
    %v1602 = vadd.f32 %v237, %v1570
    %v1603 = vadd.f32 %v238, %v1571
    %v1604 = vadd.f32 %v239, %v1572
    %v1605 = vadd.f32 %v240, %v1573
    %v1606 = vadd.f32 %v241, %v1574
    %v1607 = vadd.f32 %v242, %v1575
    %v1608 = vadd.f32 %v243, %v1576
    %v1609 = vadd.f32 %v244, %v1577
    %v1610 = vadd.f32 %v245, %v1578
    %v1611 = vadd.f32 %v246, %v1579
    %v1612 = vadd.f32 %v247, %v1580
    %v1613 = vadd.f32 %v248, %v1581
    %v1614 = vadd.f32 %v249, %v1582
    %v1615 = vxor.u32 %v1599, 2147483648
    %v1616 = vxor.u32 %v1600, 2147483648
    %v1617 = vxor.u32 %v1601, 2147483648
    %v1618 = vxor.u32 %v1603, 2147483648
    %v1619 = vxor.u32 %v1604, 2147483648
    %v1620 = vxor.u32 %v1605, 2147483648
    %v1621 = vxor.u32 %v1607, 2147483648
    %v1622 = vxor.u32 %v1608, 2147483648
    %v1623 = vxor.u32 %v1609, 2147483648
    %v1624 = vxor.u32 %v1611, 2147483648
    %v1625 = vxor.u32 %v1612, 2147483648
    %v1626 = vxor.u32 %v1613, 2147483648
    %v1627 = vmul.f32 %v1615, 1.442695
    %v1628 = vpow.pop %v1627
    %v1629 = vmul.f32 %v1616, 1.442695
    %v1630 = vpow.pop %v1629
    %v1631 = vmul.f32 %v1617, 1.442695
    %v1632 = vpow.pop %v1631
    %v1633 = vmul.f32 %v1618, 1.442695
    %v1634 = vpow.pop %v1633
    %v1635 = vmul.f32 %v1619, 1.442695
    %v1636 = vpow.pop %v1635
    %v1637 = vmul.f32 %v1620, 1.442695
    %v1638 = vpow.pop %v1637
    %v1639 = vmul.f32 %v1621, 1.442695
    %v1640 = vpow.pop %v1639
    %v1641 = vmul.f32 %v1622, 1.442695
    %v1642 = vpow.pop %v1641
    %v1643 = vmul.f32 %v1623, 1.442695
    %v1644 = vpow.pop %v1643
    %v1645 = vmul.f32 %v1624, 1.442695
    %v1646 = vpow.pop %v1645
    %v1647 = vmul.f32 %v1625, 1.442695
    %v1648 = vpow.pop %v1647
    %v1649 = vmul.f32 %v1626, 1.442695
    %v1650 = vpow.pop %v1649
    %v1651 = vadd.f32 %v1628, 1.0
    %v1652 = vadd.f32 %v1630, 1.0
    %v1653 = vadd.f32 %v1632, 1.0
    %v1654 = vadd.f32 %v1634, 1.0
    %v1655 = vadd.f32 %v1636, 1.0
    %v1656 = vadd.f32 %v1638, 1.0
    %v1657 = vadd.f32 %v1640, 1.0
    %v1658 = vadd.f32 %v1642, 1.0
    %v1659 = vadd.f32 %v1644, 1.0
    %v1660 = vadd.f32 %v1646, 1.0
    %v1661 = vadd.f32 %v1648, 1.0
    %v1662 = vadd.f32 %v1650, 1.0
    %v1663 = vrcp.pop %v1651
    %v1664 = vmul.f32 1.0, %v1663
    %v1665 = vrcp.pop %v1652
    %v1666 = vmul.f32 1.0, %v1665
    %v1667 = vrcp.pop %v1653
    %v1668 = vmul.f32 1.0, %v1667
    %v1669 = vrcp.pop %v1654
    %v1670 = vmul.f32 1.0, %v1669
    %v1671 = vrcp.pop %v1655
    %v1672 = vmul.f32 1.0, %v1671
    %v1673 = vrcp.pop %v1656
    %v1674 = vmul.f32 1.0, %v1673
    %v1675 = vrcp.pop %v1657
    %v1676 = vmul.f32 1.0, %v1675
    %v1677 = vrcp.pop %v1658
    %v1678 = vmul.f32 1.0, %v1677
    %v1679 = vrcp.pop %v1659
    %v1680 = vmul.f32 1.0, %v1679
    %v1681 = vrcp.pop %v1660
    %v1682 = vmul.f32 1.0, %v1681
    %v1683 = vrcp.pop %v1661
    %v1684 = vmul.f32 1.0, %v1683
    %v1685 = vrcp.pop %v1662
    %v1686 = vmul.f32 1.0, %v1685
    %v1687 = vtanh.pop %v1602
    %v1688 = vtanh.pop %v1606
    %v1689 = vtanh.pop %v1610
    %v1690 = vtanh.pop %v1614
    %v1695 = vrot.slane %v1445, 7
    %v1696 = vrot.slane %v1446, 7
    %v1697 = vrot.slane %v1447, 7
    %v1698 = vrot.slane %v1448, 7
    %v1703 = vmul.f32 %v1666, %v1695
    %v1704 = vmul.f32 %v1672, %v1696
    %v1705 = vmul.f32 %v1678, %v1697
    %v1706 = vmul.f32 %v1684, %v1698
    %v1707 = vmul.f32 %v1664, %v1687
    %v1708 = vmul.f32 %v1670, %v1688
    %v1709 = vmul.f32 %v1676, %v1689
    %v1710 = vmul.f32 %v1682, %v1690
    %v1711 = vadd.f32 %v1703, %v1707
    %v1712 = vadd.f32 %v1704, %v1708
    %v1713 = vadd.f32 %v1705, %v1709
    %v1714 = vadd.f32 %v1706, %v1710
    %v1715 = vtanh.pop %v1711
    %v1716 = vtanh.pop %v1712
    %v1717 = vtanh.pop %v1713
    %v1718 = vtanh.pop %v1714
    %v1719 = vmul.f32 %v1668, %v1715
    %v1720 = vmul.f32 %v1674, %v1716
    %v1721 = vmul.f32 %v1680, %v1717
    %v1722 = vmul.f32 %v1686, %v1718
    %1723 = vst [vmem:[#allocation2] sm:$0x10] %v1719
    %1724 = vst [vmem:[#allocation2 + $0x8] sm:$0x10] %v1720
    %1725 = vst [vmem:[#allocation2 + $0x10] sm:$0x10] %v1721
    %1726 = vst [vmem:[#allocation2 + $0x18] sm:$0x10] %v1722
    %v1727 = vpack.c.bf16 %v1719, %v1719
    %v1728 = vpack.c.bf16 %v1720, %v1720
    %v1729 = vpack.c.bf16 %v1721, %v1721
    %v1730 = vpack.c.bf16 %v1722, %v1722
    %v1735 = vunpack.c.l.b16 %v1727
    %v1736 = vunpack.c.l.b16 %v1728
    %v1737 = vunpack.c.l.b16 %v1729
    %v1738 = vunpack.c.l.b16 %v1730
    %v1739 = vrot.slane %v1735, 4
    %v1740 = vrot.slane %v1736, 3
    %v1741 = vsel %vm685, %v1740, %v1739
    %v1742 = vrot.slane %v1737, 2
    %v1743 = vsel %vm688, %v1742, %v1741
    %v1744 = vrot.slane %v1738, 1
    %v1745 = vsel %vm691, %v1744, %v1743
    %v1746 = vpack.c.b16 %v1745, %v1745
    %1748 = vmatprep.subr.bf16.mxu0 %v379
    %1749 = vmatpush1.bf16.msra.mxu0 %v378
    %1750 = vmatprep.subr.bf16.mxu0 %v383
    %1751 = vmatpush1.bf16.msra.mxu0 %v382
    %1752 = vmatprep.subr.bf16.mxu0 %v387
    %1753 = vmatpush1.bf16.msra.mxu0 %v386
    %1754 = vmatprep.subr.bf16.mxu0 %v391
    %1755 = vmatpush1.bf16.msra.mxu0 %v390
    %1756 = vmatprep.subr.bf16.mxu0 %v395
    %1757 = vmatpush1.bf16.msra.mxu0 %v394
    %1758 = vmatprep.subr.bf16.mxu0 %v399
    %1759 = vmatpush1.bf16.msra.mxu0 %v398
    %1760 = vmatprep.subr.bf16.mxu0 %v403
    %1761 = vmatpush1.bf16.msra.mxu0 %v402
    %1762 = vmatprep.subr.bf16.mxu0 %v407
    %1763 = vmatpush1.bf16.msra.mxu0 %v406
    %1764 = vmatprep.subr.bf16.mxu0 0
    %1765 = vmatpush1.bf16.msra.mxu0 0
    %1766 = vmatprep.subr.bf16.mxu0 0
    %1767 = vmatpush1.bf16.msra.mxu0 0
    %1768 = vmatprep.subr.bf16.mxu0 0
    %1769 = vmatpush1.bf16.msra.mxu0 0
    %1770 = vmatprep.subr.bf16.mxu0 0
    %1771 = vmatpush1.bf16.msra.mxu0 0
    %1772 = vmatprep.subr.bf16.mxu0 0
    %1773 = vmatpush1.bf16.msra.mxu0 0
    %1774 = vmatprep.subr.bf16.mxu0 0
    %1775 = vmatpush1.bf16.msra.mxu0 0
    %1776 = vmatprep.subr.bf16.mxu0 0
    %1777 = vmatpush1.bf16.msra.mxu0 0
    %1778 = vmatprep.subr.bf16.mxu0 0
    %1779 = vmatpush1.bf16.msra.mxu0 0
    %1780 = vmatprep.mubr.bf16.mxu0 0
    %1781 = vmatmul.mubr.bf16.gmra.mrb[0].mxu0 %v1746
    %v1782 = vpop.f32.mrb[0].mxu0
    %v1783 = vadd.f32 0.0, %v1782
    %v1784 = vpop.f32.mrb[0].mxu0
    %v1785 = vadd.f32 0.0, %v1784
    %v1786 = vpop.f32.mrb[0].mxu0
    %v1787 = vpop.f32.mrb[0].mxu0
    %1788 = vdwg.mxu0
    %1789 = vmatprep.subr.bf16.mxu0 %v381
    %1790 = vmatpush1.bf16.msra.mxu0 %v380
    %1791 = vmatprep.subr.bf16.mxu0 %v385
    %1792 = vmatpush1.bf16.msra.mxu0 %v384
    %1793 = vmatprep.subr.bf16.mxu0 %v389
    %1794 = vmatpush1.bf16.msra.mxu0 %v388
    %1795 = vmatprep.subr.bf16.mxu0 %v393
    %1796 = vmatpush1.bf16.msra.mxu0 %v392
    %1797 = vmatprep.subr.bf16.mxu0 %v397
    %1798 = vmatpush1.bf16.msra.mxu0 %v396
    %1799 = vmatprep.subr.bf16.mxu0 %v401
    %1800 = vmatpush1.bf16.msra.mxu0 %v400
    %1801 = vmatprep.subr.bf16.mxu0 %v405
    %1802 = vmatpush1.bf16.msra.mxu0 %v404
    %1803 = vmatprep.subr.bf16.mxu0 %v409
    %1804 = vmatpush1.bf16.msra.mxu0 %v408
    %1805 = vmatprep.subr.bf16.mxu0 0
    %1806 = vmatpush1.bf16.msra.mxu0 0
    %1807 = vmatprep.subr.bf16.mxu0 0
    %1808 = vmatpush1.bf16.msra.mxu0 0
    %1809 = vmatprep.subr.bf16.mxu0 0
    %1810 = vmatpush1.bf16.msra.mxu0 0
    %1811 = vmatprep.subr.bf16.mxu0 0
    %1812 = vmatpush1.bf16.msra.mxu0 0
    %1813 = vmatprep.subr.bf16.mxu0 0
    %1814 = vmatpush1.bf16.msra.mxu0 0
    %1815 = vmatprep.subr.bf16.mxu0 0
    %1816 = vmatpush1.bf16.msra.mxu0 0
    %1817 = vmatprep.subr.bf16.mxu0 0
    %1818 = vmatpush1.bf16.msra.mxu0 0
    %1819 = vmatprep.subr.bf16.mxu0 0
    %1820 = vmatpush1.bf16.msra.mxu0 0
    %1821 = vmatprep.mubr.bf16.mxu0 0
    %1822 = vmatmul.mubr.bf16.gmra.mrb[0].mxu0 %v1746
    %v1823 = vpop.f32.mrb[0].mxu0
    %v1824 = vadd.f32 0.0, %v1823
    %v1825 = vpop.f32.mrb[0].mxu0
    %v1826 = vadd.f32 0.0, %v1825
    %v1827 = vpop.f32.mrb[0].mxu0
    %v1828 = vpop.f32.mrb[0].mxu0
    %1829 = vdwg.mxu0
    %v1834 = vrot.slane %v1783, 3
    %v1835 = vrot.slane %v1785, 3
    %v1836 = vrot.slane %v1824, 3
    %v1837 = vrot.slane %v1826, 3
    %v1838 = vrot.slane %v1783, 4
    %v1839 = vrot.slane %v1785, 4
    %v1840 = vrot.slane %v1824, 4
    %v1841 = vrot.slane %v1826, 4
    %v1842 = vrot.slane %v1783, 5
    %v1843 = vrot.slane %v1785, 5
    %v1844 = vrot.slane %v1824, 5
    %v1845 = vrot.slane %v1826, 5
    %v1846 = vrot.slane %v1783, 6
    %v1847 = vrot.slane %v1785, 6
    %v1848 = vrot.slane %v1824, 6
    %v1849 = vrot.slane %v1826, 6
    %v1866 = vadd.f32 %v234, %v1834
    %v1867 = vadd.f32 %v235, %v1835
    %v1868 = vadd.f32 %v236, %v1836
    %v1869 = vadd.f32 %v237, %v1837
    %v1870 = vadd.f32 %v238, %v1838
    %v1871 = vadd.f32 %v239, %v1839
    %v1872 = vadd.f32 %v240, %v1840
    %v1873 = vadd.f32 %v241, %v1841
    %v1874 = vadd.f32 %v242, %v1842
    %v1875 = vadd.f32 %v243, %v1843
    %v1876 = vadd.f32 %v244, %v1844
    %v1877 = vadd.f32 %v245, %v1845
    %v1878 = vadd.f32 %v246, %v1846
    %v1879 = vadd.f32 %v247, %v1847
    %v1880 = vadd.f32 %v248, %v1848
    %v1881 = vadd.f32 %v249, %v1849
    %v1882 = vxor.u32 %v1866, 2147483648
    %v1883 = vxor.u32 %v1867, 2147483648
    %v1884 = vxor.u32 %v1868, 2147483648
    %v1885 = vxor.u32 %v1870, 2147483648
    %v1886 = vxor.u32 %v1871, 2147483648
    %v1887 = vxor.u32 %v1872, 2147483648
    %v1888 = vxor.u32 %v1874, 2147483648
    %v1889 = vxor.u32 %v1875, 2147483648
    %v1890 = vxor.u32 %v1876, 2147483648
    %v1891 = vxor.u32 %v1878, 2147483648
    %v1892 = vxor.u32 %v1879, 2147483648
    %v1893 = vxor.u32 %v1880, 2147483648
    %v1894 = vmul.f32 %v1882, 1.442695
    %v1895 = vpow.pop %v1894
    %v1896 = vmul.f32 %v1883, 1.442695
    %v1897 = vpow.pop %v1896
    %v1898 = vmul.f32 %v1884, 1.442695
    %v1899 = vpow.pop %v1898
    %v1900 = vmul.f32 %v1885, 1.442695
    %v1901 = vpow.pop %v1900
    %v1902 = vmul.f32 %v1886, 1.442695
    %v1903 = vpow.pop %v1902
    %v1904 = vmul.f32 %v1887, 1.442695
    %v1905 = vpow.pop %v1904
    %v1906 = vmul.f32 %v1888, 1.442695
    %v1907 = vpow.pop %v1906
    %v1908 = vmul.f32 %v1889, 1.442695
    %v1909 = vpow.pop %v1908
    %v1910 = vmul.f32 %v1890, 1.442695
    %v1911 = vpow.pop %v1910
    %v1912 = vmul.f32 %v1891, 1.442695
    %v1913 = vpow.pop %v1912
    %v1914 = vmul.f32 %v1892, 1.442695
    %v1915 = vpow.pop %v1914
    %v1916 = vmul.f32 %v1893, 1.442695
    %v1917 = vpow.pop %v1916
    %v1918 = vadd.f32 %v1895, 1.0
    %v1919 = vadd.f32 %v1897, 1.0
    %v1920 = vadd.f32 %v1899, 1.0
    %v1921 = vadd.f32 %v1901, 1.0
    %v1922 = vadd.f32 %v1903, 1.0
    %v1923 = vadd.f32 %v1905, 1.0
    %v1924 = vadd.f32 %v1907, 1.0
    %v1925 = vadd.f32 %v1909, 1.0
    %v1926 = vadd.f32 %v1911, 1.0
    %v1927 = vadd.f32 %v1913, 1.0
    %v1928 = vadd.f32 %v1915, 1.0
    %v1929 = vadd.f32 %v1917, 1.0
    %v1930 = vrcp.pop %v1918
    %v1931 = vmul.f32 1.0, %v1930
    %v1932 = vrcp.pop %v1919
    %v1933 = vmul.f32 1.0, %v1932
    %v1934 = vrcp.pop %v1920
    %v1935 = vmul.f32 1.0, %v1934
    %v1936 = vrcp.pop %v1921
    %v1937 = vmul.f32 1.0, %v1936
    %v1938 = vrcp.pop %v1922
    %v1939 = vmul.f32 1.0, %v1938
    %v1940 = vrcp.pop %v1923
    %v1941 = vmul.f32 1.0, %v1940
    %v1942 = vrcp.pop %v1924
    %v1943 = vmul.f32 1.0, %v1942
    %v1944 = vrcp.pop %v1925
    %v1945 = vmul.f32 1.0, %v1944
    %v1946 = vrcp.pop %v1926
    %v1947 = vmul.f32 1.0, %v1946
    %v1948 = vrcp.pop %v1927
    %v1949 = vmul.f32 1.0, %v1948
    %v1950 = vrcp.pop %v1928
    %v1951 = vmul.f32 1.0, %v1950
    %v1952 = vrcp.pop %v1929
    %v1953 = vmul.f32 1.0, %v1952
    %v1954 = vtanh.pop %v1869
    %v1955 = vtanh.pop %v1873
    %v1956 = vtanh.pop %v1877
    %v1957 = vtanh.pop %v1881
    %v1962 = vrot.slane %v1711, 7
    %v1963 = vrot.slane %v1712, 7
    %v1964 = vrot.slane %v1713, 7
    %v1965 = vrot.slane %v1714, 7
    %v1970 = vmul.f32 %v1933, %v1962
    %v1971 = vmul.f32 %v1939, %v1963
    %v1972 = vmul.f32 %v1945, %v1964
    %v1973 = vmul.f32 %v1951, %v1965
    %v1974 = vmul.f32 %v1931, %v1954
    %v1975 = vmul.f32 %v1937, %v1955
    %v1976 = vmul.f32 %v1943, %v1956
    %v1977 = vmul.f32 %v1949, %v1957
    %v1978 = vadd.f32 %v1970, %v1974
    %v1979 = vadd.f32 %v1971, %v1975
    %v1980 = vadd.f32 %v1972, %v1976
    %v1981 = vadd.f32 %v1973, %v1977
    %v1982 = vtanh.pop %v1978
    %v1983 = vtanh.pop %v1979
    %v1984 = vtanh.pop %v1980
    %v1985 = vtanh.pop %v1981
    %v1986 = vmul.f32 %v1935, %v1982
    %v1987 = vmul.f32 %v1941, %v1983
    %v1988 = vmul.f32 %v1947, %v1984
    %v1989 = vmul.f32 %v1953, %v1985
    %1990 = vst [vmem:[#allocation2] sm:$0x20] %v1986
    %1991 = vst [vmem:[#allocation2 + $0x8] sm:$0x20] %v1987
    %1992 = vst [vmem:[#allocation2 + $0x10] sm:$0x20] %v1988
    %1993 = vst [vmem:[#allocation2 + $0x18] sm:$0x20] %v1989
    %v1994 = vpack.c.bf16 %v1986, %v1986
    %v1995 = vpack.c.bf16 %v1987, %v1987
    %v1996 = vpack.c.bf16 %v1988, %v1988
    %v1997 = vpack.c.bf16 %v1989, %v1989
    %v2002 = vunpack.c.l.b16 %v1994
    %v2003 = vunpack.c.l.b16 %v1995
    %v2004 = vunpack.c.l.b16 %v1996
    %v2005 = vunpack.c.l.b16 %v1997
    %v2006 = vrot.slane %v2002, 5
    %v2007 = vrot.slane %v2003, 4
    %v2008 = vsel %vm685, %v2007, %v2006
    %v2009 = vrot.slane %v2004, 3
    %v2010 = vsel %vm688, %v2009, %v2008
    %v2011 = vrot.slane %v2005, 2
    %v2012 = vsel %vm691, %v2011, %v2010
    %v2013 = vpack.c.b16 %v2012, %v2012
    %2015 = vmatprep.subr.bf16.mxu0 %v379
    %2016 = vmatpush1.bf16.msra.mxu0 %v378
    %2017 = vmatprep.subr.bf16.mxu0 %v383
    %2018 = vmatpush1.bf16.msra.mxu0 %v382
    %2019 = vmatprep.subr.bf16.mxu0 %v387
    %2020 = vmatpush1.bf16.msra.mxu0 %v386
    %2021 = vmatprep.subr.bf16.mxu0 %v391
    %2022 = vmatpush1.bf16.msra.mxu0 %v390
    %2023 = vmatprep.subr.bf16.mxu0 %v395
    %2024 = vmatpush1.bf16.msra.mxu0 %v394
    %2025 = vmatprep.subr.bf16.mxu0 %v399
    %2026 = vmatpush1.bf16.msra.mxu0 %v398
    %2027 = vmatprep.subr.bf16.mxu0 %v403
    %2028 = vmatpush1.bf16.msra.mxu0 %v402
    %2029 = vmatprep.subr.bf16.mxu0 %v407
    %2030 = vmatpush1.bf16.msra.mxu0 %v406
    %2031 = vmatprep.subr.bf16.mxu0 0
    %2032 = vmatpush1.bf16.msra.mxu0 0
    %2033 = vmatprep.subr.bf16.mxu0 0
    %2034 = vmatpush1.bf16.msra.mxu0 0
    %2035 = vmatprep.subr.bf16.mxu0 0
    %2036 = vmatpush1.bf16.msra.mxu0 0
    %2037 = vmatprep.subr.bf16.mxu0 0
    %2038 = vmatpush1.bf16.msra.mxu0 0
    %2039 = vmatprep.subr.bf16.mxu0 0
    %2040 = vmatpush1.bf16.msra.mxu0 0
    %2041 = vmatprep.subr.bf16.mxu0 0
    %2042 = vmatpush1.bf16.msra.mxu0 0
    %2043 = vmatprep.subr.bf16.mxu0 0
    %2044 = vmatpush1.bf16.msra.mxu0 0
    %2045 = vmatprep.subr.bf16.mxu0 0
    %2046 = vmatpush1.bf16.msra.mxu0 0
    %2047 = vmatprep.mubr.bf16.mxu0 0
    %2048 = vmatmul.mubr.bf16.gmra.mrb[0].mxu0 %v2013
    %v2049 = vpop.f32.mrb[0].mxu0
    %v2050 = vadd.f32 0.0, %v2049
    %v2051 = vpop.f32.mrb[0].mxu0
    %v2052 = vadd.f32 0.0, %v2051
    %v2053 = vpop.f32.mrb[0].mxu0
    %v2054 = vpop.f32.mrb[0].mxu0
    %2055 = vdwg.mxu0
    %2056 = vmatprep.subr.bf16.mxu0 %v381
    %2057 = vmatpush1.bf16.msra.mxu0 %v380
    %2058 = vmatprep.subr.bf16.mxu0 %v385
    %2059 = vmatpush1.bf16.msra.mxu0 %v384
    %2060 = vmatprep.subr.bf16.mxu0 %v389
    %2061 = vmatpush1.bf16.msra.mxu0 %v388
    %2062 = vmatprep.subr.bf16.mxu0 %v393
    %2063 = vmatpush1.bf16.msra.mxu0 %v392
    %2064 = vmatprep.subr.bf16.mxu0 %v397
    %2065 = vmatpush1.bf16.msra.mxu0 %v396
    %2066 = vmatprep.subr.bf16.mxu0 %v401
    %2067 = vmatpush1.bf16.msra.mxu0 %v400
    %2068 = vmatprep.subr.bf16.mxu0 %v405
    %2069 = vmatpush1.bf16.msra.mxu0 %v404
    %2070 = vmatprep.subr.bf16.mxu0 %v409
    %2071 = vmatpush1.bf16.msra.mxu0 %v408
    %2072 = vmatprep.subr.bf16.mxu0 0
    %2073 = vmatpush1.bf16.msra.mxu0 0
    %2074 = vmatprep.subr.bf16.mxu0 0
    %2075 = vmatpush1.bf16.msra.mxu0 0
    %2076 = vmatprep.subr.bf16.mxu0 0
    %2077 = vmatpush1.bf16.msra.mxu0 0
    %2078 = vmatprep.subr.bf16.mxu0 0
    %2079 = vmatpush1.bf16.msra.mxu0 0
    %2080 = vmatprep.subr.bf16.mxu0 0
    %2081 = vmatpush1.bf16.msra.mxu0 0
    %2082 = vmatprep.subr.bf16.mxu0 0
    %2083 = vmatpush1.bf16.msra.mxu0 0
    %2084 = vmatprep.subr.bf16.mxu0 0
    %2085 = vmatpush1.bf16.msra.mxu0 0
    %2086 = vmatprep.subr.bf16.mxu0 0
    %2087 = vmatpush1.bf16.msra.mxu0 0
    %2088 = vmatprep.mubr.bf16.mxu0 0
    %2089 = vmatmul.mubr.bf16.gmra.mrb[0].mxu0 %v2013
    %v2090 = vpop.f32.mrb[0].mxu0
    %v2091 = vadd.f32 0.0, %v2090
    %v2092 = vpop.f32.mrb[0].mxu0
    %v2093 = vadd.f32 0.0, %v2092
    %v2094 = vpop.f32.mrb[0].mxu0
    %v2095 = vpop.f32.mrb[0].mxu0
    %2096 = vdwg.mxu0
    %v2101 = vrot.slane %v2050, 2
    %v2102 = vrot.slane %v2052, 2
    %v2103 = vrot.slane %v2091, 2
    %v2104 = vrot.slane %v2093, 2
    %v2105 = vrot.slane %v2050, 3
    %v2106 = vrot.slane %v2052, 3
    %v2107 = vrot.slane %v2091, 3
    %v2108 = vrot.slane %v2093, 3
    %v2109 = vrot.slane %v2050, 4
    %v2110 = vrot.slane %v2052, 4
    %v2111 = vrot.slane %v2091, 4
    %v2112 = vrot.slane %v2093, 4
    %v2113 = vrot.slane %v2050, 5
    %v2114 = vrot.slane %v2052, 5
    %v2115 = vrot.slane %v2091, 5
    %v2116 = vrot.slane %v2093, 5
    %v2133 = vadd.f32 %v234, %v2101
    %v2134 = vadd.f32 %v235, %v2102
    %v2135 = vadd.f32 %v236, %v2103
    %v2136 = vadd.f32 %v237, %v2104
    %v2137 = vadd.f32 %v238, %v2105
    %v2138 = vadd.f32 %v239, %v2106
    %v2139 = vadd.f32 %v240, %v2107
    %v2140 = vadd.f32 %v241, %v2108
    %v2141 = vadd.f32 %v242, %v2109
    %v2142 = vadd.f32 %v243, %v2110
    %v2143 = vadd.f32 %v244, %v2111
    %v2144 = vadd.f32 %v245, %v2112
    %v2145 = vadd.f32 %v246, %v2113
    %v2146 = vadd.f32 %v247, %v2114
    %v2147 = vadd.f32 %v248, %v2115
    %v2148 = vadd.f32 %v249, %v2116
    %v2149 = vxor.u32 %v2133, 2147483648
    %v2150 = vxor.u32 %v2134, 2147483648
    %v2151 = vxor.u32 %v2135, 2147483648
    %v2152 = vxor.u32 %v2137, 2147483648
    %v2153 = vxor.u32 %v2138, 2147483648
    %v2154 = vxor.u32 %v2139, 2147483648
    %v2155 = vxor.u32 %v2141, 2147483648
    %v2156 = vxor.u32 %v2142, 2147483648
    %v2157 = vxor.u32 %v2143, 2147483648
    %v2158 = vxor.u32 %v2145, 2147483648
    %v2159 = vxor.u32 %v2146, 2147483648
    %v2160 = vxor.u32 %v2147, 2147483648
    %v2161 = vmul.f32 %v2149, 1.442695
    %v2162 = vpow.pop %v2161
    %v2163 = vmul.f32 %v2150, 1.442695
    %v2164 = vpow.pop %v2163
    %v2165 = vmul.f32 %v2151, 1.442695
    %v2166 = vpow.pop %v2165
    %v2167 = vmul.f32 %v2152, 1.442695
    %v2168 = vpow.pop %v2167
    %v2169 = vmul.f32 %v2153, 1.442695
    %v2170 = vpow.pop %v2169
    %v2171 = vmul.f32 %v2154, 1.442695
    %v2172 = vpow.pop %v2171
    %v2173 = vmul.f32 %v2155, 1.442695
    %v2174 = vpow.pop %v2173
    %v2175 = vmul.f32 %v2156, 1.442695
    %v2176 = vpow.pop %v2175
    %v2177 = vmul.f32 %v2157, 1.442695
    %v2178 = vpow.pop %v2177
    %v2179 = vmul.f32 %v2158, 1.442695
    %v2180 = vpow.pop %v2179
    %v2181 = vmul.f32 %v2159, 1.442695
    %v2182 = vpow.pop %v2181
    %v2183 = vmul.f32 %v2160, 1.442695
    %v2184 = vpow.pop %v2183
    %v2185 = vadd.f32 %v2162, 1.0
    %v2186 = vadd.f32 %v2164, 1.0
    %v2187 = vadd.f32 %v2166, 1.0
    %v2188 = vadd.f32 %v2168, 1.0
    %v2189 = vadd.f32 %v2170, 1.0
    %v2190 = vadd.f32 %v2172, 1.0
    %v2191 = vadd.f32 %v2174, 1.0
    %v2192 = vadd.f32 %v2176, 1.0
    %v2193 = vadd.f32 %v2178, 1.0
    %v2194 = vadd.f32 %v2180, 1.0
    %v2195 = vadd.f32 %v2182, 1.0
    %v2196 = vadd.f32 %v2184, 1.0
    %v2197 = vrcp.pop %v2185
    %v2198 = vmul.f32 1.0, %v2197
    %v2199 = vrcp.pop %v2186
    %v2200 = vmul.f32 1.0, %v2199
    %v2201 = vrcp.pop %v2187
    %v2202 = vmul.f32 1.0, %v2201
    %v2203 = vrcp.pop %v2188
    %v2204 = vmul.f32 1.0, %v2203
    %v2205 = vrcp.pop %v2189
    %v2206 = vmul.f32 1.0, %v2205
    %v2207 = vrcp.pop %v2190
    %v2208 = vmul.f32 1.0, %v2207
    %v2209 = vrcp.pop %v2191
    %v2210 = vmul.f32 1.0, %v2209
    %v2211 = vrcp.pop %v2192
    %v2212 = vmul.f32 1.0, %v2211
    %v2213 = vrcp.pop %v2193
    %v2214 = vmul.f32 1.0, %v2213
    %v2215 = vrcp.pop %v2194
    %v2216 = vmul.f32 1.0, %v2215
    %v2217 = vrcp.pop %v2195
    %v2218 = vmul.f32 1.0, %v2217
    %v2219 = vrcp.pop %v2196
    %v2220 = vmul.f32 1.0, %v2219
    %v2221 = vtanh.pop %v2136
    %v2222 = vtanh.pop %v2140
    %v2223 = vtanh.pop %v2144
    %v2224 = vtanh.pop %v2148
    %v2229 = vrot.slane %v1978, 7
    %v2230 = vrot.slane %v1979, 7
    %v2231 = vrot.slane %v1980, 7
    %v2232 = vrot.slane %v1981, 7
    %v2237 = vmul.f32 %v2200, %v2229
    %v2238 = vmul.f32 %v2206, %v2230
    %v2239 = vmul.f32 %v2212, %v2231
    %v2240 = vmul.f32 %v2218, %v2232
    %v2241 = vmul.f32 %v2198, %v2221
    %v2242 = vmul.f32 %v2204, %v2222
    %v2243 = vmul.f32 %v2210, %v2223
    %v2244 = vmul.f32 %v2216, %v2224
    %v2245 = vadd.f32 %v2237, %v2241
    %v2246 = vadd.f32 %v2238, %v2242
    %v2247 = vadd.f32 %v2239, %v2243
    %v2248 = vadd.f32 %v2240, %v2244
    %v2249 = vtanh.pop %v2245
    %v2250 = vtanh.pop %v2246
    %v2251 = vtanh.pop %v2247
    %v2252 = vtanh.pop %v2248
    %v2253 = vmul.f32 %v2202, %v2249
    %v2254 = vmul.f32 %v2208, %v2250
    %v2255 = vmul.f32 %v2214, %v2251
    %v2256 = vmul.f32 %v2220, %v2252
    %2257 = vst [vmem:[#allocation2] sm:$0x40] %v2253
    %2258 = vst [vmem:[#allocation2 + $0x8] sm:$0x40] %v2254
    %2259 = vst [vmem:[#allocation2 + $0x10] sm:$0x40] %v2255
    %2260 = vst [vmem:[#allocation2 + $0x18] sm:$0x40] %v2256
    %v2261 = vpack.c.bf16 %v2253, %v2253
    %v2262 = vpack.c.bf16 %v2254, %v2254
    %v2263 = vpack.c.bf16 %v2255, %v2255
    %v2264 = vpack.c.bf16 %v2256, %v2256
    %v2269 = vunpack.c.l.b16 %v2261
    %v2270 = vunpack.c.l.b16 %v2262
    %v2271 = vunpack.c.l.b16 %v2263
    %v2272 = vunpack.c.l.b16 %v2264
    %v2273 = vrot.slane %v2269, 6
    %v2274 = vrot.slane %v2270, 5
    %v2275 = vsel %vm685, %v2274, %v2273
    %v2276 = vrot.slane %v2271, 4
    %v2277 = vsel %vm688, %v2276, %v2275
    %v2278 = vrot.slane %v2272, 3
    %v2279 = vsel %vm691, %v2278, %v2277
    %v2280 = vpack.c.b16 %v2279, %v2279
    %2282 = vmatprep.subr.bf16.mxu0 %v379
    %2283 = vmatpush1.bf16.msra.mxu0 %v378
    %2284 = vmatprep.subr.bf16.mxu0 %v383
    %2285 = vmatpush1.bf16.msra.mxu0 %v382
    %2286 = vmatprep.subr.bf16.mxu0 %v387
    %2287 = vmatpush1.bf16.msra.mxu0 %v386
    %2288 = vmatprep.subr.bf16.mxu0 %v391
    %2289 = vmatpush1.bf16.msra.mxu0 %v390
    %2290 = vmatprep.subr.bf16.mxu0 %v395
    %2291 = vmatpush1.bf16.msra.mxu0 %v394
    %2292 = vmatprep.subr.bf16.mxu0 %v399
    %2293 = vmatpush1.bf16.msra.mxu0 %v398
    %2294 = vmatprep.subr.bf16.mxu0 %v403
    %2295 = vmatpush1.bf16.msra.mxu0 %v402
    %2296 = vmatprep.subr.bf16.mxu0 %v407
    %2297 = vmatpush1.bf16.msra.mxu0 %v406
    %2298 = vmatprep.subr.bf16.mxu0 0
    %2299 = vmatpush1.bf16.msra.mxu0 0
    %2300 = vmatprep.subr.bf16.mxu0 0
    %2301 = vmatpush1.bf16.msra.mxu0 0
    %2302 = vmatprep.subr.bf16.mxu0 0
    %2303 = vmatpush1.bf16.msra.mxu0 0
    %2304 = vmatprep.subr.bf16.mxu0 0
    %2305 = vmatpush1.bf16.msra.mxu0 0
    %2306 = vmatprep.subr.bf16.mxu0 0
    %2307 = vmatpush1.bf16.msra.mxu0 0
    %2308 = vmatprep.subr.bf16.mxu0 0
    %2309 = vmatpush1.bf16.msra.mxu0 0
    %2310 = vmatprep.subr.bf16.mxu0 0
    %2311 = vmatpush1.bf16.msra.mxu0 0
    %2312 = vmatprep.subr.bf16.mxu0 0
    %2313 = vmatpush1.bf16.msra.mxu0 0
    %2314 = vmatprep.mubr.bf16.mxu0 0
    %2315 = vmatmul.mubr.bf16.gmra.mrb[0].mxu0 %v2280
    %v2316 = vpop.f32.mrb[0].mxu0
    %v2317 = vadd.f32 0.0, %v2316
    %v2318 = vpop.f32.mrb[0].mxu0
    %v2319 = vadd.f32 0.0, %v2318
    %v2320 = vpop.f32.mrb[0].mxu0
    %v2321 = vpop.f32.mrb[0].mxu0
    %2322 = vdwg.mxu0
    %2323 = vmatprep.subr.bf16.mxu0 %v381
    %2324 = vmatpush1.bf16.msra.mxu0 %v380
    %2325 = vmatprep.subr.bf16.mxu0 %v385
    %2326 = vmatpush1.bf16.msra.mxu0 %v384
    %2327 = vmatprep.subr.bf16.mxu0 %v389
    %2328 = vmatpush1.bf16.msra.mxu0 %v388
    %2329 = vmatprep.subr.bf16.mxu0 %v393
    %2330 = vmatpush1.bf16.msra.mxu0 %v392
    %2331 = vmatprep.subr.bf16.mxu0 %v397
    %2332 = vmatpush1.bf16.msra.mxu0 %v396
    %2333 = vmatprep.subr.bf16.mxu0 %v401
    %2334 = vmatpush1.bf16.msra.mxu0 %v400
    %2335 = vmatprep.subr.bf16.mxu0 %v405
    %2336 = vmatpush1.bf16.msra.mxu0 %v404
    %2337 = vmatprep.subr.bf16.mxu0 %v409
    %2338 = vmatpush1.bf16.msra.mxu0 %v408
    %2339 = vmatprep.subr.bf16.mxu0 0
    %2340 = vmatpush1.bf16.msra.mxu0 0
    %2341 = vmatprep.subr.bf16.mxu0 0
    %2342 = vmatpush1.bf16.msra.mxu0 0
    %2343 = vmatprep.subr.bf16.mxu0 0
    %2344 = vmatpush1.bf16.msra.mxu0 0
    %2345 = vmatprep.subr.bf16.mxu0 0
    %2346 = vmatpush1.bf16.msra.mxu0 0
    %2347 = vmatprep.subr.bf16.mxu0 0
    %2348 = vmatpush1.bf16.msra.mxu0 0
    %2349 = vmatprep.subr.bf16.mxu0 0
    %2350 = vmatpush1.bf16.msra.mxu0 0
    %2351 = vmatprep.subr.bf16.mxu0 0
    %2352 = vmatpush1.bf16.msra.mxu0 0
    %2353 = vmatprep.subr.bf16.mxu0 0
    %2354 = vmatpush1.bf16.msra.mxu0 0
    %2355 = vmatprep.mubr.bf16.mxu0 0
    %2356 = vmatmul.mubr.bf16.gmra.mrb[0].mxu0 %v2280
    %v2357 = vpop.f32.mrb[0].mxu0
    %v2358 = vadd.f32 0.0, %v2357
    %v2359 = vpop.f32.mrb[0].mxu0
    %v2360 = vadd.f32 0.0, %v2359
    %v2361 = vpop.f32.mrb[0].mxu0
    %v2362 = vpop.f32.mrb[0].mxu0
    %2363 = vdwg.mxu0
    %v2368 = vrot.slane %v2317, 1
    %v2369 = vrot.slane %v2319, 1
    %v2370 = vrot.slane %v2358, 1
    %v2371 = vrot.slane %v2360, 1
    %v2372 = vrot.slane %v2317, 2
    %v2373 = vrot.slane %v2319, 2
    %v2374 = vrot.slane %v2358, 2
    %v2375 = vrot.slane %v2360, 2
    %v2376 = vrot.slane %v2317, 3
    %v2377 = vrot.slane %v2319, 3
    %v2378 = vrot.slane %v2358, 3
    %v2379 = vrot.slane %v2360, 3
    %v2380 = vrot.slane %v2317, 4
    %v2381 = vrot.slane %v2319, 4
    %v2382 = vrot.slane %v2358, 4
    %v2383 = vrot.slane %v2360, 4
    %v2400 = vadd.f32 %v234, %v2368
    %v2401 = vadd.f32 %v235, %v2369
    %v2402 = vadd.f32 %v236, %v2370
    %v2403 = vadd.f32 %v237, %v2371
    %v2404 = vadd.f32 %v238, %v2372
    %v2405 = vadd.f32 %v239, %v2373
    %v2406 = vadd.f32 %v240, %v2374
    %v2407 = vadd.f32 %v241, %v2375
    %v2408 = vadd.f32 %v242, %v2376
    %v2409 = vadd.f32 %v243, %v2377
    %v2410 = vadd.f32 %v244, %v2378
    %v2411 = vadd.f32 %v245, %v2379
    %v2412 = vadd.f32 %v246, %v2380
    %v2413 = vadd.f32 %v247, %v2381
    %v2414 = vadd.f32 %v248, %v2382
    %v2415 = vadd.f32 %v249, %v2383
    %v2416 = vxor.u32 %v2400, 2147483648
    %v2417 = vxor.u32 %v2401, 2147483648
    %v2418 = vxor.u32 %v2402, 2147483648
    %v2419 = vxor.u32 %v2404, 2147483648
    %v2420 = vxor.u32 %v2405, 2147483648
    %v2421 = vxor.u32 %v2406, 2147483648
    %v2422 = vxor.u32 %v2408, 2147483648
    %v2423 = vxor.u32 %v2409, 2147483648
    %v2424 = vxor.u32 %v2410, 2147483648
    %v2425 = vxor.u32 %v2412, 2147483648
    %v2426 = vxor.u32 %v2413, 2147483648
    %v2427 = vxor.u32 %v2414, 2147483648
    %v2428 = vmul.f32 %v2416, 1.442695
    %v2429 = vpow.pop %v2428
    %v2430 = vmul.f32 %v2417, 1.442695
    %v2431 = vpow.pop %v2430
    %v2432 = vmul.f32 %v2418, 1.442695
    %v2433 = vpow.pop %v2432
    %v2434 = vmul.f32 %v2419, 1.442695
    %v2435 = vpow.pop %v2434
    %v2436 = vmul.f32 %v2420, 1.442695
    %v2437 = vpow.pop %v2436
    %v2438 = vmul.f32 %v2421, 1.442695
    %v2439 = vpow.pop %v2438
    %v2440 = vmul.f32 %v2422, 1.442695
    %v2441 = vpow.pop %v2440
    %v2442 = vmul.f32 %v2423, 1.442695
    %v2443 = vpow.pop %v2442
    %v2444 = vmul.f32 %v2424, 1.442695
    %v2445 = vpow.pop %v2444
    %v2446 = vmul.f32 %v2425, 1.442695
    %v2447 = vpow.pop %v2446
    %v2448 = vmul.f32 %v2426, 1.442695
    %v2449 = vpow.pop %v2448
    %v2450 = vmul.f32 %v2427, 1.442695
    %v2451 = vpow.pop %v2450
    %v2452 = vadd.f32 %v2429, 1.0
    %v2453 = vadd.f32 %v2431, 1.0
    %v2454 = vadd.f32 %v2433, 1.0
    %v2455 = vadd.f32 %v2435, 1.0
    %v2456 = vadd.f32 %v2437, 1.0
    %v2457 = vadd.f32 %v2439, 1.0
    %v2458 = vadd.f32 %v2441, 1.0
    %v2459 = vadd.f32 %v2443, 1.0
    %v2460 = vadd.f32 %v2445, 1.0
    %v2461 = vadd.f32 %v2447, 1.0
    %v2462 = vadd.f32 %v2449, 1.0
    %v2463 = vadd.f32 %v2451, 1.0
    %v2464 = vrcp.pop %v2452
    %v2465 = vmul.f32 1.0, %v2464
    %v2466 = vrcp.pop %v2453
    %v2467 = vmul.f32 1.0, %v2466
    %v2468 = vrcp.pop %v2454
    %v2469 = vmul.f32 1.0, %v2468
    %v2470 = vrcp.pop %v2455
    %v2471 = vmul.f32 1.0, %v2470
    %v2472 = vrcp.pop %v2456
    %v2473 = vmul.f32 1.0, %v2472
    %v2474 = vrcp.pop %v2457
    %v2475 = vmul.f32 1.0, %v2474
    %v2476 = vrcp.pop %v2458
    %v2477 = vmul.f32 1.0, %v2476
    %v2478 = vrcp.pop %v2459
    %v2479 = vmul.f32 1.0, %v2478
    %v2480 = vrcp.pop %v2460
    %v2481 = vmul.f32 1.0, %v2480
    %v2482 = vrcp.pop %v2461
    %v2483 = vmul.f32 1.0, %v2482
    %v2484 = vrcp.pop %v2462
    %v2485 = vmul.f32 1.0, %v2484
    %v2486 = vrcp.pop %v2463
    %v2487 = vmul.f32 1.0, %v2486
    %v2488 = vtanh.pop %v2403
    %v2489 = vtanh.pop %v2407
    %v2490 = vtanh.pop %v2411
    %v2491 = vtanh.pop %v2415
    %v2496 = vrot.slane %v2245, 7
    %v2497 = vrot.slane %v2246, 7
    %v2498 = vrot.slane %v2247, 7
    %v2499 = vrot.slane %v2248, 7
    %v2504 = vmul.f32 %v2467, %v2496
    %v2505 = vmul.f32 %v2473, %v2497
    %v2506 = vmul.f32 %v2479, %v2498
    %v2507 = vmul.f32 %v2485, %v2499
    %v2508 = vmul.f32 %v2465, %v2488
    %v2509 = vmul.f32 %v2471, %v2489
    %v2510 = vmul.f32 %v2477, %v2490
    %v2511 = vmul.f32 %v2483, %v2491
    %v2512 = vadd.f32 %v2504, %v2508
    %v2513 = vadd.f32 %v2505, %v2509
    %v2514 = vadd.f32 %v2506, %v2510
    %v2515 = vadd.f32 %v2507, %v2511
    %v2516 = vtanh.pop %v2512
    %v2517 = vtanh.pop %v2513
    %v2518 = vtanh.pop %v2514
    %v2519 = vtanh.pop %v2515
    %v2520 = vmul.f32 %v2469, %v2516
    %v2521 = vmul.f32 %v2475, %v2517
    %v2522 = vmul.f32 %v2481, %v2518
    %v2523 = vmul.f32 %v2487, %v2519
    %2524 = vst [vmem:[#allocation2] sm:$0x80] %v2520
    %2525 = vst [vmem:[#allocation2 + $0x8] sm:$0x80] %v2521
    %2526 = vst [vmem:[#allocation2 + $0x10] sm:$0x80] %v2522
    %2527 = vst [vmem:[#allocation2 + $0x18] sm:$0x80] %v2523
    %v2528 = vld [vmem:[%s5] sm:$0xff]
    %v2529 = vld [vmem:[%s5 + $0x8] sm:$0xff]
    %v2530 = vld [vmem:[%s5 + $0x10] sm:$0xff]
    %v2531 = vld [vmem:[%s5 + $0x18] sm:$0xff]
    %v2532 = vld [vmem:[%s5 + $0x20] sm:$0xff]
    %v2533 = vld [vmem:[%s5 + $0x28] sm:$0xff]
    %v2534 = vld [vmem:[%s5 + $0x30] sm:$0xff]
    %v2535 = vld [vmem:[%s5 + $0x38] sm:$0xff]
    %v2536 = vld [vmem:[%s5 + $0x40] sm:$0xff]
    %v2537 = vld [vmem:[%s5 + $0x48] sm:$0xff]
    %v2538 = vld [vmem:[%s5 + $0x50] sm:$0xff]
    %v2539 = vld [vmem:[%s5 + $0x58] sm:$0xff]
    %v2540 = vld [vmem:[%s5 + $0x60] sm:$0xff]
    %v2541 = vld [vmem:[%s5 + $0x68] sm:$0xff]
    %v2542 = vld [vmem:[%s5 + $0x70] sm:$0xff]
    %v2543 = vld [vmem:[%s5 + $0x78] sm:$0xff]
    %v2544 = vld [vmem:[%s5 + $0x80] sm:$0xff]
    %v2545 = vld [vmem:[%s5 + $0x88] sm:$0xff]
    %v2546 = vld [vmem:[%s5 + $0x90] sm:$0xff]
    %v2547 = vld [vmem:[%s5 + $0x98] sm:$0xff]
    %v2548 = vld [vmem:[%s5 + $0xa0] sm:$0xff]
    %v2549 = vld [vmem:[%s5 + $0xa8] sm:$0xff]
    %v2550 = vld [vmem:[%s5 + $0xb0] sm:$0xff]
    %v2551 = vld [vmem:[%s5 + $0xb8] sm:$0xff]
    %v2552 = vld [vmem:[%s5 + $0xc0] sm:$0xff]
    %v2553 = vld [vmem:[%s5 + $0xc8] sm:$0xff]
    %v2554 = vld [vmem:[%s5 + $0xd0] sm:$0xff]
    %v2555 = vld [vmem:[%s5 + $0xd8] sm:$0xff]
    %v2556 = vld [vmem:[%s5 + $0xe0] sm:$0xff]
    %v2557 = vld [vmem:[%s5 + $0xe8] sm:$0xff]
    %v2558 = vld [vmem:[%s5 + $0xf0] sm:$0xff]
    %v2559 = vld [vmem:[%s5 + $0xf8] sm:$0xff]
    %v2560 = vld [vmem:[%s12] sm:$0x1]
    %v2561 = vld [vmem:[%s4] sm:$0xff]
    %v2562 = vld [vmem:[%s4 + $0x8] sm:$0xff]
    %v2563 = vld [vmem:[%s4 + $0x10] sm:$0xff]
    %v2564 = vld [vmem:[%s4 + $0x18] sm:$0xff]
    %v2565 = vld [vmem:[%s4 + $0x20] sm:$0xff]
    %v2566 = vld [vmem:[%s4 + $0x28] sm:$0xff]
    %v2567 = vld [vmem:[%s4 + $0x30] sm:$0xff]
    %v2568 = vld [vmem:[%s4 + $0x38] sm:$0xff]
    %v2569 = vld [vmem:[%s4 + $0x40] sm:$0xff]
    %v2570 = vld [vmem:[%s4 + $0x48] sm:$0xff]
    %v2571 = vld [vmem:[%s4 + $0x50] sm:$0xff]
    %v2572 = vld [vmem:[%s4 + $0x58] sm:$0xff]
    %v2573 = vld [vmem:[%s4 + $0x60] sm:$0xff]
    %v2574 = vld [vmem:[%s4 + $0x68] sm:$0xff]
    %v2575 = vld [vmem:[%s4 + $0x70] sm:$0xff]
    %v2576 = vld [vmem:[%s4 + $0x78] sm:$0xff]
    %v2577 = vld [vmem:[%s4 + $0x80] sm:$0xff]
    %v2578 = vld [vmem:[%s4 + $0x88] sm:$0xff]
    %v2579 = vld [vmem:[%s4 + $0x90] sm:$0xff]
    %v2580 = vld [vmem:[%s4 + $0x98] sm:$0xff]
    %v2581 = vld [vmem:[%s4 + $0xa0] sm:$0xff]
    %v2582 = vld [vmem:[%s4 + $0xa8] sm:$0xff]
    %v2583 = vld [vmem:[%s4 + $0xb0] sm:$0xff]
    %v2584 = vld [vmem:[%s4 + $0xb8] sm:$0xff]
    %v2585 = vld [vmem:[%s4 + $0xc0] sm:$0xff]
    %v2586 = vld [vmem:[%s4 + $0xc8] sm:$0xff]
    %v2587 = vld [vmem:[%s4 + $0xd0] sm:$0xff]
    %v2588 = vld [vmem:[%s4 + $0xd8] sm:$0xff]
    %v2589 = vld [vmem:[%s4 + $0xe0] sm:$0xff]
    %v2590 = vld [vmem:[%s4 + $0xe8] sm:$0xff]
    %v2591 = vld [vmem:[%s4 + $0xf0] sm:$0xff]
    %v2592 = vld [vmem:[%s4 + $0xf8] sm:$0xff]
    %v2593 = vld [vmem:[%s6] sm:$0xf]
    %v2626 = vunpack.c.l.b16 %v2561
    %v2627 = vunpack.c.h.b16 %v2561
    %v2628 = vunpack.c.l.b16 %v2562
    %v2629 = vunpack.c.h.b16 %v2562
    %v2630 = vunpack.c.l.b16 %v2563
    %v2631 = vunpack.c.h.b16 %v2563
    %v2632 = vunpack.c.l.b16 %v2564
    %v2633 = vunpack.c.h.b16 %v2564
    %v2634 = vunpack.c.l.b16 %v2565
    %v2635 = vunpack.c.h.b16 %v2565
    %v2636 = vunpack.c.l.b16 %v2566
    %v2637 = vunpack.c.h.b16 %v2566
    %v2638 = vunpack.c.l.b16 %v2567
    %v2639 = vunpack.c.h.b16 %v2567
    %v2640 = vunpack.c.l.b16 %v2568
    %v2641 = vunpack.c.h.b16 %v2568
    %v2642 = vunpack.c.l.b16 %v2569
    %v2643 = vunpack.c.h.b16 %v2569
    %v2644 = vunpack.c.l.b16 %v2570
    %v2645 = vunpack.c.h.b16 %v2570
    %v2646 = vunpack.c.l.b16 %v2571
    %v2647 = vunpack.c.h.b16 %v2571
    %v2648 = vunpack.c.l.b16 %v2572
    %v2649 = vunpack.c.h.b16 %v2572
    %v2650 = vunpack.c.l.b16 %v2573
    %v2651 = vunpack.c.h.b16 %v2573
    %v2652 = vunpack.c.l.b16 %v2574
    %v2653 = vunpack.c.h.b16 %v2574
    %v2654 = vunpack.c.l.b16 %v2575
    %v2655 = vunpack.c.h.b16 %v2575
    %v2656 = vunpack.c.l.b16 %v2576
    %v2657 = vunpack.c.h.b16 %v2576
    %v2658 = vunpack.c.l.b16 %v2577
    %v2659 = vunpack.c.h.b16 %v2577
    %v2660 = vunpack.c.l.b16 %v2578
    %v2661 = vunpack.c.h.b16 %v2578
    %v2662 = vunpack.c.l.b16 %v2579
    %v2663 = vunpack.c.h.b16 %v2579
    %v2664 = vunpack.c.l.b16 %v2580
    %v2665 = vunpack.c.h.b16 %v2580
    %v2666 = vunpack.c.l.b16 %v2581
    %v2667 = vunpack.c.h.b16 %v2581
    %v2668 = vunpack.c.l.b16 %v2582
    %v2669 = vunpack.c.h.b16 %v2582
    %v2670 = vunpack.c.l.b16 %v2583
    %v2671 = vunpack.c.h.b16 %v2583
    %v2672 = vunpack.c.l.b16 %v2584
    %v2673 = vunpack.c.h.b16 %v2584
    %v2674 = vunpack.c.l.b16 %v2585
    %v2675 = vunpack.c.h.b16 %v2585
    %v2676 = vunpack.c.l.b16 %v2586
    %v2677 = vunpack.c.h.b16 %v2586
    %v2678 = vunpack.c.l.b16 %v2587
    %v2679 = vunpack.c.h.b16 %v2587
    %v2680 = vunpack.c.l.b16 %v2588
    %v2681 = vunpack.c.h.b16 %v2588
    %v2682 = vunpack.c.l.b16 %v2589
    %v2683 = vunpack.c.h.b16 %v2589
    %v2684 = vunpack.c.l.b16 %v2590
    %v2685 = vunpack.c.h.b16 %v2590
    %v2686 = vunpack.c.l.b16 %v2591
    %v2687 = vunpack.c.h.b16 %v2591
    %v2688 = vunpack.c.l.b16 %v2592
    %v2689 = vunpack.c.h.b16 %v2592
    %v2690 = vpack.c.b16 %v2630, %v2626
    %v2691 = vpack.c.b16 %v2631, %v2627
    %v2692 = vpack.c.b16 %v2632, %v2628
    %v2693 = vpack.c.b16 %v2633, %v2629
    %v2694 = vpack.c.b16 %v2638, %v2634
    %v2695 = vpack.c.b16 %v2639, %v2635
    %v2696 = vpack.c.b16 %v2640, %v2636
    %v2697 = vpack.c.b16 %v2641, %v2637
    %v2698 = vpack.c.b16 %v2646, %v2642
    %v2699 = vpack.c.b16 %v2647, %v2643
    %v2700 = vpack.c.b16 %v2648, %v2644
    %v2701 = vpack.c.b16 %v2649, %v2645
    %v2702 = vpack.c.b16 %v2654, %v2650
    %v2703 = vpack.c.b16 %v2655, %v2651
    %v2704 = vpack.c.b16 %v2656, %v2652
    %v2705 = vpack.c.b16 %v2657, %v2653
    %v2706 = vpack.c.b16 %v2662, %v2658
    %v2707 = vpack.c.b16 %v2663, %v2659
    %v2708 = vpack.c.b16 %v2664, %v2660
    %v2709 = vpack.c.b16 %v2665, %v2661
    %v2710 = vpack.c.b16 %v2670, %v2666
    %v2711 = vpack.c.b16 %v2671, %v2667
    %v2712 = vpack.c.b16 %v2672, %v2668
    %v2713 = vpack.c.b16 %v2673, %v2669
    %v2714 = vpack.c.b16 %v2678, %v2674
    %v2715 = vpack.c.b16 %v2679, %v2675
    %v2716 = vpack.c.b16 %v2680, %v2676
    %v2717 = vpack.c.b16 %v2681, %v2677
    %v2718 = vpack.c.b16 %v2686, %v2682
    %v2719 = vpack.c.b16 %v2687, %v2683
    %v2720 = vpack.c.b16 %v2688, %v2684
    %v2721 = vpack.c.b16 %v2689, %v2685
    %v2755 = vlaneseq
    %v2756 = vshrl.u32 %v2755, 7
    %v2757 = vsub.s32 0, %v2756
    %v2758 = vrot.slane %v2593, %v2757
    %v2759 = vlaneseq
    %v2760 = vshrl.u32 %v2759, 7
    %v2761 = vsub.s32 1, %v2760
    %v2762 = vrot.slane %v2593, %v2761
    %v2763 = vlaneseq
    %v2764 = vshrl.u32 %v2763, 7
    %v2765 = vsub.s32 2, %v2764
    %v2766 = vrot.slane %v2593, %v2765
    %v2767 = vlaneseq
    %v2768 = vshrl.u32 %v2767, 7
    %v2769 = vsub.s32 3, %v2768
    %v2770 = vrot.slane %v2593, %v2769
    %2775 = vmatprep.subr.bf16.mxu0 %v2691
    %2776 = vmatpush1.bf16.msra.mxu0 %v2690
    %2777 = vmatprep.subr.bf16.mxu0 %v2695
    %2778 = vmatpush1.bf16.msra.mxu0 %v2694
    %2779 = vmatprep.subr.bf16.mxu0 %v2699
    %2780 = vmatpush1.bf16.msra.mxu0 %v2698
    %2781 = vmatprep.subr.bf16.mxu0 %v2703
    %2782 = vmatpush1.bf16.msra.mxu0 %v2702
    %2783 = vmatprep.subr.bf16.mxu0 %v2707
    %2784 = vmatpush1.bf16.msra.mxu0 %v2706
    %2785 = vmatprep.subr.bf16.mxu0 %v2711
    %2786 = vmatpush1.bf16.msra.mxu0 %v2710
    %2787 = vmatprep.subr.bf16.mxu0 %v2715
    %2788 = vmatpush1.bf16.msra.mxu0 %v2714
    %2789 = vmatprep.subr.bf16.mxu0 %v2719
    %2790 = vmatpush1.bf16.msra.mxu0 %v2718
    %2791 = vmatprep.subr.bf16.mxu0 0
    %2792 = vmatpush1.bf16.msra.mxu0 0
    %2793 = vmatprep.subr.bf16.mxu0 0
    %2794 = vmatpush1.bf16.msra.mxu0 0
    %2795 = vmatprep.subr.bf16.mxu0 0
    %2796 = vmatpush1.bf16.msra.mxu0 0
    %2797 = vmatprep.subr.bf16.mxu0 0
    %2798 = vmatpush1.bf16.msra.mxu0 0
    %2799 = vmatprep.subr.bf16.mxu0 0
    %2800 = vmatpush1.bf16.msra.mxu0 0
    %2801 = vmatprep.subr.bf16.mxu0 0
    %2802 = vmatpush1.bf16.msra.mxu0 0
    %2803 = vmatprep.subr.bf16.mxu0 0
    %2804 = vmatpush1.bf16.msra.mxu0 0
    %2805 = vmatprep.subr.bf16.mxu0 0
    %2806 = vmatpush1.bf16.msra.mxu0 0
    %2807 = vmatprep.mubr.bf16.mxu0 0
    %2808 = vmatmul.mubr.bf16.gmra.mrb[0].mxu0 %v2560
    %v2809 = vpop.f32.mrb[0].mxu0
    %v2810 = vadd.f32 %v2758, %v2809
    %v2811 = vpop.f32.mrb[0].mxu0
    %v2812 = vadd.f32 %v2762, %v2811
    %v2813 = vpop.f32.mrb[0].mxu0
    %v2814 = vpop.f32.mrb[0].mxu0
    %2815 = vdwg.mxu0
    %2816 = vmatprep.subr.bf16.mxu0 %v2693
    %2817 = vmatpush1.bf16.msra.mxu0 %v2692
    %2818 = vmatprep.subr.bf16.mxu0 %v2697
    %2819 = vmatpush1.bf16.msra.mxu0 %v2696
    %2820 = vmatprep.subr.bf16.mxu0 %v2701
    %2821 = vmatpush1.bf16.msra.mxu0 %v2700
    %2822 = vmatprep.subr.bf16.mxu0 %v2705
    %2823 = vmatpush1.bf16.msra.mxu0 %v2704
    %2824 = vmatprep.subr.bf16.mxu0 %v2709
    %2825 = vmatpush1.bf16.msra.mxu0 %v2708
    %2826 = vmatprep.subr.bf16.mxu0 %v2713
    %2827 = vmatpush1.bf16.msra.mxu0 %v2712
    %2828 = vmatprep.subr.bf16.mxu0 %v2717
    %2829 = vmatpush1.bf16.msra.mxu0 %v2716
    %2830 = vmatprep.subr.bf16.mxu0 %v2721
    %2831 = vmatpush1.bf16.msra.mxu0 %v2720
    %2832 = vmatprep.subr.bf16.mxu0 0
    %2833 = vmatpush1.bf16.msra.mxu0 0
    %2834 = vmatprep.subr.bf16.mxu0 0
    %2835 = vmatpush1.bf16.msra.mxu0 0
    %2836 = vmatprep.subr.bf16.mxu0 0
    %2837 = vmatpush1.bf16.msra.mxu0 0
    %2838 = vmatprep.subr.bf16.mxu0 0
    %2839 = vmatpush1.bf16.msra.mxu0 0
    %2840 = vmatprep.subr.bf16.mxu0 0
    %2841 = vmatpush1.bf16.msra.mxu0 0
    %2842 = vmatprep.subr.bf16.mxu0 0
    %2843 = vmatpush1.bf16.msra.mxu0 0
    %2844 = vmatprep.subr.bf16.mxu0 0
    %2845 = vmatpush1.bf16.msra.mxu0 0
    %2846 = vmatprep.subr.bf16.mxu0 0
    %2847 = vmatpush1.bf16.msra.mxu0 0
    %2848 = vmatprep.mubr.bf16.mxu0 0
    %2849 = vmatmul.mubr.bf16.gmra.mrb[0].mxu0 %v2560
    %v2850 = vpop.f32.mrb[0].mxu0
    %v2851 = vadd.f32 %v2766, %v2850
    %v2852 = vpop.f32.mrb[0].mxu0
    %v2853 = vadd.f32 %v2770, %v2852
    %v2854 = vpop.f32.mrb[0].mxu0
    %v2855 = vpop.f32.mrb[0].mxu0
    %2856 = vdwg.mxu0
    %v2857 = vlaneseq
    %v2858 = vshrl.u32 %v2857, 7
    %v2859 = vsub.s32 0, %v2858
    %v2860 = vrot.slane %v2810, %v2859
    %v2861 = vlaneseq
    %v2862 = vshrl.u32 %v2861, 7
    %v2863 = vsub.s32 0, %v2862
    %v2864 = vrot.slane %v2812, %v2863
    %v2865 = vlaneseq
    %v2866 = vshrl.u32 %v2865, 7
    %v2867 = vsub.s32 0, %v2866
    %v2868 = vrot.slane %v2851, %v2867
    %v2869 = vlaneseq
    %v2870 = vshrl.u32 %v2869, 7
    %v2871 = vsub.s32 0, %v2870
    %v2872 = vrot.slane %v2853, %v2871
    %v2873 = vpack.c.bf16 %v2520, %v2520
    %v2874 = vpack.c.bf16 %v2521, %v2521
    %v2875 = vpack.c.bf16 %v2522, %v2522
    %v2876 = vpack.c.bf16 %v2523, %v2523
    %v2881 = vunpack.c.l.b16 %v2873
    %v2882 = vunpack.c.l.b16 %v2874
    %v2883 = vunpack.c.l.b16 %v2875
    %v2884 = vunpack.c.l.b16 %v2876
    %v2885 = vrot.slane %v2881, 7
    %v2886 = vrot.slane %v2882, 6
    %v2887 = vsel %vm685, %v2886, %v2885
    %v2888 = vrot.slane %v2883, 5
    %v2889 = vsel %vm688, %v2888, %v2887
    %v2890 = vrot.slane %v2884, 4
    %v2891 = vsel %vm691, %v2890, %v2889
    %v2892 = vpack.c.b16 %v2891, %v2891
    %v2926 = vunpack.c.l.b16 %v2528
    %v2927 = vunpack.c.h.b16 %v2528
    %v2928 = vunpack.c.l.b16 %v2529
    %v2929 = vunpack.c.h.b16 %v2529
    %v2930 = vunpack.c.l.b16 %v2530
    %v2931 = vunpack.c.h.b16 %v2530
    %v2932 = vunpack.c.l.b16 %v2531
    %v2933 = vunpack.c.h.b16 %v2531
    %v2934 = vunpack.c.l.b16 %v2532
    %v2935 = vunpack.c.h.b16 %v2532
    %v2936 = vunpack.c.l.b16 %v2533
    %v2937 = vunpack.c.h.b16 %v2533
    %v2938 = vunpack.c.l.b16 %v2534
    %v2939 = vunpack.c.h.b16 %v2534
    %v2940 = vunpack.c.l.b16 %v2535
    %v2941 = vunpack.c.h.b16 %v2535
    %v2942 = vunpack.c.l.b16 %v2536
    %v2943 = vunpack.c.h.b16 %v2536
    %v2944 = vunpack.c.l.b16 %v2537
    %v2945 = vunpack.c.h.b16 %v2537
    %v2946 = vunpack.c.l.b16 %v2538
    %v2947 = vunpack.c.h.b16 %v2538
    %v2948 = vunpack.c.l.b16 %v2539
    %v2949 = vunpack.c.h.b16 %v2539
    %v2950 = vunpack.c.l.b16 %v2540
    %v2951 = vunpack.c.h.b16 %v2540
    %v2952 = vunpack.c.l.b16 %v2541
    %v2953 = vunpack.c.h.b16 %v2541
    %v2954 = vunpack.c.l.b16 %v2542
    %v2955 = vunpack.c.h.b16 %v2542
    %v2956 = vunpack.c.l.b16 %v2543
    %v2957 = vunpack.c.h.b16 %v2543
    %v2958 = vunpack.c.l.b16 %v2544
    %v2959 = vunpack.c.h.b16 %v2544
    %v2960 = vunpack.c.l.b16 %v2545
    %v2961 = vunpack.c.h.b16 %v2545
    %v2962 = vunpack.c.l.b16 %v2546
    %v2963 = vunpack.c.h.b16 %v2546
    %v2964 = vunpack.c.l.b16 %v2547
    %v2965 = vunpack.c.h.b16 %v2547
    %v2966 = vunpack.c.l.b16 %v2548
    %v2967 = vunpack.c.h.b16 %v2548
    %v2968 = vunpack.c.l.b16 %v2549
    %v2969 = vunpack.c.h.b16 %v2549
    %v2970 = vunpack.c.l.b16 %v2550
    %v2971 = vunpack.c.h.b16 %v2550
    %v2972 = vunpack.c.l.b16 %v2551
    %v2973 = vunpack.c.h.b16 %v2551
    %v2974 = vunpack.c.l.b16 %v2552
    %v2975 = vunpack.c.h.b16 %v2552
    %v2976 = vunpack.c.l.b16 %v2553
    %v2977 = vunpack.c.h.b16 %v2553
    %v2978 = vunpack.c.l.b16 %v2554
    %v2979 = vunpack.c.h.b16 %v2554
    %v2980 = vunpack.c.l.b16 %v2555
    %v2981 = vunpack.c.h.b16 %v2555
    %v2982 = vunpack.c.l.b16 %v2556
    %v2983 = vunpack.c.h.b16 %v2556
    %v2984 = vunpack.c.l.b16 %v2557
    %v2985 = vunpack.c.h.b16 %v2557
    %v2986 = vunpack.c.l.b16 %v2558
    %v2987 = vunpack.c.h.b16 %v2558
    %v2988 = vunpack.c.l.b16 %v2559
    %v2989 = vunpack.c.h.b16 %v2559
    %v2990 = vpack.c.b16 %v2930, %v2926
    %v2991 = vpack.c.b16 %v2931, %v2927
    %v2992 = vpack.c.b16 %v2932, %v2928
    %v2993 = vpack.c.b16 %v2933, %v2929
    %v2994 = vpack.c.b16 %v2938, %v2934
    %v2995 = vpack.c.b16 %v2939, %v2935
    %v2996 = vpack.c.b16 %v2940, %v2936
    %v2997 = vpack.c.b16 %v2941, %v2937
    %v2998 = vpack.c.b16 %v2946, %v2942
    %v2999 = vpack.c.b16 %v2947, %v2943
    %v3000 = vpack.c.b16 %v2948, %v2944
    %v3001 = vpack.c.b16 %v2949, %v2945
    %v3002 = vpack.c.b16 %v2954, %v2950
    %v3003 = vpack.c.b16 %v2955, %v2951
    %v3004 = vpack.c.b16 %v2956, %v2952
    %v3005 = vpack.c.b16 %v2957, %v2953
    %v3006 = vpack.c.b16 %v2962, %v2958
    %v3007 = vpack.c.b16 %v2963, %v2959
    %v3008 = vpack.c.b16 %v2964, %v2960
    %v3009 = vpack.c.b16 %v2965, %v2961
    %v3010 = vpack.c.b16 %v2970, %v2966
    %v3011 = vpack.c.b16 %v2971, %v2967
    %v3012 = vpack.c.b16 %v2972, %v2968
    %v3013 = vpack.c.b16 %v2973, %v2969
    %v3014 = vpack.c.b16 %v2978, %v2974
    %v3015 = vpack.c.b16 %v2979, %v2975
    %v3016 = vpack.c.b16 %v2980, %v2976
    %v3017 = vpack.c.b16 %v2981, %v2977
    %v3018 = vpack.c.b16 %v2986, %v2982
    %v3019 = vpack.c.b16 %v2987, %v2983
    %v3020 = vpack.c.b16 %v2988, %v2984
    %v3021 = vpack.c.b16 %v2989, %v2985
    %3054 = vmatprep.subr.bf16.mxu0 %v2991
    %3055 = vmatpush1.bf16.msra.mxu0 %v2990
    %3056 = vmatprep.subr.bf16.mxu0 %v2995
    %3057 = vmatpush1.bf16.msra.mxu0 %v2994
    %3058 = vmatprep.subr.bf16.mxu0 %v2999
    %3059 = vmatpush1.bf16.msra.mxu0 %v2998
    %3060 = vmatprep.subr.bf16.mxu0 %v3003
    %3061 = vmatpush1.bf16.msra.mxu0 %v3002
    %3062 = vmatprep.subr.bf16.mxu0 %v3007
    %3063 = vmatpush1.bf16.msra.mxu0 %v3006
    %3064 = vmatprep.subr.bf16.mxu0 %v3011
    %3065 = vmatpush1.bf16.msra.mxu0 %v3010
    %3066 = vmatprep.subr.bf16.mxu0 %v3015
    %3067 = vmatpush1.bf16.msra.mxu0 %v3014
    %3068 = vmatprep.subr.bf16.mxu0 %v3019
    %3069 = vmatpush1.bf16.msra.mxu0 %v3018
    %3070 = vmatprep.subr.bf16.mxu0 0
    %3071 = vmatpush1.bf16.msra.mxu0 0
    %3072 = vmatprep.subr.bf16.mxu0 0
    %3073 = vmatpush1.bf16.msra.mxu0 0
    %3074 = vmatprep.subr.bf16.mxu0 0
    %3075 = vmatpush1.bf16.msra.mxu0 0
    %3076 = vmatprep.subr.bf16.mxu0 0
    %3077 = vmatpush1.bf16.msra.mxu0 0
    %3078 = vmatprep.subr.bf16.mxu0 0
    %3079 = vmatpush1.bf16.msra.mxu0 0
    %3080 = vmatprep.subr.bf16.mxu0 0
    %3081 = vmatpush1.bf16.msra.mxu0 0
    %3082 = vmatprep.subr.bf16.mxu0 0
    %3083 = vmatpush1.bf16.msra.mxu0 0
    %3084 = vmatprep.subr.bf16.mxu0 0
    %3085 = vmatpush1.bf16.msra.mxu0 0
    %3086 = vmatprep.mubr.bf16.mxu0 0
    %3087 = vmatmul.mubr.bf16.gmra.mrb[0].mxu0 %v2892
    %v3088 = vpop.f32.mrb[0].mxu0
    %v3089 = vadd.f32 0.0, %v3088
    %v3090 = vpop.f32.mrb[0].mxu0
    %v3091 = vadd.f32 0.0, %v3090
    %v3092 = vpop.f32.mrb[0].mxu0
    %v3093 = vpop.f32.mrb[0].mxu0
    %3094 = vdwg.mxu0
    %3095 = vmatprep.subr.bf16.mxu0 %v2993
    %3096 = vmatpush1.bf16.msra.mxu0 %v2992
    %3097 = vmatprep.subr.bf16.mxu0 %v2997
    %3098 = vmatpush1.bf16.msra.mxu0 %v2996
    %3099 = vmatprep.subr.bf16.mxu0 %v3001
    %3100 = vmatpush1.bf16.msra.mxu0 %v3000
    %3101 = vmatprep.subr.bf16.mxu0 %v3005
    %3102 = vmatpush1.bf16.msra.mxu0 %v3004
    %3103 = vmatprep.subr.bf16.mxu0 %v3009
    %3104 = vmatpush1.bf16.msra.mxu0 %v3008
    %3105 = vmatprep.subr.bf16.mxu0 %v3013
    %3106 = vmatpush1.bf16.msra.mxu0 %v3012
    %3107 = vmatprep.subr.bf16.mxu0 %v3017
    %3108 = vmatpush1.bf16.msra.mxu0 %v3016
    %3109 = vmatprep.subr.bf16.mxu0 %v3021
    %3110 = vmatpush1.bf16.msra.mxu0 %v3020
    %3111 = vmatprep.subr.bf16.mxu0 0
    %3112 = vmatpush1.bf16.msra.mxu0 0
    %3113 = vmatprep.subr.bf16.mxu0 0
    %3114 = vmatpush1.bf16.msra.mxu0 0
    %3115 = vmatprep.subr.bf16.mxu0 0
    %3116 = vmatpush1.bf16.msra.mxu0 0
    %3117 = vmatprep.subr.bf16.mxu0 0
    %3118 = vmatpush1.bf16.msra.mxu0 0
    %3119 = vmatprep.subr.bf16.mxu0 0
    %3120 = vmatpush1.bf16.msra.mxu0 0
    %3121 = vmatprep.subr.bf16.mxu0 0
    %3122 = vmatpush1.bf16.msra.mxu0 0
    %3123 = vmatprep.subr.bf16.mxu0 0
    %3124 = vmatpush1.bf16.msra.mxu0 0
    %3125 = vmatprep.subr.bf16.mxu0 0
    %3126 = vmatpush1.bf16.msra.mxu0 0
    %3127 = vmatprep.mubr.bf16.mxu0 0
    %3128 = vmatmul.mubr.bf16.gmra.mrb[0].mxu0 %v2892
    %v3129 = vpop.f32.mrb[0].mxu0
    %v3130 = vadd.f32 0.0, %v3129
    %v3131 = vpop.f32.mrb[0].mxu0
    %v3132 = vadd.f32 0.0, %v3131
    %v3133 = vpop.f32.mrb[0].mxu0
    %v3134 = vpop.f32.mrb[0].mxu0
    %3135 = vdwg.mxu0
    %v3136 = vadd.f32 %v2860, %v3089
    %v3137 = vadd.f32 %v2864, %v3091
    %v3138 = vadd.f32 %v2868, %v3130
    %v3139 = vadd.f32 %v2872, %v3132
    %v3140 = vxor.u32 %v3136, 2147483648
    %v3141 = vxor.u32 %v3137, 2147483648
    %v3142 = vxor.u32 %v3138, 2147483648
    %v3143 = vmul.f32 %v3140, 1.442695
    %v3144 = vpow.pop %v3143
    %v3145 = vmul.f32 %v3141, 1.442695
    %v3146 = vpow.pop %v3145
    %v3147 = vmul.f32 %v3142, 1.442695
    %v3148 = vpow.pop %v3147
    %v3149 = vadd.f32 %v3144, 1.0
    %v3150 = vadd.f32 %v3146, 1.0
    %v3151 = vadd.f32 %v3148, 1.0
    %v3152 = vrcp.pop %v3149
    %v3153 = vmul.f32 1.0, %v3152
    %v3154 = vrcp.pop %v3150
    %v3155 = vmul.f32 1.0, %v3154
    %v3156 = vrcp.pop %v3151
    %v3157 = vmul.f32 1.0, %v3156
    %v3158 = vtanh.pop %v3139
    %v3163 = vrot.slane %v2512, 7
    %v3164 = vrot.slane %v2513, 6
    %v3165 = vsel %vm685, %v3164, %v3163
    %v3166 = vrot.slane %v2514, 5
    %v3167 = vsel %vm688, %v3166, %v3165
    %v3168 = vrot.slane %v2515, 4
    %v3169 = vsel %vm691, %v3168, %v3167
    %v3171 = vmul.f32 %v3155, %v3169
    %v3172 = vmul.f32 %v3153, %v3158
    %v3173 = vadd.f32 %v3171, %v3172
    %v3174 = vtanh.pop %v3173
    %v3175 = vmul.f32 %v3157, %v3174
    %v3176 = vpack.c.bf16 %v3175, %v3175
    %3177 = vmatprep.subr.bf16.mxu0 %v2991
    %3178 = vmatpush1.bf16.msra.mxu0 %v2990
    %3179 = vmatprep.subr.bf16.mxu0 %v2995
    %3180 = vmatpush1.bf16.msra.mxu0 %v2994
    %3181 = vmatprep.subr.bf16.mxu0 %v2999
    %3182 = vmatpush1.bf16.msra.mxu0 %v2998
    %3183 = vmatprep.subr.bf16.mxu0 %v3003
    %3184 = vmatpush1.bf16.msra.mxu0 %v3002
    %3185 = vmatprep.subr.bf16.mxu0 %v3007
    %3186 = vmatpush1.bf16.msra.mxu0 %v3006
    %3187 = vmatprep.subr.bf16.mxu0 %v3011
    %3188 = vmatpush1.bf16.msra.mxu0 %v3010
    %3189 = vmatprep.subr.bf16.mxu0 %v3015
    %3190 = vmatpush1.bf16.msra.mxu0 %v3014
    %3191 = vmatprep.subr.bf16.mxu0 %v3019
    %3192 = vmatpush1.bf16.msra.mxu0 %v3018
    %3193 = vmatprep.subr.bf16.mxu0 0
    %3194 = vmatpush1.bf16.msra.mxu0 0
    %3195 = vmatprep.subr.bf16.mxu0 0
    %3196 = vmatpush1.bf16.msra.mxu0 0
    %3197 = vmatprep.subr.bf16.mxu0 0
    %3198 = vmatpush1.bf16.msra.mxu0 0
    %3199 = vmatprep.subr.bf16.mxu0 0
    %3200 = vmatpush1.bf16.msra.mxu0 0
    %3201 = vmatprep.subr.bf16.mxu0 0
    %3202 = vmatpush1.bf16.msra.mxu0 0
    %3203 = vmatprep.subr.bf16.mxu0 0
    %3204 = vmatpush1.bf16.msra.mxu0 0
    %3205 = vmatprep.subr.bf16.mxu0 0
    %3206 = vmatpush1.bf16.msra.mxu0 0
    %3207 = vmatprep.subr.bf16.mxu0 0
    %3208 = vmatpush1.bf16.msra.mxu0 0
    %3209 = vmatprep.mubr.bf16.mxu0 0
    %3210 = vmatmul.mubr.bf16.gmra.mrb[0].mxu0 %v3176
    %v3211 = vpop.f32.mrb[0].mxu0
    %v3212 = vadd.f32 0.0, %v3211
    %v3213 = vpop.f32.mrb[0].mxu0
    %v3214 = vadd.f32 0.0, %v3213
    %v3215 = vpop.f32.mrb[0].mxu0
    %v3216 = vpop.f32.mrb[0].mxu0
    %3217 = vdwg.mxu0
    %3218 = vmatprep.subr.bf16.mxu0 %v2993
    %3219 = vmatpush1.bf16.msra.mxu0 %v2992
    %3220 = vmatprep.subr.bf16.mxu0 %v2997
    %3221 = vmatpush1.bf16.msra.mxu0 %v2996
    %3222 = vmatprep.subr.bf16.mxu0 %v3001
    %3223 = vmatpush1.bf16.msra.mxu0 %v3000
    %3224 = vmatprep.subr.bf16.mxu0 %v3005
    %3225 = vmatpush1.bf16.msra.mxu0 %v3004
    %3226 = vmatprep.subr.bf16.mxu0 %v3009
    %3227 = vmatpush1.bf16.msra.mxu0 %v3008
    %3228 = vmatprep.subr.bf16.mxu0 %v3013
    %3229 = vmatpush1.bf16.msra.mxu0 %v3012
    %3230 = vmatprep.subr.bf16.mxu0 %v3017
    %3231 = vmatpush1.bf16.msra.mxu0 %v3016
    %3232 = vmatprep.subr.bf16.mxu0 %v3021
    %3233 = vmatpush1.bf16.msra.mxu0 %v3020
    %3234 = vmatprep.subr.bf16.mxu0 0
    %3235 = vmatpush1.bf16.msra.mxu0 0
    %3236 = vmatprep.subr.bf16.mxu0 0
    %3237 = vmatpush1.bf16.msra.mxu0 0
    %3238 = vmatprep.subr.bf16.mxu0 0
    %3239 = vmatpush1.bf16.msra.mxu0 0
    %3240 = vmatprep.subr.bf16.mxu0 0
    %3241 = vmatpush1.bf16.msra.mxu0 0
    %3242 = vmatprep.subr.bf16.mxu0 0
    %3243 = vmatpush1.bf16.msra.mxu0 0
    %3244 = vmatprep.subr.bf16.mxu0 0
    %3245 = vmatpush1.bf16.msra.mxu0 0
    %3246 = vmatprep.subr.bf16.mxu0 0
    %3247 = vmatpush1.bf16.msra.mxu0 0
    %3248 = vmatprep.subr.bf16.mxu0 0
    %3249 = vmatpush1.bf16.msra.mxu0 0
    %3250 = vmatprep.mubr.bf16.mxu0 0
    %3251 = vmatmul.mubr.bf16.gmra.mrb[0].mxu0 %v3176
    %v3252 = vpop.f32.mrb[0].mxu0
    %v3253 = vadd.f32 0.0, %v3252
    %v3254 = vpop.f32.mrb[0].mxu0
    %v3255 = vadd.f32 0.0, %v3254
    %v3256 = vpop.f32.mrb[0].mxu0
    %v3257 = vpop.f32.mrb[0].mxu0
    %3258 = vdwg.mxu0
    %v3259 = vadd.f32 %v2860, %v3212
    %v3260 = vadd.f32 %v2864, %v3214
    %v3261 = vadd.f32 %v2868, %v3253
    %v3262 = vadd.f32 %v2872, %v3255
    %v3263 = vxor.u32 %v3259, 2147483648
    %v3264 = vxor.u32 %v3260, 2147483648
    %v3265 = vxor.u32 %v3261, 2147483648
    %v3266 = vmul.f32 %v3263, 1.442695
    %v3267 = vpow.pop %v3266
    %v3268 = vmul.f32 %v3264, 1.442695
    %v3269 = vpow.pop %v3268
    %v3270 = vmul.f32 %v3265, 1.442695
    %v3271 = vpow.pop %v3270
    %v3272 = vadd.f32 %v3267, 1.0
    %v3273 = vadd.f32 %v3269, 1.0
    %v3274 = vadd.f32 %v3271, 1.0
    %v3275 = vrcp.pop %v3272
    %v3276 = vmul.f32 1.0, %v3275
    %v3277 = vrcp.pop %v3273
    %v3278 = vmul.f32 1.0, %v3277
    %v3279 = vrcp.pop %v3274
    %v3280 = vmul.f32 1.0, %v3279
    %v3281 = vtanh.pop %v3262
    %v3282 = vmul.f32 %v3278, %v3173
    %v3283 = vmul.f32 %v3276, %v3281
    %v3284 = vadd.f32 %v3282, %v3283
    %v3285 = vtanh.pop %v3284
    %v3286 = vmul.f32 %v3280, %v3285
    %v3287 = vpack.c.bf16 %v3286, %v3286
    %3288 = vmatprep.subr.bf16.mxu0 %v2991
    %3289 = vmatpush1.bf16.msra.mxu0 %v2990
    %3290 = vmatprep.subr.bf16.mxu0 %v2995
    %3291 = vmatpush1.bf16.msra.mxu0 %v2994
    %3292 = vmatprep.subr.bf16.mxu0 %v2999
    %3293 = vmatpush1.bf16.msra.mxu0 %v2998
    %3294 = vmatprep.subr.bf16.mxu0 %v3003
    %3295 = vmatpush1.bf16.msra.mxu0 %v3002
    %3296 = vmatprep.subr.bf16.mxu0 %v3007
    %3297 = vmatpush1.bf16.msra.mxu0 %v3006
    %3298 = vmatprep.subr.bf16.mxu0 %v3011
    %3299 = vmatpush1.bf16.msra.mxu0 %v3010
    %3300 = vmatprep.subr.bf16.mxu0 %v3015
    %3301 = vmatpush1.bf16.msra.mxu0 %v3014
    %3302 = vmatprep.subr.bf16.mxu0 %v3019
    %3303 = vmatpush1.bf16.msra.mxu0 %v3018
    %3304 = vmatprep.subr.bf16.mxu0 0
    %3305 = vmatpush1.bf16.msra.mxu0 0
    %3306 = vmatprep.subr.bf16.mxu0 0
    %3307 = vmatpush1.bf16.msra.mxu0 0
    %3308 = vmatprep.subr.bf16.mxu0 0
    %3309 = vmatpush1.bf16.msra.mxu0 0
    %3310 = vmatprep.subr.bf16.mxu0 0
    %3311 = vmatpush1.bf16.msra.mxu0 0
    %3312 = vmatprep.subr.bf16.mxu0 0
    %3313 = vmatpush1.bf16.msra.mxu0 0
    %3314 = vmatprep.subr.bf16.mxu0 0
    %3315 = vmatpush1.bf16.msra.mxu0 0
    %3316 = vmatprep.subr.bf16.mxu0 0
    %3317 = vmatpush1.bf16.msra.mxu0 0
    %3318 = vmatprep.subr.bf16.mxu0 0
    %3319 = vmatpush1.bf16.msra.mxu0 0
    %3320 = vmatprep.mubr.bf16.mxu0 0
    %3321 = vmatmul.mubr.bf16.gmra.mrb[0].mxu0 %v3287
    %v3322 = vpop.f32.mrb[0].mxu0
    %v3323 = vadd.f32 0.0, %v3322
    %v3324 = vpop.f32.mrb[0].mxu0
    %v3325 = vadd.f32 0.0, %v3324
    %v3326 = vpop.f32.mrb[0].mxu0
    %v3327 = vpop.f32.mrb[0].mxu0
    %3328 = vdwg.mxu0
    %3329 = vmatprep.subr.bf16.mxu0 %v2993
    %3330 = vmatpush1.bf16.msra.mxu0 %v2992
    %3331 = vmatprep.subr.bf16.mxu0 %v2997
    %3332 = vmatpush1.bf16.msra.mxu0 %v2996
    %3333 = vmatprep.subr.bf16.mxu0 %v3001
    %3334 = vmatpush1.bf16.msra.mxu0 %v3000
    %3335 = vmatprep.subr.bf16.mxu0 %v3005
    %3336 = vmatpush1.bf16.msra.mxu0 %v3004
    %3337 = vmatprep.subr.bf16.mxu0 %v3009
    %3338 = vmatpush1.bf16.msra.mxu0 %v3008
    %3339 = vmatprep.subr.bf16.mxu0 %v3013
    %3340 = vmatpush1.bf16.msra.mxu0 %v3012
    %3341 = vmatprep.subr.bf16.mxu0 %v3017
    %3342 = vmatpush1.bf16.msra.mxu0 %v3016
    %3343 = vmatprep.subr.bf16.mxu0 %v3021
    %3344 = vmatpush1.bf16.msra.mxu0 %v3020
    %3345 = vmatprep.subr.bf16.mxu0 0
    %3346 = vmatpush1.bf16.msra.mxu0 0
    %3347 = vmatprep.subr.bf16.mxu0 0
    %3348 = vmatpush1.bf16.msra.mxu0 0
    %3349 = vmatprep.subr.bf16.mxu0 0
    %3350 = vmatpush1.bf16.msra.mxu0 0
    %3351 = vmatprep.subr.bf16.mxu0 0
    %3352 = vmatpush1.bf16.msra.mxu0 0
    %3353 = vmatprep.subr.bf16.mxu0 0
    %3354 = vmatpush1.bf16.msra.mxu0 0
    %3355 = vmatprep.subr.bf16.mxu0 0
    %3356 = vmatpush1.bf16.msra.mxu0 0
    %3357 = vmatprep.subr.bf16.mxu0 0
    %3358 = vmatpush1.bf16.msra.mxu0 0
    %3359 = vmatprep.subr.bf16.mxu0 0
    %3360 = vmatpush1.bf16.msra.mxu0 0
    %3361 = vmatprep.mubr.bf16.mxu0 0
    %3362 = vmatmul.mubr.bf16.gmra.mrb[0].mxu0 %v3287
    %v3363 = vpop.f32.mrb[0].mxu0
    %v3364 = vadd.f32 0.0, %v3363
    %v3365 = vpop.f32.mrb[0].mxu0
    %v3366 = vadd.f32 0.0, %v3365
    %v3367 = vpop.f32.mrb[0].mxu0
    %v3368 = vpop.f32.mrb[0].mxu0
    %3369 = vdwg.mxu0
    %v3370 = vadd.f32 %v2860, %v3323
    %v3371 = vadd.f32 %v2864, %v3325
    %v3372 = vadd.f32 %v2868, %v3364
    %v3373 = vadd.f32 %v2872, %v3366
    %v3374 = vxor.u32 %v3370, 2147483648
    %v3375 = vxor.u32 %v3371, 2147483648
    %v3376 = vxor.u32 %v3372, 2147483648
    %v3377 = vmul.f32 %v3374, 1.442695
    %v3378 = vpow.pop %v3377
    %v3379 = vmul.f32 %v3375, 1.442695
    %v3380 = vpow.pop %v3379
    %v3381 = vmul.f32 %v3376, 1.442695
    %v3382 = vpow.pop %v3381
    %v3383 = vadd.f32 %v3378, 1.0
    %v3384 = vadd.f32 %v3380, 1.0
    %v3385 = vadd.f32 %v3382, 1.0
    %v3386 = vrcp.pop %v3383
    %v3387 = vmul.f32 1.0, %v3386
    %v3388 = vrcp.pop %v3384
    %v3389 = vmul.f32 1.0, %v3388
    %v3390 = vrcp.pop %v3385
    %v3391 = vmul.f32 1.0, %v3390
    %v3392 = vtanh.pop %v3373
    %v3393 = vmul.f32 %v3389, %v3284
    %v3394 = vmul.f32 %v3387, %v3392
    %v3395 = vadd.f32 %v3393, %v3394
    %v3396 = vtanh.pop %v3395
    %v3397 = vmul.f32 %v3391, %v3396
    %v3398 = vpack.c.bf16 %v3397, %v3397
    %3399 = vmatprep.subr.bf16.mxu0 %v2991
    %3400 = vmatpush1.bf16.msra.mxu0 %v2990
    %3401 = vmatprep.subr.bf16.mxu0 %v2995
    %3402 = vmatpush1.bf16.msra.mxu0 %v2994
    %3403 = vmatprep.subr.bf16.mxu0 %v2999
    %3404 = vmatpush1.bf16.msra.mxu0 %v2998
    %3405 = vmatprep.subr.bf16.mxu0 %v3003
    %3406 = vmatpush1.bf16.msra.mxu0 %v3002
    %3407 = vmatprep.subr.bf16.mxu0 %v3007
    %3408 = vmatpush1.bf16.msra.mxu0 %v3006
    %3409 = vmatprep.subr.bf16.mxu0 %v3011
    %3410 = vmatpush1.bf16.msra.mxu0 %v3010
    %3411 = vmatprep.subr.bf16.mxu0 %v3015
    %3412 = vmatpush1.bf16.msra.mxu0 %v3014
    %3413 = vmatprep.subr.bf16.mxu0 %v3019
    %3414 = vmatpush1.bf16.msra.mxu0 %v3018
    %3415 = vmatprep.subr.bf16.mxu0 0
    %3416 = vmatpush1.bf16.msra.mxu0 0
    %3417 = vmatprep.subr.bf16.mxu0 0
    %3418 = vmatpush1.bf16.msra.mxu0 0
    %3419 = vmatprep.subr.bf16.mxu0 0
    %3420 = vmatpush1.bf16.msra.mxu0 0
    %3421 = vmatprep.subr.bf16.mxu0 0
    %3422 = vmatpush1.bf16.msra.mxu0 0
    %3423 = vmatprep.subr.bf16.mxu0 0
    %3424 = vmatpush1.bf16.msra.mxu0 0
    %3425 = vmatprep.subr.bf16.mxu0 0
    %3426 = vmatpush1.bf16.msra.mxu0 0
    %3427 = vmatprep.subr.bf16.mxu0 0
    %3428 = vmatpush1.bf16.msra.mxu0 0
    %3429 = vmatprep.subr.bf16.mxu0 0
    %3430 = vmatpush1.bf16.msra.mxu0 0
    %3431 = vmatprep.mubr.bf16.mxu0 0
    %3432 = vmatmul.mubr.bf16.gmra.mrb[0].mxu0 %v3398
    %v3433 = vpop.f32.mrb[0].mxu0
    %v3434 = vadd.f32 0.0, %v3433
    %v3435 = vpop.f32.mrb[0].mxu0
    %v3436 = vadd.f32 0.0, %v3435
    %v3437 = vpop.f32.mrb[0].mxu0
    %v3438 = vpop.f32.mrb[0].mxu0
    %3439 = vdwg.mxu0
    %3440 = vmatprep.subr.bf16.mxu0 %v2993
    %3441 = vmatpush1.bf16.msra.mxu0 %v2992
    %3442 = vmatprep.subr.bf16.mxu0 %v2997
    %3443 = vmatpush1.bf16.msra.mxu0 %v2996
    %3444 = vmatprep.subr.bf16.mxu0 %v3001
    %3445 = vmatpush1.bf16.msra.mxu0 %v3000
    %3446 = vmatprep.subr.bf16.mxu0 %v3005
    %3447 = vmatpush1.bf16.msra.mxu0 %v3004
    %3448 = vmatprep.subr.bf16.mxu0 %v3009
    %3449 = vmatpush1.bf16.msra.mxu0 %v3008
    %3450 = vmatprep.subr.bf16.mxu0 %v3013
    %3451 = vmatpush1.bf16.msra.mxu0 %v3012
    %3452 = vmatprep.subr.bf16.mxu0 %v3017
    %3453 = vmatpush1.bf16.msra.mxu0 %v3016
    %3454 = vmatprep.subr.bf16.mxu0 %v3021
    %3455 = vmatpush1.bf16.msra.mxu0 %v3020
    %3456 = vmatprep.subr.bf16.mxu0 0
    %3457 = vmatpush1.bf16.msra.mxu0 0
    %3458 = vmatprep.subr.bf16.mxu0 0
    %3459 = vmatpush1.bf16.msra.mxu0 0
    %3460 = vmatprep.subr.bf16.mxu0 0
    %3461 = vmatpush1.bf16.msra.mxu0 0
    %3462 = vmatprep.subr.bf16.mxu0 0
    %3463 = vmatpush1.bf16.msra.mxu0 0
    %3464 = vmatprep.subr.bf16.mxu0 0
    %3465 = vmatpush1.bf16.msra.mxu0 0
    %3466 = vmatprep.subr.bf16.mxu0 0
    %3467 = vmatpush1.bf16.msra.mxu0 0
    %3468 = vmatprep.subr.bf16.mxu0 0
    %3469 = vmatpush1.bf16.msra.mxu0 0
    %3470 = vmatprep.subr.bf16.mxu0 0
    %3471 = vmatpush1.bf16.msra.mxu0 0
    %3472 = vmatprep.mubr.bf16.mxu0 0
    %3473 = vmatmul.mubr.bf16.gmra.mrb[0].mxu0 %v3398
    %v3474 = vpop.f32.mrb[0].mxu0
    %v3475 = vadd.f32 0.0, %v3474
    %v3476 = vpop.f32.mrb[0].mxu0
    %v3477 = vadd.f32 0.0, %v3476
    %v3478 = vpop.f32.mrb[0].mxu0
    %v3479 = vpop.f32.mrb[0].mxu0
    %3480 = vdwg.mxu0
    %v3481 = vadd.f32 %v2860, %v3434
    %v3482 = vadd.f32 %v2864, %v3436
    %v3483 = vadd.f32 %v2868, %v3475
    %v3484 = vadd.f32 %v2872, %v3477
    %v3485 = vxor.u32 %v3481, 2147483648
    %v3486 = vxor.u32 %v3482, 2147483648
    %v3487 = vxor.u32 %v3483, 2147483648
    %v3488 = vmul.f32 %v3485, 1.442695
    %v3489 = vpow.pop %v3488
    %v3490 = vmul.f32 %v3486, 1.442695
    %v3491 = vpow.pop %v3490
    %v3492 = vmul.f32 %v3487, 1.442695
    %v3493 = vpow.pop %v3492
    %v3494 = vadd.f32 %v3489, 1.0
    %v3495 = vadd.f32 %v3491, 1.0
    %v3496 = vadd.f32 %v3493, 1.0
    %v3497 = vrcp.pop %v3494
    %v3498 = vmul.f32 1.0, %v3497
    %v3499 = vrcp.pop %v3495
    %v3500 = vmul.f32 1.0, %v3499
    %v3501 = vrcp.pop %v3496
    %v3502 = vmul.f32 1.0, %v3501
    %v3503 = vtanh.pop %v3484
    %v3504 = vmul.f32 %v3500, %v3395
    %v3505 = vmul.f32 %v3498, %v3503
    %v3506 = vadd.f32 %v3504, %v3505
    %v3507 = vtanh.pop %v3506
    %v3508 = vmul.f32 %v3502, %v3507
    %v3509 = vpack.c.bf16 %v3508, %v3508
    %3510 = vmatprep.subr.bf16.mxu0 %v2991
    %3511 = vmatpush1.bf16.msra.mxu0 %v2990
    %3512 = vmatprep.subr.bf16.mxu0 %v2995
    %3513 = vmatpush1.bf16.msra.mxu0 %v2994
    %3514 = vmatprep.subr.bf16.mxu0 %v2999
    %3515 = vmatpush1.bf16.msra.mxu0 %v2998
    %3516 = vmatprep.subr.bf16.mxu0 %v3003
    %3517 = vmatpush1.bf16.msra.mxu0 %v3002
    %3518 = vmatprep.subr.bf16.mxu0 %v3007
    %3519 = vmatpush1.bf16.msra.mxu0 %v3006
    %3520 = vmatprep.subr.bf16.mxu0 %v3011
    %3521 = vmatpush1.bf16.msra.mxu0 %v3010
    %3522 = vmatprep.subr.bf16.mxu0 %v3015
    %3523 = vmatpush1.bf16.msra.mxu0 %v3014
    %3524 = vmatprep.subr.bf16.mxu0 %v3019
    %3525 = vmatpush1.bf16.msra.mxu0 %v3018
    %3526 = vmatprep.subr.bf16.mxu0 0
    %3527 = vmatpush1.bf16.msra.mxu0 0
    %3528 = vmatprep.subr.bf16.mxu0 0
    %3529 = vmatpush1.bf16.msra.mxu0 0
    %3530 = vmatprep.subr.bf16.mxu0 0
    %3531 = vmatpush1.bf16.msra.mxu0 0
    %3532 = vmatprep.subr.bf16.mxu0 0
    %3533 = vmatpush1.bf16.msra.mxu0 0
    %3534 = vmatprep.subr.bf16.mxu0 0
    %3535 = vmatpush1.bf16.msra.mxu0 0
    %3536 = vmatprep.subr.bf16.mxu0 0
    %3537 = vmatpush1.bf16.msra.mxu0 0
    %3538 = vmatprep.subr.bf16.mxu0 0
    %3539 = vmatpush1.bf16.msra.mxu0 0
    %3540 = vmatprep.subr.bf16.mxu0 0
    %3541 = vmatpush1.bf16.msra.mxu0 0
    %3542 = vmatprep.mubr.bf16.mxu0 0
    %3543 = vmatmul.mubr.bf16.gmra.mrb[0].mxu0 %v3509
    %v3544 = vpop.f32.mrb[0].mxu0
    %v3545 = vadd.f32 0.0, %v3544
    %v3546 = vpop.f32.mrb[0].mxu0
    %v3547 = vadd.f32 0.0, %v3546
    %v3548 = vpop.f32.mrb[0].mxu0
    %v3549 = vpop.f32.mrb[0].mxu0
    %3550 = vdwg.mxu0
    %3551 = vmatprep.subr.bf16.mxu0 %v2993
    %3552 = vmatpush1.bf16.msra.mxu0 %v2992
    %3553 = vmatprep.subr.bf16.mxu0 %v2997
    %3554 = vmatpush1.bf16.msra.mxu0 %v2996
    %3555 = vmatprep.subr.bf16.mxu0 %v3001
    %3556 = vmatpush1.bf16.msra.mxu0 %v3000
    %3557 = vmatprep.subr.bf16.mxu0 %v3005
    %3558 = vmatpush1.bf16.msra.mxu0 %v3004
    %3559 = vmatprep.subr.bf16.mxu0 %v3009
    %3560 = vmatpush1.bf16.msra.mxu0 %v3008
    %3561 = vmatprep.subr.bf16.mxu0 %v3013
    %3562 = vmatpush1.bf16.msra.mxu0 %v3012
    %3563 = vmatprep.subr.bf16.mxu0 %v3017
    %3564 = vmatpush1.bf16.msra.mxu0 %v3016
    %3565 = vmatprep.subr.bf16.mxu0 %v3021
    %3566 = vmatpush1.bf16.msra.mxu0 %v3020
    %3567 = vmatprep.subr.bf16.mxu0 0
    %3568 = vmatpush1.bf16.msra.mxu0 0
    %3569 = vmatprep.subr.bf16.mxu0 0
    %3570 = vmatpush1.bf16.msra.mxu0 0
    %3571 = vmatprep.subr.bf16.mxu0 0
    %3572 = vmatpush1.bf16.msra.mxu0 0
    %3573 = vmatprep.subr.bf16.mxu0 0
    %3574 = vmatpush1.bf16.msra.mxu0 0
    %3575 = vmatprep.subr.bf16.mxu0 0
    %3576 = vmatpush1.bf16.msra.mxu0 0
    %3577 = vmatprep.subr.bf16.mxu0 0
    %3578 = vmatpush1.bf16.msra.mxu0 0
    %3579 = vmatprep.subr.bf16.mxu0 0
    %3580 = vmatpush1.bf16.msra.mxu0 0
    %3581 = vmatprep.subr.bf16.mxu0 0
    %3582 = vmatpush1.bf16.msra.mxu0 0
    %3583 = vmatprep.mubr.bf16.mxu0 0
    %3584 = vmatmul.mubr.bf16.gmra.mrb[0].mxu0 %v3509
    %v3585 = vpop.f32.mrb[0].mxu0
    %v3586 = vadd.f32 0.0, %v3585
    %v3587 = vpop.f32.mrb[0].mxu0
    %v3588 = vadd.f32 0.0, %v3587
    %v3589 = vpop.f32.mrb[0].mxu0
    %v3590 = vpop.f32.mrb[0].mxu0
    %3591 = vdwg.mxu0
    %v3592 = vadd.f32 %v2860, %v3545
    %v3593 = vadd.f32 %v2864, %v3547
    %v3594 = vadd.f32 %v2868, %v3586
    %v3595 = vadd.f32 %v2872, %v3588
    %v3596 = vxor.u32 %v3592, 2147483648
    %v3597 = vxor.u32 %v3593, 2147483648
    %v3598 = vxor.u32 %v3594, 2147483648
    %v3599 = vmul.f32 %v3596, 1.442695
    %v3600 = vpow.pop %v3599
    %v3601 = vmul.f32 %v3597, 1.442695
    %v3602 = vpow.pop %v3601
    %v3603 = vmul.f32 %v3598, 1.442695
    %v3604 = vpow.pop %v3603
    %v3605 = vadd.f32 %v3600, 1.0
    %v3606 = vadd.f32 %v3602, 1.0
    %v3607 = vadd.f32 %v3604, 1.0
    %v3608 = vrcp.pop %v3605
    %v3609 = vmul.f32 1.0, %v3608
    %v3610 = vrcp.pop %v3606
    %v3611 = vmul.f32 1.0, %v3610
    %v3612 = vrcp.pop %v3607
    %v3613 = vmul.f32 1.0, %v3612
    %v3614 = vtanh.pop %v3595
    %v3615 = vmul.f32 %v3611, %v3506
    %v3616 = vmul.f32 %v3609, %v3614
    %v3617 = vadd.f32 %v3615, %v3616
    %v3618 = vtanh.pop %v3617
    %v3619 = vmul.f32 %v3613, %v3618
    %v3620 = vpack.c.bf16 %v3619, %v3619
    %3621 = vmatprep.subr.bf16.mxu0 %v2991
    %3622 = vmatpush1.bf16.msra.mxu0 %v2990
    %3623 = vmatprep.subr.bf16.mxu0 %v2995
    %3624 = vmatpush1.bf16.msra.mxu0 %v2994
    %3625 = vmatprep.subr.bf16.mxu0 %v2999
    %3626 = vmatpush1.bf16.msra.mxu0 %v2998
    %3627 = vmatprep.subr.bf16.mxu0 %v3003
    %3628 = vmatpush1.bf16.msra.mxu0 %v3002
    %3629 = vmatprep.subr.bf16.mxu0 %v3007
    %3630 = vmatpush1.bf16.msra.mxu0 %v3006
    %3631 = vmatprep.subr.bf16.mxu0 %v3011
    %3632 = vmatpush1.bf16.msra.mxu0 %v3010
    %3633 = vmatprep.subr.bf16.mxu0 %v3015
    %3634 = vmatpush1.bf16.msra.mxu0 %v3014
    %3635 = vmatprep.subr.bf16.mxu0 %v3019
    %3636 = vmatpush1.bf16.msra.mxu0 %v3018
    %3637 = vmatprep.subr.bf16.mxu0 0
    %3638 = vmatpush1.bf16.msra.mxu0 0
    %3639 = vmatprep.subr.bf16.mxu0 0
    %3640 = vmatpush1.bf16.msra.mxu0 0
    %3641 = vmatprep.subr.bf16.mxu0 0
    %3642 = vmatpush1.bf16.msra.mxu0 0
    %3643 = vmatprep.subr.bf16.mxu0 0
    %3644 = vmatpush1.bf16.msra.mxu0 0
    %3645 = vmatprep.subr.bf16.mxu0 0
    %3646 = vmatpush1.bf16.msra.mxu0 0
    %3647 = vmatprep.subr.bf16.mxu0 0
    %3648 = vmatpush1.bf16.msra.mxu0 0
    %3649 = vmatprep.subr.bf16.mxu0 0
    %3650 = vmatpush1.bf16.msra.mxu0 0
    %3651 = vmatprep.subr.bf16.mxu0 0
    %3652 = vmatpush1.bf16.msra.mxu0 0
    %3653 = vmatprep.mubr.bf16.mxu0 0
    %3654 = vmatmul.mubr.bf16.gmra.mrb[0].mxu0 %v3620
    %v3655 = vpop.f32.mrb[0].mxu0
    %v3656 = vadd.f32 0.0, %v3655
    %v3657 = vpop.f32.mrb[0].mxu0
    %v3658 = vadd.f32 0.0, %v3657
    %v3659 = vpop.f32.mrb[0].mxu0
    %v3660 = vpop.f32.mrb[0].mxu0
    %3661 = vdwg.mxu0
    %3662 = vmatprep.subr.bf16.mxu0 %v2993
    %3663 = vmatpush1.bf16.msra.mxu0 %v2992
    %3664 = vmatprep.subr.bf16.mxu0 %v2997
    %3665 = vmatpush1.bf16.msra.mxu0 %v2996
    %3666 = vmatprep.subr.bf16.mxu0 %v3001
    %3667 = vmatpush1.bf16.msra.mxu0 %v3000
    %3668 = vmatprep.subr.bf16.mxu0 %v3005
    %3669 = vmatpush1.bf16.msra.mxu0 %v3004
    %3670 = vmatprep.subr.bf16.mxu0 %v3009
    %3671 = vmatpush1.bf16.msra.mxu0 %v3008
    %3672 = vmatprep.subr.bf16.mxu0 %v3013
    %3673 = vmatpush1.bf16.msra.mxu0 %v3012
    %3674 = vmatprep.subr.bf16.mxu0 %v3017
    %3675 = vmatpush1.bf16.msra.mxu0 %v3016
    %3676 = vmatprep.subr.bf16.mxu0 %v3021
    %3677 = vmatpush1.bf16.msra.mxu0 %v3020
    %3678 = vmatprep.subr.bf16.mxu0 0
    %3679 = vmatpush1.bf16.msra.mxu0 0
    %3680 = vmatprep.subr.bf16.mxu0 0
    %3681 = vmatpush1.bf16.msra.mxu0 0
    %3682 = vmatprep.subr.bf16.mxu0 0
    %3683 = vmatpush1.bf16.msra.mxu0 0
    %3684 = vmatprep.subr.bf16.mxu0 0
    %3685 = vmatpush1.bf16.msra.mxu0 0
    %3686 = vmatprep.subr.bf16.mxu0 0
    %3687 = vmatpush1.bf16.msra.mxu0 0
    %3688 = vmatprep.subr.bf16.mxu0 0
    %3689 = vmatpush1.bf16.msra.mxu0 0
    %3690 = vmatprep.subr.bf16.mxu0 0
    %3691 = vmatpush1.bf16.msra.mxu0 0
    %3692 = vmatprep.subr.bf16.mxu0 0
    %3693 = vmatpush1.bf16.msra.mxu0 0
    %3694 = vmatprep.mubr.bf16.mxu0 0
    %3695 = vmatmul.mubr.bf16.gmra.mrb[0].mxu0 %v3620
    %v3696 = vpop.f32.mrb[0].mxu0
    %v3697 = vadd.f32 0.0, %v3696
    %v3698 = vpop.f32.mrb[0].mxu0
    %v3699 = vadd.f32 0.0, %v3698
    %v3700 = vpop.f32.mrb[0].mxu0
    %v3701 = vpop.f32.mrb[0].mxu0
    %3702 = vdwg.mxu0
    %v3703 = vadd.f32 %v2860, %v3656
    %v3704 = vadd.f32 %v2864, %v3658
    %v3705 = vadd.f32 %v2868, %v3697
    %v3706 = vadd.f32 %v2872, %v3699
    %v3707 = vxor.u32 %v3703, 2147483648
    %v3708 = vxor.u32 %v3704, 2147483648
    %v3709 = vxor.u32 %v3705, 2147483648
    %v3710 = vmul.f32 %v3707, 1.442695
    %v3711 = vpow.pop %v3710
    %v3712 = vmul.f32 %v3708, 1.442695
    %v3713 = vpow.pop %v3712
    %v3714 = vmul.f32 %v3709, 1.442695
    %v3715 = vpow.pop %v3714
    %v3716 = vadd.f32 %v3711, 1.0
    %v3717 = vadd.f32 %v3713, 1.0
    %v3718 = vadd.f32 %v3715, 1.0
    %v3719 = vrcp.pop %v3716
    %v3720 = vmul.f32 1.0, %v3719
    %v3721 = vrcp.pop %v3717
    %v3722 = vmul.f32 1.0, %v3721
    %v3723 = vrcp.pop %v3718
    %v3724 = vmul.f32 1.0, %v3723
    %v3725 = vtanh.pop %v3706
    %v3726 = vmul.f32 %v3722, %v3617
    %v3727 = vmul.f32 %v3720, %v3725
    %v3728 = vadd.f32 %v3726, %v3727
    %v3729 = vtanh.pop %v3728
    %v3730 = vmul.f32 %v3724, %v3729
    %v3731 = vpack.c.bf16 %v3730, %v3730
    %3732 = vmatprep.subr.bf16.mxu0 %v2991
    %3733 = vmatpush1.bf16.msra.mxu0 %v2990
    %3734 = vmatprep.subr.bf16.mxu0 %v2995
    %3735 = vmatpush1.bf16.msra.mxu0 %v2994
    %3736 = vmatprep.subr.bf16.mxu0 %v2999
    %3737 = vmatpush1.bf16.msra.mxu0 %v2998
    %3738 = vmatprep.subr.bf16.mxu0 %v3003
    %3739 = vmatpush1.bf16.msra.mxu0 %v3002
    %3740 = vmatprep.subr.bf16.mxu0 %v3007
    %3741 = vmatpush1.bf16.msra.mxu0 %v3006
    %3742 = vmatprep.subr.bf16.mxu0 %v3011
    %3743 = vmatpush1.bf16.msra.mxu0 %v3010
    %3744 = vmatprep.subr.bf16.mxu0 %v3015
    %3745 = vmatpush1.bf16.msra.mxu0 %v3014
    %3746 = vmatprep.subr.bf16.mxu0 %v3019
    %3747 = vmatpush1.bf16.msra.mxu0 %v3018
    %3748 = vmatprep.subr.bf16.mxu0 0
    %3749 = vmatpush1.bf16.msra.mxu0 0
    %3750 = vmatprep.subr.bf16.mxu0 0
    %3751 = vmatpush1.bf16.msra.mxu0 0
    %3752 = vmatprep.subr.bf16.mxu0 0
    %3753 = vmatpush1.bf16.msra.mxu0 0
    %3754 = vmatprep.subr.bf16.mxu0 0
    %3755 = vmatpush1.bf16.msra.mxu0 0
    %3756 = vmatprep.subr.bf16.mxu0 0
    %3757 = vmatpush1.bf16.msra.mxu0 0
    %3758 = vmatprep.subr.bf16.mxu0 0
    %3759 = vmatpush1.bf16.msra.mxu0 0
    %3760 = vmatprep.subr.bf16.mxu0 0
    %3761 = vmatpush1.bf16.msra.mxu0 0
    %3762 = vmatprep.subr.bf16.mxu0 0
    %3763 = vmatpush1.bf16.msra.mxu0 0
    %3764 = vmatprep.mubr.bf16.mxu0 0
    %3765 = vmatmul.mubr.bf16.gmra.mrb[0].mxu0 %v3731
    %v3766 = vpop.f32.mrb[0].mxu0
    %v3767 = vadd.f32 0.0, %v3766
    %v3768 = vpop.f32.mrb[0].mxu0
    %v3769 = vadd.f32 0.0, %v3768
    %v3770 = vpop.f32.mrb[0].mxu0
    %v3771 = vpop.f32.mrb[0].mxu0
    %3772 = vdwg.mxu0
    %3773 = vmatprep.subr.bf16.mxu0 %v2993
    %3774 = vmatpush1.bf16.msra.mxu0 %v2992
    %3775 = vmatprep.subr.bf16.mxu0 %v2997
    %3776 = vmatpush1.bf16.msra.mxu0 %v2996
    %3777 = vmatprep.subr.bf16.mxu0 %v3001
    %3778 = vmatpush1.bf16.msra.mxu0 %v3000
    %3779 = vmatprep.subr.bf16.mxu0 %v3005
    %3780 = vmatpush1.bf16.msra.mxu0 %v3004
    %3781 = vmatprep.subr.bf16.mxu0 %v3009
    %3782 = vmatpush1.bf16.msra.mxu0 %v3008
    %3783 = vmatprep.subr.bf16.mxu0 %v3013
    %3784 = vmatpush1.bf16.msra.mxu0 %v3012
    %3785 = vmatprep.subr.bf16.mxu0 %v3017
    %3786 = vmatpush1.bf16.msra.mxu0 %v3016
    %3787 = vmatprep.subr.bf16.mxu0 %v3021
    %3788 = vmatpush1.bf16.msra.mxu0 %v3020
    %3789 = vmatprep.subr.bf16.mxu0 0
    %3790 = vmatpush1.bf16.msra.mxu0 0
    %3791 = vmatprep.subr.bf16.mxu0 0
    %3792 = vmatpush1.bf16.msra.mxu0 0
    %3793 = vmatprep.subr.bf16.mxu0 0
    %3794 = vmatpush1.bf16.msra.mxu0 0
    %3795 = vmatprep.subr.bf16.mxu0 0
    %3796 = vmatpush1.bf16.msra.mxu0 0
    %3797 = vmatprep.subr.bf16.mxu0 0
    %3798 = vmatpush1.bf16.msra.mxu0 0
    %3799 = vmatprep.subr.bf16.mxu0 0
    %3800 = vmatpush1.bf16.msra.mxu0 0
    %3801 = vmatprep.subr.bf16.mxu0 0
    %3802 = vmatpush1.bf16.msra.mxu0 0
    %3803 = vmatprep.subr.bf16.mxu0 0
    %3804 = vmatpush1.bf16.msra.mxu0 0
    %3805 = vmatprep.mubr.bf16.mxu0 0
    %3806 = vmatmul.mubr.bf16.gmra.mrb[0].mxu0 %v3731
    %v3807 = vpop.f32.mrb[0].mxu0
    %v3808 = vadd.f32 0.0, %v3807
    %v3809 = vpop.f32.mrb[0].mxu0
    %v3810 = vadd.f32 0.0, %v3809
    %v3811 = vpop.f32.mrb[0].mxu0
    %v3812 = vpop.f32.mrb[0].mxu0
    %3813 = vdwg.mxu0
    %v3814 = vadd.f32 %v2860, %v3767
    %v3815 = vadd.f32 %v2864, %v3769
    %v3816 = vadd.f32 %v2868, %v3808
    %v3817 = vadd.f32 %v2872, %v3810
    %v3818 = vxor.u32 %v3814, 2147483648
    %v3819 = vxor.u32 %v3815, 2147483648
    %v3820 = vxor.u32 %v3816, 2147483648
    %v3821 = vmul.f32 %v3818, 1.442695
    %v3822 = vpow.pop %v3821
    %v3823 = vmul.f32 %v3819, 1.442695
    %v3824 = vpow.pop %v3823
    %v3825 = vmul.f32 %v3820, 1.442695
    %v3826 = vpow.pop %v3825
    %v3827 = vadd.f32 %v3822, 1.0
    %v3828 = vadd.f32 %v3824, 1.0
    %v3829 = vadd.f32 %v3826, 1.0
    %v3830 = vrcp.pop %v3827
    %v3831 = vmul.f32 1.0, %v3830
    %v3832 = vrcp.pop %v3828
    %v3833 = vmul.f32 1.0, %v3832
    %v3834 = vrcp.pop %v3829
    %v3835 = vmul.f32 1.0, %v3834
    %v3836 = vtanh.pop %v3817
    %v3837 = vmul.f32 %v3833, %v3728
    %v3838 = vmul.f32 %v3831, %v3836
    %v3839 = vadd.f32 %v3837, %v3838
    %v3840 = vtanh.pop %v3839
    %v3841 = vmul.f32 %v3835, %v3840
    %v3842 = vpack.c.bf16 %v3841, %v3841
    %3843 = vmatprep.subr.bf16.mxu0 %v2991
    %3844 = vmatpush1.bf16.msra.mxu0 %v2990
    %3845 = vmatprep.subr.bf16.mxu0 %v2995
    %3846 = vmatpush1.bf16.msra.mxu0 %v2994
    %3847 = vmatprep.subr.bf16.mxu0 %v2999
    %3848 = vmatpush1.bf16.msra.mxu0 %v2998
    %3849 = vmatprep.subr.bf16.mxu0 %v3003
    %3850 = vmatpush1.bf16.msra.mxu0 %v3002
    %3851 = vmatprep.subr.bf16.mxu0 %v3007
    %3852 = vmatpush1.bf16.msra.mxu0 %v3006
    %3853 = vmatprep.subr.bf16.mxu0 %v3011
    %3854 = vmatpush1.bf16.msra.mxu0 %v3010
    %3855 = vmatprep.subr.bf16.mxu0 %v3015
    %3856 = vmatpush1.bf16.msra.mxu0 %v3014
    %3857 = vmatprep.subr.bf16.mxu0 %v3019
    %3858 = vmatpush1.bf16.msra.mxu0 %v3018
    %3859 = vmatprep.subr.bf16.mxu0 0
    %3860 = vmatpush1.bf16.msra.mxu0 0
    %3861 = vmatprep.subr.bf16.mxu0 0
    %3862 = vmatpush1.bf16.msra.mxu0 0
    %3863 = vmatprep.subr.bf16.mxu0 0
    %3864 = vmatpush1.bf16.msra.mxu0 0
    %3865 = vmatprep.subr.bf16.mxu0 0
    %3866 = vmatpush1.bf16.msra.mxu0 0
    %3867 = vmatprep.subr.bf16.mxu0 0
    %3868 = vmatpush1.bf16.msra.mxu0 0
    %3869 = vmatprep.subr.bf16.mxu0 0
    %3870 = vmatpush1.bf16.msra.mxu0 0
    %3871 = vmatprep.subr.bf16.mxu0 0
    %3872 = vmatpush1.bf16.msra.mxu0 0
    %3873 = vmatprep.subr.bf16.mxu0 0
    %3874 = vmatpush1.bf16.msra.mxu0 0
    %3875 = vmatprep.mubr.bf16.mxu0 0
    %3876 = vmatmul.mubr.bf16.gmra.mrb[0].mxu0 %v3842
    %v3877 = vpop.f32.mrb[0].mxu0
    %v3878 = vadd.f32 0.0, %v3877
    %v3879 = vpop.f32.mrb[0].mxu0
    %v3880 = vadd.f32 0.0, %v3879
    %v3881 = vpop.f32.mrb[0].mxu0
    %v3882 = vpop.f32.mrb[0].mxu0
    %3883 = vdwg.mxu0
    %3884 = vmatprep.subr.bf16.mxu0 %v2993
    %3885 = vmatpush1.bf16.msra.mxu0 %v2992
    %3886 = vmatprep.subr.bf16.mxu0 %v2997
    %3887 = vmatpush1.bf16.msra.mxu0 %v2996
    %3888 = vmatprep.subr.bf16.mxu0 %v3001
    %3889 = vmatpush1.bf16.msra.mxu0 %v3000
    %3890 = vmatprep.subr.bf16.mxu0 %v3005
    %3891 = vmatpush1.bf16.msra.mxu0 %v3004
    %3892 = vmatprep.subr.bf16.mxu0 %v3009
    %3893 = vmatpush1.bf16.msra.mxu0 %v3008
    %3894 = vmatprep.subr.bf16.mxu0 %v3013
    %3895 = vmatpush1.bf16.msra.mxu0 %v3012
    %3896 = vmatprep.subr.bf16.mxu0 %v3017
    %3897 = vmatpush1.bf16.msra.mxu0 %v3016
    %3898 = vmatprep.subr.bf16.mxu0 %v3021
    %3899 = vmatpush1.bf16.msra.mxu0 %v3020
    %3900 = vmatprep.subr.bf16.mxu0 0
    %3901 = vmatpush1.bf16.msra.mxu0 0
    %3902 = vmatprep.subr.bf16.mxu0 0
    %3903 = vmatpush1.bf16.msra.mxu0 0
    %3904 = vmatprep.subr.bf16.mxu0 0
    %3905 = vmatpush1.bf16.msra.mxu0 0
    %3906 = vmatprep.subr.bf16.mxu0 0
    %3907 = vmatpush1.bf16.msra.mxu0 0
    %3908 = vmatprep.subr.bf16.mxu0 0
    %3909 = vmatpush1.bf16.msra.mxu0 0
    %3910 = vmatprep.subr.bf16.mxu0 0
    %3911 = vmatpush1.bf16.msra.mxu0 0
    %3912 = vmatprep.subr.bf16.mxu0 0
    %3913 = vmatpush1.bf16.msra.mxu0 0
    %3914 = vmatprep.subr.bf16.mxu0 0
    %3915 = vmatpush1.bf16.msra.mxu0 0
    %3916 = vmatprep.mubr.bf16.mxu0 0
    %3917 = vmatmul.mubr.bf16.gmra.mrb[0].mxu0 %v3842
    %v3918 = vpop.f32.mrb[0].mxu0
    %v3919 = vadd.f32 0.0, %v3918
    %v3920 = vpop.f32.mrb[0].mxu0
    %v3921 = vadd.f32 0.0, %v3920
    %v3922 = vpop.f32.mrb[0].mxu0
    %v3923 = vpop.f32.mrb[0].mxu0
    %3924 = vdwg.mxu0
    %v3925 = vadd.f32 %v2860, %v3878
    %v3926 = vadd.f32 %v2864, %v3880
    %v3927 = vadd.f32 %v2868, %v3919
    %v3928 = vadd.f32 %v2872, %v3921
    %v3929 = vxor.u32 %v3925, 2147483648
    %v3930 = vxor.u32 %v3926, 2147483648
    %v3931 = vxor.u32 %v3927, 2147483648
    %v3932 = vmul.f32 %v3929, 1.442695
    %v3933 = vpow.pop %v3932
    %v3934 = vmul.f32 %v3930, 1.442695
    %v3935 = vpow.pop %v3934
    %v3936 = vmul.f32 %v3931, 1.442695
    %v3937 = vpow.pop %v3936
    %v3938 = vadd.f32 %v3933, 1.0
    %v3939 = vadd.f32 %v3935, 1.0
    %v3940 = vadd.f32 %v3937, 1.0
    %v3941 = vrcp.pop %v3938
    %v3942 = vmul.f32 1.0, %v3941
    %v3943 = vrcp.pop %v3939
    %v3944 = vmul.f32 1.0, %v3943
    %v3945 = vrcp.pop %v3940
    %v3946 = vmul.f32 1.0, %v3945
    %v3947 = vtanh.pop %v3928
    %v3948 = vmul.f32 %v3944, %v3839
    %v3949 = vmul.f32 %v3942, %v3947
    %v3950 = vadd.f32 %v3948, %v3949
    %v3951 = vtanh.pop %v3950
    %v3952 = vmul.f32 %v3946, %v3951
    %v3953 = vpack.c.bf16 %v3952, %v3952
    %3954 = vmatprep.subr.bf16.mxu0 %v2991
    %3955 = vmatpush1.bf16.msra.mxu0 %v2990
    %3956 = vmatprep.subr.bf16.mxu0 %v2995
    %3957 = vmatpush1.bf16.msra.mxu0 %v2994
    %3958 = vmatprep.subr.bf16.mxu0 %v2999
    %3959 = vmatpush1.bf16.msra.mxu0 %v2998
    %3960 = vmatprep.subr.bf16.mxu0 %v3003
    %3961 = vmatpush1.bf16.msra.mxu0 %v3002
    %3962 = vmatprep.subr.bf16.mxu0 %v3007
    %3963 = vmatpush1.bf16.msra.mxu0 %v3006
    %3964 = vmatprep.subr.bf16.mxu0 %v3011
    %3965 = vmatpush1.bf16.msra.mxu0 %v3010
    %3966 = vmatprep.subr.bf16.mxu0 %v3015
    %3967 = vmatpush1.bf16.msra.mxu0 %v3014
    %3968 = vmatprep.subr.bf16.mxu0 %v3019
    %3969 = vmatpush1.bf16.msra.mxu0 %v3018
    %3970 = vmatprep.subr.bf16.mxu0 0
    %3971 = vmatpush1.bf16.msra.mxu0 0
    %3972 = vmatprep.subr.bf16.mxu0 0
    %3973 = vmatpush1.bf16.msra.mxu0 0
    %3974 = vmatprep.subr.bf16.mxu0 0
    %3975 = vmatpush1.bf16.msra.mxu0 0
    %3976 = vmatprep.subr.bf16.mxu0 0
    %3977 = vmatpush1.bf16.msra.mxu0 0
    %3978 = vmatprep.subr.bf16.mxu0 0
    %3979 = vmatpush1.bf16.msra.mxu0 0
    %3980 = vmatprep.subr.bf16.mxu0 0
    %3981 = vmatpush1.bf16.msra.mxu0 0
    %3982 = vmatprep.subr.bf16.mxu0 0
    %3983 = vmatpush1.bf16.msra.mxu0 0
    %3984 = vmatprep.subr.bf16.mxu0 0
    %3985 = vmatpush1.bf16.msra.mxu0 0
    %3986 = vmatprep.mubr.bf16.mxu0 0
    %3987 = vmatmul.mubr.bf16.gmra.mrb[0].mxu0 %v3953
    %v3988 = vpop.f32.mrb[0].mxu0
    %v3989 = vadd.f32 0.0, %v3988
    %v3990 = vpop.f32.mrb[0].mxu0
    %v3991 = vadd.f32 0.0, %v3990
    %v3992 = vpop.f32.mrb[0].mxu0
    %v3993 = vpop.f32.mrb[0].mxu0
    %3994 = vdwg.mxu0
    %3995 = vmatprep.subr.bf16.mxu0 %v2993
    %3996 = vmatpush1.bf16.msra.mxu0 %v2992
    %3997 = vmatprep.subr.bf16.mxu0 %v2997
    %3998 = vmatpush1.bf16.msra.mxu0 %v2996
    %3999 = vmatprep.subr.bf16.mxu0 %v3001
    %4000 = vmatpush1.bf16.msra.mxu0 %v3000
    %4001 = vmatprep.subr.bf16.mxu0 %v3005
    %4002 = vmatpush1.bf16.msra.mxu0 %v3004
    %4003 = vmatprep.subr.bf16.mxu0 %v3009
    %4004 = vmatpush1.bf16.msra.mxu0 %v3008
    %4005 = vmatprep.subr.bf16.mxu0 %v3013
    %4006 = vmatpush1.bf16.msra.mxu0 %v3012
    %4007 = vmatprep.subr.bf16.mxu0 %v3017
    %4008 = vmatpush1.bf16.msra.mxu0 %v3016
    %4009 = vmatprep.subr.bf16.mxu0 %v3021
    %4010 = vmatpush1.bf16.msra.mxu0 %v3020
    %4011 = vmatprep.subr.bf16.mxu0 0
    %4012 = vmatpush1.bf16.msra.mxu0 0
    %4013 = vmatprep.subr.bf16.mxu0 0
    %4014 = vmatpush1.bf16.msra.mxu0 0
    %4015 = vmatprep.subr.bf16.mxu0 0
    %4016 = vmatpush1.bf16.msra.mxu0 0
    %4017 = vmatprep.subr.bf16.mxu0 0
    %4018 = vmatpush1.bf16.msra.mxu0 0
    %4019 = vmatprep.subr.bf16.mxu0 0
    %4020 = vmatpush1.bf16.msra.mxu0 0
    %4021 = vmatprep.subr.bf16.mxu0 0
    %4022 = vmatpush1.bf16.msra.mxu0 0
    %4023 = vmatprep.subr.bf16.mxu0 0
    %4024 = vmatpush1.bf16.msra.mxu0 0
    %4025 = vmatprep.subr.bf16.mxu0 0
    %4026 = vmatpush1.bf16.msra.mxu0 0
    %4027 = vmatprep.mubr.bf16.mxu0 0
    %4028 = vmatmul.mubr.bf16.gmra.mrb[0].mxu0 %v3953
    %v4029 = vpop.f32.mrb[0].mxu0
    %v4030 = vadd.f32 0.0, %v4029
    %v4031 = vpop.f32.mrb[0].mxu0
    %v4032 = vadd.f32 0.0, %v4031
    %v4033 = vpop.f32.mrb[0].mxu0
    %v4034 = vpop.f32.mrb[0].mxu0
    %4035 = vdwg.mxu0
    %v4036 = vadd.f32 %v2860, %v3989
    %v4037 = vadd.f32 %v2864, %v3991
    %v4038 = vadd.f32 %v2868, %v4030
    %v4039 = vadd.f32 %v2872, %v4032
    %v4040 = vxor.u32 %v4036, 2147483648
    %v4041 = vxor.u32 %v4037, 2147483648
    %v4042 = vxor.u32 %v4038, 2147483648
    %v4043 = vmul.f32 %v4040, 1.442695
    %v4044 = vpow.pop %v4043
    %v4045 = vmul.f32 %v4041, 1.442695
    %v4046 = vpow.pop %v4045
    %v4047 = vmul.f32 %v4042, 1.442695
    %v4048 = vpow.pop %v4047
    %v4049 = vadd.f32 %v4044, 1.0
    %v4050 = vadd.f32 %v4046, 1.0
    %v4051 = vadd.f32 %v4048, 1.0
    %v4052 = vrcp.pop %v4049
    %v4053 = vmul.f32 1.0, %v4052
    %v4054 = vrcp.pop %v4050
    %v4055 = vmul.f32 1.0, %v4054
    %v4056 = vrcp.pop %v4051
    %v4057 = vmul.f32 1.0, %v4056
    %v4058 = vtanh.pop %v4039
    %v4059 = vmul.f32 %v4055, %v3950
    %v4060 = vmul.f32 %v4053, %v4058
    %v4061 = vadd.f32 %v4059, %v4060
    %v4062 = vtanh.pop %v4061
    %v4063 = vmul.f32 %v4057, %v4062
    %v4064 = vpack.c.bf16 %v4063, %v4063
    %4065 = vmatprep.subr.bf16.mxu0 %v2991
    %4066 = vmatpush1.bf16.msra.mxu0 %v2990
    %4067 = vmatprep.subr.bf16.mxu0 %v2995
    %4068 = vmatpush1.bf16.msra.mxu0 %v2994
    %4069 = vmatprep.subr.bf16.mxu0 %v2999
    %4070 = vmatpush1.bf16.msra.mxu0 %v2998
    %4071 = vmatprep.subr.bf16.mxu0 %v3003
    %4072 = vmatpush1.bf16.msra.mxu0 %v3002
    %4073 = vmatprep.subr.bf16.mxu0 %v3007
    %4074 = vmatpush1.bf16.msra.mxu0 %v3006
    %4075 = vmatprep.subr.bf16.mxu0 %v3011
    %4076 = vmatpush1.bf16.msra.mxu0 %v3010
    %4077 = vmatprep.subr.bf16.mxu0 %v3015
    %4078 = vmatpush1.bf16.msra.mxu0 %v3014
    %4079 = vmatprep.subr.bf16.mxu0 %v3019
    %4080 = vmatpush1.bf16.msra.mxu0 %v3018
    %4081 = vmatprep.subr.bf16.mxu0 0
    %4082 = vmatpush1.bf16.msra.mxu0 0
    %4083 = vmatprep.subr.bf16.mxu0 0
    %4084 = vmatpush1.bf16.msra.mxu0 0
    %4085 = vmatprep.subr.bf16.mxu0 0
    %4086 = vmatpush1.bf16.msra.mxu0 0
    %4087 = vmatprep.subr.bf16.mxu0 0
    %4088 = vmatpush1.bf16.msra.mxu0 0
    %4089 = vmatprep.subr.bf16.mxu0 0
    %4090 = vmatpush1.bf16.msra.mxu0 0
    %4091 = vmatprep.subr.bf16.mxu0 0
    %4092 = vmatpush1.bf16.msra.mxu0 0
    %4093 = vmatprep.subr.bf16.mxu0 0
    %4094 = vmatpush1.bf16.msra.mxu0 0
    %4095 = vmatprep.subr.bf16.mxu0 0
    %4096 = vmatpush1.bf16.msra.mxu0 0
    %4097 = vmatprep.mubr.bf16.mxu0 0
    %4098 = vmatmul.mubr.bf16.gmra.mrb[0].mxu0 %v4064
    %v4099 = vpop.f32.mrb[0].mxu0
    %v4100 = vadd.f32 0.0, %v4099
    %v4101 = vpop.f32.mrb[0].mxu0
    %v4102 = vadd.f32 0.0, %v4101
    %v4103 = vpop.f32.mrb[0].mxu0
    %v4104 = vpop.f32.mrb[0].mxu0
    %4105 = vdwg.mxu0
    %4106 = vmatprep.subr.bf16.mxu0 %v2993
    %4107 = vmatpush1.bf16.msra.mxu0 %v2992
    %4108 = vmatprep.subr.bf16.mxu0 %v2997
    %4109 = vmatpush1.bf16.msra.mxu0 %v2996
    %4110 = vmatprep.subr.bf16.mxu0 %v3001
    %4111 = vmatpush1.bf16.msra.mxu0 %v3000
    %4112 = vmatprep.subr.bf16.mxu0 %v3005
    %4113 = vmatpush1.bf16.msra.mxu0 %v3004
    %4114 = vmatprep.subr.bf16.mxu0 %v3009
    %4115 = vmatpush1.bf16.msra.mxu0 %v3008
    %4116 = vmatprep.subr.bf16.mxu0 %v3013
    %4117 = vmatpush1.bf16.msra.mxu0 %v3012
    %4118 = vmatprep.subr.bf16.mxu0 %v3017
    %4119 = vmatpush1.bf16.msra.mxu0 %v3016
    %4120 = vmatprep.subr.bf16.mxu0 %v3021
    %4121 = vmatpush1.bf16.msra.mxu0 %v3020
    %4122 = vmatprep.subr.bf16.mxu0 0
    %4123 = vmatpush1.bf16.msra.mxu0 0
    %4124 = vmatprep.subr.bf16.mxu0 0
    %4125 = vmatpush1.bf16.msra.mxu0 0
    %4126 = vmatprep.subr.bf16.mxu0 0
    %4127 = vmatpush1.bf16.msra.mxu0 0
    %4128 = vmatprep.subr.bf16.mxu0 0
    %4129 = vmatpush1.bf16.msra.mxu0 0
    %4130 = vmatprep.subr.bf16.mxu0 0
    %4131 = vmatpush1.bf16.msra.mxu0 0
    %4132 = vmatprep.subr.bf16.mxu0 0
    %4133 = vmatpush1.bf16.msra.mxu0 0
    %4134 = vmatprep.subr.bf16.mxu0 0
    %4135 = vmatpush1.bf16.msra.mxu0 0
    %4136 = vmatprep.subr.bf16.mxu0 0
    %4137 = vmatpush1.bf16.msra.mxu0 0
    %4138 = vmatprep.mubr.bf16.mxu0 0
    %4139 = vmatmul.mubr.bf16.gmra.mrb[0].mxu0 %v4064
    %v4140 = vpop.f32.mrb[0].mxu0
    %v4141 = vadd.f32 0.0, %v4140
    %v4142 = vpop.f32.mrb[0].mxu0
    %v4143 = vadd.f32 0.0, %v4142
    %v4144 = vpop.f32.mrb[0].mxu0
    %v4145 = vpop.f32.mrb[0].mxu0
    %4146 = vdwg.mxu0
    %v4147 = vadd.f32 %v2860, %v4100
    %v4148 = vadd.f32 %v2864, %v4102
    %v4149 = vadd.f32 %v2868, %v4141
    %v4150 = vadd.f32 %v2872, %v4143
    %v4151 = vxor.u32 %v4147, 2147483648
    %v4152 = vxor.u32 %v4148, 2147483648
    %v4153 = vxor.u32 %v4149, 2147483648
    %v4154 = vmul.f32 %v4151, 1.442695
    %v4155 = vpow.pop %v4154
    %v4156 = vmul.f32 %v4152, 1.442695
    %v4157 = vpow.pop %v4156
    %v4158 = vmul.f32 %v4153, 1.442695
    %v4159 = vpow.pop %v4158
    %v4160 = vadd.f32 %v4155, 1.0
    %v4161 = vadd.f32 %v4157, 1.0
    %v4162 = vadd.f32 %v4159, 1.0
    %v4163 = vrcp.pop %v4160
    %v4164 = vmul.f32 1.0, %v4163
    %v4165 = vrcp.pop %v4161
    %v4166 = vmul.f32 1.0, %v4165
    %v4167 = vrcp.pop %v4162
    %v4168 = vmul.f32 1.0, %v4167
    %v4169 = vtanh.pop %v4150
    %v4170 = vmul.f32 %v4166, %v4061
    %v4171 = vmul.f32 %v4164, %v4169
    %v4172 = vadd.f32 %v4170, %v4171
    %v4173 = vtanh.pop %v4172
    %v4174 = vmul.f32 %v4168, %v4173
    %v4175 = vld [vmem:[#allocation2] sm:$0xff]
    %v4176 = vld [vmem:[#allocation2 + $0x8] sm:$0xff]
    %v4177 = vld [vmem:[#allocation2 + $0x10] sm:$0xff]
    %v4178 = vld [vmem:[#allocation2 + $0x18] sm:$0xff]
    %v4179 = vpack.c.bf16 %v4176, %v4175
    %v4180 = vpack.c.bf16 %v4178, %v4177
    %v4181 = vld [vmem:[%s9] sm:$0xf]
    %v4182 = vld [vmem:[%s9 + $0x4] sm:$0xf]
    %v4183 = vld [vmem:[%s9 + $0x8] sm:$0xf]
    %v4184 = vld [vmem:[%s9 + $0xc] sm:$0xf]
    %v4185 = vld [vmem:[%s9 + $0x10] sm:$0xf]
    %v4186 = vld [vmem:[%s9 + $0x14] sm:$0xf]
    %v4187 = vld [vmem:[%s9 + $0x18] sm:$0xf]
    %v4188 = vld [vmem:[%s9 + $0x1c] sm:$0xf]
    %v4189 = vld [vmem:[%s9 + $0x20] sm:$0xf]
    %v4190 = vld [vmem:[%s9 + $0x24] sm:$0xf]
    %v4191 = vld [vmem:[%s9 + $0x28] sm:$0xf]
    %v4192 = vld [vmem:[%s9 + $0x2c] sm:$0xf]
    %v4193 = vld [vmem:[%s9 + $0x30] sm:$0xf]
    %v4194 = vld [vmem:[%s9 + $0x34] sm:$0xf]
    %v4195 = vld [vmem:[%s9 + $0x38] sm:$0xf]
    %v4196 = vld [vmem:[%s9 + $0x3c] sm:$0xf]
    %v4197 = vld [vmem:[%s10] sm:$0x1]
    %v4199 = vlaneseq
    %v4200 = vshrl.u32 %v4199, 7
    %v4201 = vsub.s32 0, %v4200
    %v4202 = vrot.slane %v4197, %v4201
    %v4220 = vunpack.c.l.b16 %v4181
    %v4221 = vunpack.c.l.b16 %v4182
    %v4222 = vunpack.c.l.b16 %v4183
    %v4223 = vunpack.c.l.b16 %v4184
    %v4224 = vunpack.c.l.b16 %v4185
    %v4225 = vunpack.c.l.b16 %v4186
    %v4226 = vunpack.c.l.b16 %v4187
    %v4227 = vunpack.c.l.b16 %v4188
    %v4228 = vunpack.c.l.b16 %v4189
    %v4229 = vunpack.c.l.b16 %v4190
    %v4230 = vunpack.c.l.b16 %v4191
    %v4231 = vunpack.c.l.b16 %v4192
    %v4232 = vunpack.c.l.b16 %v4193
    %v4233 = vunpack.c.l.b16 %v4194
    %v4234 = vunpack.c.l.b16 %v4195
    %v4235 = vunpack.c.l.b16 %v4196
    %v4236 = vpack.c.b16 %v4221, %v4220
    %v4237 = vpack.c.b16 %v4223, %v4222
    %v4238 = vpack.c.b16 %v4225, %v4224
    %v4239 = vpack.c.b16 %v4227, %v4226
    %v4240 = vpack.c.b16 %v4229, %v4228
    %v4241 = vpack.c.b16 %v4231, %v4230
    %v4242 = vpack.c.b16 %v4233, %v4232
    %v4243 = vpack.c.b16 %v4235, %v4234
    %4252 = vmatprep.subr.bf16.mxu0 0
    %4253 = vmatpush1.bf16.msra.mxu0 %v4236
    %4254 = vmatprep.subr.bf16.mxu0 0
    %4255 = vmatpush1.bf16.msra.mxu0 %v4237
    %4256 = vmatprep.subr.bf16.mxu0 0
    %4257 = vmatpush1.bf16.msra.mxu0 %v4238
    %4258 = vmatprep.subr.bf16.mxu0 0
    %4259 = vmatpush1.bf16.msra.mxu0 %v4239
    %4260 = vmatprep.subr.bf16.mxu0 0
    %4261 = vmatpush1.bf16.msra.mxu0 %v4240
    %4262 = vmatprep.subr.bf16.mxu0 0
    %4263 = vmatpush1.bf16.msra.mxu0 %v4241
    %4264 = vmatprep.subr.bf16.mxu0 0
    %4265 = vmatpush1.bf16.msra.mxu0 %v4242
    %4266 = vmatprep.subr.bf16.mxu0 0
    %4267 = vmatpush1.bf16.msra.mxu0 %v4243
    %4268 = vmatprep.subr.bf16.mxu0 0
    %4269 = vmatpush1.bf16.msra.mxu0 0
    %4270 = vmatprep.subr.bf16.mxu0 0
    %4271 = vmatpush1.bf16.msra.mxu0 0
    %4272 = vmatprep.subr.bf16.mxu0 0
    %4273 = vmatpush1.bf16.msra.mxu0 0
    %4274 = vmatprep.subr.bf16.mxu0 0
    %4275 = vmatpush1.bf16.msra.mxu0 0
    %4276 = vmatprep.subr.bf16.mxu0 0
    %4277 = vmatpush1.bf16.msra.mxu0 0
    %4278 = vmatprep.subr.bf16.mxu0 0
    %4279 = vmatpush1.bf16.msra.mxu0 0
    %4280 = vmatprep.subr.bf16.mxu0 0
    %4281 = vmatpush1.bf16.msra.mxu0 0
    %4282 = vmatprep.subr.bf16.mxu0 0
    %4283 = vmatpush1.bf16.msra.mxu0 0
    %4284 = vmatprep.mubr.bf16.mxu0 0
    %4285 = vmatmul.mubr.bf16.gmra.mrb[0].mxu0 %v4179
    %v4286 = vpop.f32.mrb[0].mxu0
    %v4287 = vadd.f32 %v4202, %v4286
    %v4288 = vpop.f32.mrb[0].mxu0
    %v4289 = vpop.f32.mrb[0].mxu0
    %v4290 = vadd.f32 %v4202, %v4289
    %v4291 = vpop.f32.mrb[0].mxu0
    %4292 = vmatprep.mubr.bf16.mxu0 0
    %4293 = vmatmul.mubr.bf16.gmra.mrb[0].mxu0 %v4180
    %v4294 = vpop.f32.mrb[0].mxu0
    %v4295 = vadd.f32 %v4202, %v4294
    %v4296 = vpop.f32.mrb[0].mxu0
    %v4297 = vpop.f32.mrb[0].mxu0
    %v4298 = vadd.f32 %v4202, %v4297
    %v4299 = vpop.f32.mrb[0].mxu0
    %4300 = vdwg.mxu0
    %v4301 = vpack.c.bf16 %v4174, %v4174
    %v4302 = vld [vmem:[%s7] sm:$0xf]
    %v4303 = vld [vmem:[%s7 + $0x4] sm:$0xf]
    %v4304 = vld [vmem:[%s7 + $0x8] sm:$0xf]
    %v4305 = vld [vmem:[%s7 + $0xc] sm:$0xf]
    %v4306 = vld [vmem:[%s7 + $0x10] sm:$0xf]
    %v4307 = vld [vmem:[%s7 + $0x14] sm:$0xf]
    %v4308 = vld [vmem:[%s7 + $0x18] sm:$0xf]
    %v4309 = vld [vmem:[%s7 + $0x1c] sm:$0xf]
    %v4310 = vld [vmem:[%s7 + $0x20] sm:$0xf]
    %v4311 = vld [vmem:[%s7 + $0x24] sm:$0xf]
    %v4312 = vld [vmem:[%s7 + $0x28] sm:$0xf]
    %v4313 = vld [vmem:[%s7 + $0x2c] sm:$0xf]
    %v4314 = vld [vmem:[%s7 + $0x30] sm:$0xf]
    %v4315 = vld [vmem:[%s7 + $0x34] sm:$0xf]
    %v4316 = vld [vmem:[%s7 + $0x38] sm:$0xf]
    %v4317 = vld [vmem:[%s7 + $0x3c] sm:$0xf]
    %v4318 = vld [vmem:[%s8] sm:$0x1]
    %v4320 = vlaneseq
    %v4321 = vshrl.u32 %v4320, 7
    %v4322 = vsub.s32 0, %v4321
    %v4323 = vrot.slane %v4318, %v4322
    %v4341 = vunpack.c.l.b16 %v4302
    %v4342 = vunpack.c.l.b16 %v4303
    %v4343 = vunpack.c.l.b16 %v4304
    %v4344 = vunpack.c.l.b16 %v4305
    %v4345 = vunpack.c.l.b16 %v4306
    %v4346 = vunpack.c.l.b16 %v4307
    %v4347 = vunpack.c.l.b16 %v4308
    %v4348 = vunpack.c.l.b16 %v4309
    %v4349 = vunpack.c.l.b16 %v4310
    %v4350 = vunpack.c.l.b16 %v4311
    %v4351 = vunpack.c.l.b16 %v4312
    %v4352 = vunpack.c.l.b16 %v4313
    %v4353 = vunpack.c.l.b16 %v4314
    %v4354 = vunpack.c.l.b16 %v4315
    %v4355 = vunpack.c.l.b16 %v4316
    %v4356 = vunpack.c.l.b16 %v4317
    %v4357 = vpack.c.b16 %v4342, %v4341
    %v4358 = vpack.c.b16 %v4344, %v4343
    %v4359 = vpack.c.b16 %v4346, %v4345
    %v4360 = vpack.c.b16 %v4348, %v4347
    %v4361 = vpack.c.b16 %v4350, %v4349
    %v4362 = vpack.c.b16 %v4352, %v4351
    %v4363 = vpack.c.b16 %v4354, %v4353
    %v4364 = vpack.c.b16 %v4356, %v4355
    %4373 = vmatprep.subr.bf16.mxu0 0
    %4374 = vmatpush1.bf16.msra.mxu0 %v4357
    %4375 = vmatprep.subr.bf16.mxu0 0
    %4376 = vmatpush1.bf16.msra.mxu0 %v4358
    %4377 = vmatprep.subr.bf16.mxu0 0
    %4378 = vmatpush1.bf16.msra.mxu0 %v4359
    %4379 = vmatprep.subr.bf16.mxu0 0
    %4380 = vmatpush1.bf16.msra.mxu0 %v4360
    %4381 = vmatprep.subr.bf16.mxu0 0
    %4382 = vmatpush1.bf16.msra.mxu0 %v4361
    %4383 = vmatprep.subr.bf16.mxu0 0
    %4384 = vmatpush1.bf16.msra.mxu0 %v4362
    %4385 = vmatprep.subr.bf16.mxu0 0
    %4386 = vmatpush1.bf16.msra.mxu0 %v4363
    %4387 = vmatprep.subr.bf16.mxu0 0
    %4388 = vmatpush1.bf16.msra.mxu0 %v4364
    %4389 = vmatprep.subr.bf16.mxu0 0
    %4390 = vmatpush1.bf16.msra.mxu0 0
    %4391 = vmatprep.subr.bf16.mxu0 0
    %4392 = vmatpush1.bf16.msra.mxu0 0
    %4393 = vmatprep.subr.bf16.mxu0 0
    %4394 = vmatpush1.bf16.msra.mxu0 0
    %4395 = vmatprep.subr.bf16.mxu0 0
    %4396 = vmatpush1.bf16.msra.mxu0 0
    %4397 = vmatprep.subr.bf16.mxu0 0
    %4398 = vmatpush1.bf16.msra.mxu0 0
    %4399 = vmatprep.subr.bf16.mxu0 0
    %4400 = vmatpush1.bf16.msra.mxu0 0
    %4401 = vmatprep.subr.bf16.mxu0 0
    %4402 = vmatpush1.bf16.msra.mxu0 0
    %4403 = vmatprep.subr.bf16.mxu0 0
    %4404 = vmatpush1.bf16.msra.mxu0 0
    %4405 = vmatprep.mubr.bf16.mxu0 0
    %4406 = vmatmul.mubr.bf16.gmra.mrb[0].mxu0 %v4301
    %v4407 = vpop.f32.mrb[0].mxu0
    %v4408 = vadd.f32 %v4323, %v4407
    %v4409 = vpop.f32.mrb[0].mxu0
    %v4410 = vpop.f32.mrb[0].mxu0
    %v4411 = vpop.f32.mrb[0].mxu0
    %4412 = vdwg.mxu0
    %v4415 = vunpack.c.l.s4 1966171168
    %v4416 = vunpack.c.0.s8 %v4415
    %v4417 = vlaneseq
    %v4418 = vshrl.u32 %v4417, 7
    %v4419 = vsub.s32 %v4416, %v4418
    %v4420 = vrot.slane %v4408, %v4419
    %v4421 = vcombine.high %v4420, %v4420
    %v4423 = vunpack.c.l.s4 1966171168
    %v4424 = vunpack.c.0.s8 %v4423
    %v4425 = vlaneseq
    %v4426 = vshrl.u32 %v4425, 7
    %v4427 = vsub.s32 %v4424, %v4426
    %v4428 = vrot.slane %v4420, %v4427
    %v4430 = vunpack.c.l.s4 1966171168
    %v4431 = vunpack.c.0.s8 %v4430
    %v4432 = vlaneseq
    %v4433 = vshrl.u32 %v4432, 7
    %v4434 = vsub.s32 %v4431, %v4433
    %v4435 = vrot.slane %v4421, %v4434
    %v4436 = vcombine.high %v4428, %v4428
    %v4437 = vcombine.high %v4435, %v4435
    %v4438 = vlaneseq
    %v4439 = vshrl.u32 %v4438, 7
    %v4440 = vsub.s32 0, %v4439
    %v4441 = vrot.slane %v4428, %v4440
    %v4442 = vlaneseq
    %v4443 = vshrl.u32 %v4442, 7
    %v4444 = vsub.s32 0, %v4443
    %v4445 = vrot.slane %v4435, %v4444
    %v4446 = vlaneseq
    %v4447 = vshrl.u32 %v4446, 7
    %v4448 = vsub.s32 0, %v4447
    %v4449 = vrot.slane %v4436, %v4448
    %v4450 = vlaneseq
    %v4451 = vshrl.u32 %v4450, 7
    %v4452 = vsub.s32 0, %v4451
    %v4453 = vrot.slane %v4437, %v4452
    %v4458 = vadd.f32 %v4441, %v4287
    %v4459 = vadd.f32 %v4445, %v4290
    %v4460 = vadd.f32 %v4449, %v4295
    %v4461 = vadd.f32 %v4453, %v4298
    %v4462 = vtanh.pop %v4458
    %v4463 = vtanh.pop %v4459
    %v4464 = vtanh.pop %v4460
    %v4465 = vtanh.pop %v4461
    %v4466 = vld [vmem:[%s11] sm:$0x1]
    %v4468 = vlaneseq
    %v4469 = vshrl.u32 %v4468, 7
    %v4470 = vsub.s32 0, %v4469
    %v4471 = vrot.slane %v4466, %v4470
    %v4473 = vmul.f32 %v4462, %v4471
    %v4474 = vmul.f32 %v4463, %v4471
    %v4475 = vmul.f32 %v4464, %v4471
    %v4476 = vmul.f32 %v4465, %v4471
    %4477 = vadd.xlane.f32.xlu0 %v4473
    %v4478 = vpop.xlane.xlu0 %4477
    %4479 = vadd.xlane.f32.xlu0 %v4474
    %v4480 = vpop.xlane.xlu0 %4479
    %4481 = vadd.xlane.f32.xlu0 %v4475
    %v4482 = vpop.xlane.xlu0 %4481
    %4483 = vadd.xlane.f32.xlu0 %v4476
    %v4484 = vpop.xlane.xlu0 %4483
    %v4485 = vtanh.pop %v4478
    %v4486 = vtanh.pop %v4480
    %v4487 = vtanh.pop %v4482
    %v4488 = vtanh.pop %v4484
    %v4489 = vmul.f32 %v4485, 10.0
    %v4490 = vmul.f32 %v4486, 10.0
    %v4491 = vmul.f32 %v4487, 10.0
    %v4492 = vmul.f32 %v4488, 10.0
    %v4497 = vlaneseq
    %v4498 = vand.u32 %v4497, 127
    %v4499 = vlaneseq
    %v4500 = vshrl.u32 %v4499, 7
    %v4501 = vsub.s32 %v4498, %v4500
    %v4502 = vrot.slane %v4489, %v4501
    %v4503 = vlaneseq
    %v4504 = vshrl.u32 %v4503, 7
    %v4505 = vsub.s32 %v4498, %v4504
    %v4506 = vrot.slane %v4490, %v4505
    %v4507 = vlaneseq
    %v4508 = vshrl.u32 %v4507, 7
    %v4509 = vsub.s32 %v4498, %v4508
    %v4510 = vrot.slane %v4491, %v4509
    %v4511 = vlaneseq
    %v4512 = vshrl.u32 %v4511, 7
    %v4513 = vsub.s32 %v4498, %v4512
    %v4514 = vrot.slane %v4492, %v4513
    %v4515 = vsel %vm685, %v4506, %v4502
    %v4516 = vsel %vm688, %v4510, %v4515
    %v4517 = vsel %vm691, %v4514, %v4516
    %vm4519 = vcmask 60416
    %v4520 = vsel %vm4519, %v4517, -inf
    %4521 = vmax.xlane.f32.xlu0 %v4520
    %v4522 = vpop.xlane.xlu0 %4521
    %v4524 = vlaneseq
    %v4525 = vshrl.u32 %v4524, 7
    %v4526 = vsub.s32 0, %v4525
    %v4527 = vrot.slane %v4522, %v4526
    %v4528 = vlaneseq
    %v4529 = vshrl.u32 %v4528, 7
    %v4530 = vsub.s32 1, %v4529
    %v4531 = vrot.slane %v4522, %v4530
    %v4532 = vlaneseq
    %v4533 = vshrl.u32 %v4532, 7
    %v4534 = vsub.s32 2, %v4533
    %v4535 = vrot.slane %v4522, %v4534
    %v4536 = vlaneseq
    %v4537 = vshrl.u32 %v4536, 7
    %v4538 = vsub.s32 3, %v4537
    %v4539 = vrot.slane %v4522, %v4538
    %v4544 = vsub.f32 %v4489, %v4527
    %v4545 = vsub.f32 %v4490, %v4531
    %v4546 = vsub.f32 %v4491, %v4535
    %v4547 = vsub.f32 %v4492, %v4539
    %v4548 = vmul.f32 %v4544, 1.442695
    %v4549 = vpow.pop %v4548
    %v4550 = vmul.f32 %v4545, 1.442695
    %v4551 = vpow.pop %v4550
    %v4552 = vmul.f32 %v4546, 1.442695
    %v4553 = vpow.pop %v4552
    %v4554 = vmul.f32 %v4547, 1.442695
    %v4555 = vpow.pop %v4554
    %4560 = vset.pattern.permute.xlu0 0
    %4561 = vperm.xlu0 %4560, %v4549
    %v4562 = vpop.permute.xlu0 %4561
    %4563 = vset.pattern.permute.xlu0 0
    %4564 = vperm.xlu0 %4563, %v4551
    %v4565 = vpop.permute.xlu0 %4564
    %4566 = vset.pattern.permute.xlu0 0
    %4567 = vperm.xlu0 %4566, %v4553
    %v4568 = vpop.permute.xlu0 %4567
    %4569 = vset.pattern.permute.xlu0 0
    %4570 = vperm.xlu0 %4569, %v4555
    %v4571 = vpop.permute.xlu0 %4570
    %v4572 = vlaneseq
    %v4573 = vshrl.u32 %v4572, 7
    %v4574 = vsub.s32 %v4498, %v4573
    %v4575 = vrot.slane %v4562, %v4574
    %v4576 = vlaneseq
    %v4577 = vshrl.u32 %v4576, 7
    %v4578 = vsub.s32 %v4498, %v4577
    %v4579 = vrot.slane %v4565, %v4578
    %v4580 = vlaneseq
    %v4581 = vshrl.u32 %v4580, 7
    %v4582 = vsub.s32 %v4498, %v4581
    %v4583 = vrot.slane %v4568, %v4582
    %v4584 = vlaneseq
    %v4585 = vshrl.u32 %v4584, 7
    %v4586 = vsub.s32 %v4498, %v4585
    %v4587 = vrot.slane %v4571, %v4586
    %v4588 = vsel %vm685, %v4579, %v4575
    %v4589 = vsel %vm688, %v4583, %v4588
    %v4590 = vsel %vm691, %v4587, %v4589
    %v4592 = vsel %vm4519, %v4590, 0.0
    %4593 = vadd.xlane.f32.xlu0 %v4592
    %v4594 = vpop.xlane.xlu0 %4593
    %v4596 = vlaneseq
    %v4597 = vshrl.u32 %v4596, 7
    %v4598 = vsub.s32 0, %v4597
    %v4599 = vrot.slane %v4594, %v4598
    %v4600 = vlaneseq
    %v4601 = vshrl.u32 %v4600, 7
    %v4602 = vsub.s32 1, %v4601
    %v4603 = vrot.slane %v4594, %v4602
    %v4604 = vlaneseq
    %v4605 = vshrl.u32 %v4604, 7
    %v4606 = vsub.s32 2, %v4605
    %v4607 = vrot.slane %v4594, %v4606
    %v4608 = vlaneseq
    %v4609 = vshrl.u32 %v4608, 7
    %v4610 = vsub.s32 3, %v4609
    %v4611 = vrot.slane %v4594, %v4610
    %v4616 = vrcp.pop %v4599
    %v4617 = vmul.f32 %v4549, %v4616
    %v4618 = vrcp.pop %v4603
    %v4619 = vmul.f32 %v4551, %v4618
    %v4620 = vrcp.pop %v4607
    %v4621 = vmul.f32 %v4553, %v4620
    %v4622 = vrcp.pop %v4611
    %v4623 = vmul.f32 %v4555, %v4622
    %4625 = vset.pattern.permute.xlu0 0
    %4626 = vperm.xlu0 %4625, %v4617
    %v4627 = vpop.permute.xlu0 %4626
    %4630 = vset.pattern.permute.xlu0 0
    %4631 = vperm.xlu0 %4630, %v4619
    %v4632 = vpop.permute.xlu0 %4631
    %4635 = vset.pattern.permute.xlu0 0
    %4636 = vperm.xlu0 %4635, %v4621
    %v4637 = vpop.permute.xlu0 %4636
    %4640 = vset.pattern.permute.xlu0 0
    %4641 = vperm.xlu0 %4640, %v4623
    %v4642 = vpop.permute.xlu0 %4641
    %v4644 = vmul.f32 %v4627, %v4287
    %v4645 = vmul.f32 %v4632, %v4290
    %v4646 = vmul.f32 %v4637, %v4295
    %v4647 = vmul.f32 %v4642, %v4298
    %v4648 = vrot.slane %v4644, 4
    %v4649 = vadd.f32 %v4644, %v4648
    %v4650 = vrot.slane %v4649, 2
    %v4651 = vadd.f32 %v4649, %v4650
    %v4652 = vrot.slane %v4651, 1
    %v4653 = vadd.f32 %v4651, %v4652
    %v4654 = vrot.slane %v4645, 4
    %v4655 = vadd.f32 %v4645, %v4654
    %v4656 = vrot.slane %v4655, 2
    %v4657 = vadd.f32 %v4655, %v4656
    %v4658 = vrot.slane %v4657, 1
    %v4659 = vadd.f32 %v4657, %v4658
    %v4660 = vrot.slane %v4646, 4
    %v4661 = vadd.f32 %v4646, %v4660
    %v4662 = vrot.slane %v4661, 2
    %v4663 = vadd.f32 %v4661, %v4662
    %v4664 = vrot.slane %v4663, 1
    %v4665 = vadd.f32 %v4663, %v4664
    %v4666 = vrot.slane %v4647, 4
    %v4667 = vadd.f32 %v4647, %v4666
    %v4668 = vrot.slane %v4667, 2
    %v4669 = vadd.f32 %v4667, %v4668
    %v4670 = vrot.slane %v4669, 1
    %v4671 = vadd.f32 %v4669, %v4670
    %v4676 = vsel %vm685, %v4659, %v4653
    %v4677 = vsel %vm688, %v4665, %v4676
    %v4678 = vsel %vm691, %v4671, %v4677
    %4680 = vst [vmem:[#allocation3] sm:$0xf] %v4678
    %4681 = vst [vmem:[#allocation5] sm:$0xf] %v4174
    %4682 = vst [vmem:[#allocation7] sm:$0xf] %v4172
    // Predicated region
    $region54: #{tsp_forward.1} parent=1 // pred_check
      _
    $region55: #{tsp_forward.1} parent=1 // pred_check_branch
      %4684 = sbr.rel (0) target = $region57
    $region56: #{tsp_forward.1} parent=1 // pred_region
      %s4686 = ssub.s32 64, 64
      %4687 = vsyncadd [#allocation4], %s4686
      %s4689 = sshll.u32 [#allocation3], 4
      %s4690 = int_to_ptr.vmem [resolvable:$true] %s4689
      %4692 = dma.vmem_to_hbm [thread:$0]  %s4690, 64, %s13, [#allocation4]
    $region57: #{tsp_forward.1} parent=1 // pred_fallthru
      _
    // Predicated region
    $region58: #{tsp_forward.1} parent=1 // pred_check
      _
    $region59: #{tsp_forward.1} parent=1 // pred_check_branch
      %4694 = sbr.rel (0) target = $region61
    $region60: #{tsp_forward.1} parent=1 // pred_region
      %s4696 = ssub.s32 64, 64
      %4697 = vsyncadd [#allocation6], %s4696
      %s4699 = sshll.u32 [#allocation5], 4
      %s4700 = int_to_ptr.vmem [resolvable:$true] %s4699
      %4702 = dma.vmem_to_hbm [thread:$0]  %s4700, 64, %s14, [#allocation6]
    $region61: #{tsp_forward.1} parent=1 // pred_fallthru
      _
    // Predicated region
    $region62: #{tsp_forward.1} parent=1 // pred_check
      _
    $region63: #{tsp_forward.1} parent=1 // pred_check_branch
      %4704 = sbr.rel (0) target = $region65
    $region64: #{tsp_forward.1} parent=1 // pred_region
      %s4706 = ssub.s32 64, 64
      %4707 = vsyncadd [#allocation6], %s4706
      %s4709 = sshll.u32 [#allocation7], 4
      %s4710 = int_to_ptr.vmem [resolvable:$true] %s4709
      %4712 = dma.vmem_to_hbm [thread:$0]  %s4710, 64, %s15, [#allocation6]
    $region65: #{tsp_forward.1} parent=1 // pred_fallthru
      _
    // Predicated region
    $region66: #{tsp_forward.1} parent=1 // pred_check
      _
    $region67: #{tsp_forward.1} parent=1 // pred_check_branch
      %4714 = sbr.rel (0) target = $region69
    $region68: #{tsp_forward.1} parent=1 // pred_region
      %4715 = dma.done [#allocation4], 64
    $region69: #{tsp_forward.1} parent=1 // pred_fallthru
      _
    // Predicated region
    $region70: #{tsp_forward.1} parent=1 // pred_check
      _
    $region71: #{tsp_forward.1} parent=1 // pred_check_branch
      %4717 = sbr.rel (0) target = $region73
    $region72: #{tsp_forward.1} parent=1 // pred_region
      %4718 = dma.done [#allocation6], 64
    $region73: #{tsp_forward.1} parent=1 // pred_fallthru
      _
    // Predicated region
    $region74: #{tsp_forward.1} parent=1 // pred_check
      _
    $region75: #{tsp_forward.1} parent=1 // pred_check_branch
      %4720 = sbr.rel (0) target = $region77
    $region76: #{tsp_forward.1} parent=1 // pred_region
      %4721 = dma.done [#allocation6], 64
    $region77: #{tsp_forward.1} parent=1 // pred_fallthru
      _
    %4722 = vsyncpa [#allocation4], 1
    %4723 = vsyncpa [#allocation6], 1

</llo_original>
